<compile_context>
chip_gen: v7x
topology: tpu7x:2x2x1
jax: 0.10.0
libtpu: 0.0.40
codegen_flags: <defaults>
</compile_context>

<pallas_src>
import jax
import jax.numpy as jnp
from jax.experimental import pallas as pl
from jax.experimental.pallas import tpu as pltpu

EMBED = 100
EMBED_PAD = 128          # lane-aligned embedding feature dim (zero padded)
HIDDEN = 64
H2 = 2 * HIDDEN          # 128 : fwd|bwd concatenated
NUM_CLASSES = 4


# ---------------------------------------------------------------------------
# Fused kernel: 2-layer bidirectional relu-RNN + max-pool + collapsed head
# ---------------------------------------------------------------------------
def _fused_kernel(emb_ref,                      # (L*N, 128) bf16 padded embeddings
                  wih0_ref, whh0_ref, b0_ref,   # layer 0: (128,128)bf16,(128,128)bf16,(1,128)f32
                  wih1_ref, whh1_ref, b1_ref,   # layer 1: same shapes
                  wh_ref, bh_ref,               # collapsed head: (128,4)f32,(1,4)f32
                  out_ref,                      # (L, 4) f32   (L == B)
                  pre_scr,                      # (L, N, 128) f32 VMEM: loop-aligned pre-activations
                  hs0_scr,                      # (L*N, 128)  f32 VMEM: raw layer-0 states
                  hs1_scr):                     # (L, N, 128) f32 VMEM: raw layer-1 states
    LN = emb_ref.shape[0]
    L = out_ref.shape[0]
    N = LN // L
    H = HIDDEN
    f32, bf16 = jnp.float32, jnp.bfloat16

    # ---------------- layer 0 : input projection (one bf16 MXU matmul) -----
    p0 = jnp.dot(emb_ref[...], wih0_ref[...],
                 preferred_element_type=f32) + b0_ref[...]        # (L*N,128) f32
    # Scatter into the LOOP-aligned pre slab (done once, off the serial path):
    #   pre[t,:, :H] = p0_time[t]      (fwd input at time t)
    #   pre[t,:, H:] = p0_time[L-1-t]  (bwd input at time L-1-t)
    for s in range(L):
        blk = p0[s * N:(s + 1) * N, :]
        pre_scr[s, :, :H] = blk[:, :H]
        pre_scr[L - 1 - s, :, H:] = blk[:, H:]

    # ---------------- layer 0 : recurrence (serial critical path) ----------
    whh0 = whh0_ref[...]
    h = jnp.zeros((N, H2), f32)
    for t in range(L):                                            # static unroll
        h = jnp.maximum(
            pre_scr[t, :, :] + jnp.dot(h.astype(bf16), whh0,
                                       preferred_element_type=f32), 0.0)
        hs0_scr[t * N:(t + 1) * N, :] = h       # full-128-lane unmasked store

    # ---------------- layer 1 : input projection ---------------------------
    # p1_time[s] = hs0_raw[s,:, :H] @ W1[:H] + hs0_raw[L-1-s,:, H:] @ W1[H:] + b1
    a0 = hs0_scr[...].astype(bf16)                                # (L*N,128)
    t1 = jnp.dot(a0[:, :H], wih1_ref[:H, :], preferred_element_type=f32)
    t2 = jnp.dot(a0[:, H:], wih1_ref[H:, :], preferred_element_type=f32)
    b1 = b1_ref[...]
    for s in range(L):
        row = (t1[s * N:(s + 1) * N, :]
               + t2[(L - 1 - s) * N:(L - s) * N, :] + b1)         # p1 at time s
        pre_scr[s, :, :H] = row[:, :H]
        pre_scr[L - 1 - s, :, H:] = row[:, H:]

    # ---------------- layer 1 : recurrence ----------------------------------
    whh1 = whh1_ref[...]
    h = jnp.zeros((N, H2), f32)
    for t in range(L):
        h = jnp.maximum(
            pre_scr[t, :, :] + jnp.dot(h.astype(bf16), whh1,
                                       preferred_element_type=f32), 0.0)
        hs1_scr[t, :, :] = h

    # ---------------- pool (over N == T) + collapsed head + softmax ---------
    pooled_raw = jnp.max(hs1_scr[...], axis=1)                    # (L,128) raw order
    # realign bwd half: pooled[s] = [pooled_raw[s,:H] | pooled_raw[L-1-s,H:]]
    pooled = jnp.concatenate(
        [jnp.concatenate([pooled_raw[s:s + 1, :H],
                          pooled_raw[L - 1 - s:L - s, H:]], axis=-1)
         for s in range(L)], axis=0)                               # (L,128)

    logits = jnp.dot(pooled, wh_ref[...],
                     preferred_element_type=f32) + bh_ref[...]     # (L,4)
    m = jnp.max(logits, axis=-1, keepdims=True)
    e = jnp.exp(logits - m)
    out_ref[...] = e * pl.reciprocal(jnp.sum(e, axis=-1, keepdims=True),
                                     approx=True)


def _full_spec(shape):
    nd = len(shape)
    return pl.BlockSpec(shape, lambda i, _nd=nd: (0,) * _nd)


def fused_forward(emb_flat, wih0, whh0, b0, wih1, whh1, b1, wh, bh, *, L, N):
    args = (emb_flat, wih0, whh0, b0, wih1, whh1, b1, wh, bh)
    return pl.pallas_call(
        _fused_kernel,
        out_shape=jax.ShapeDtypeStruct((L, NUM_CLASSES), jnp.float32),
        grid_spec=pltpu.PrefetchScalarGridSpec(
            num_scalar_prefetch=0,
            grid=(1,),
            in_specs=[_full_spec(a.shape) for a in args],
            out_specs=_full_spec((L, NUM_CLASSES)),
            scratch_shapes=[pltpu.VMEM((L, N, H2), jnp.float32),   # pre_scr
                            pltpu.VMEM((L * N, H2), jnp.float32),  # hs0_scr
                            pltpu.VMEM((L, N, H2), jnp.float32)],  # hs1_scr
        ),
        compiler_params=pltpu.CompilerParams(
            dimension_semantics=("arbitrary",)),
    )(*args)


# ---------------------------------------------------------------------------
# One-time parameter preparation (hoisted out of the per-call path)
# ---------------------------------------------------------------------------
def prepare_params(params):
    f32, bf16 = jnp.float32, jnp.bfloat16

    # Pad embedding feature dim 100 -> 128 with zeros (matching W_ih rows are
    # zero too), store in bf16 so the gathered activations feed the MXU directly.
    emb_tab = params["embedding"].astype(f32)
    emb_tab = jnp.concatenate(
        [emb_tab, jnp.zeros((emb_tab.shape[0], EMBED_PAD - EMBED), f32)], axis=1)

    def pack_layer(lp, d_in):
        wih_f, wih_b = lp["wih_f"], lp["wih_b"]
        if d_in < EMBED_PAD:
            z = jnp.zeros((EMBED_PAD - d_in, HIDDEN), f32)
            wih_f = jnp.concatenate([wih_f, z], axis=0)
            wih_b = jnp.concatenate([wih_b, z], axis=0)
        wih = jnp.concatenate([wih_f, wih_b], axis=1)              # (128,128)
        z = jnp.zeros((HIDDEN, HIDDEN), f32)
        whh = jnp.concatenate(                                     # exact block-diag
            [jnp.concatenate([lp["whh_f"], z], axis=1),
             jnp.concatenate([z, lp["whh_b"]], axis=1)], axis=0)
        b = jnp.concatenate([lp["b_f"], lp["b_b"]], axis=1)        # (1,128)
        return wih.astype(bf16), whh.astype(bf16), b.astype(f32)

    wih0, whh0, b0 = pack_layer(params["rnn_l0"], EMBED)
    wih1, whh1, b1 = pack_layer(params["rnn_l1"], H2)

    # Collapse linear1 + clf (no nonlinearity between them -> exact).
    wh = (params["w1_t"] @ params["w2_t"]).astype(f32)             # (128,4)
    bh = (params["b1"] @ params["w2_t"] + params["b2"]).astype(f32)  # (1,4)

    return {"emb_tab": emb_tab.astype(bf16),
            "wih0": wih0, "whh0": whh0, "b0": b0,
            "wih1": wih1, "whh1": whh1, "b1": b1,
            "wh": wh, "bh": bh}


# ---------------------------------------------------------------------------
# Per-call forward: token gather (plain-JAX glue) + one pallas_call
# ---------------------------------------------------------------------------
@jax.jit
def recurrent_network_forward(x_tokens, prepped):
    B, T = x_tokens.shape
    # (B*T, 128) bf16, row-major over (B, T) -> matches the kernel's (L, N) layout.
    emb_flat = prepped["emb_tab"][x_tokens.reshape(-1)]
    return fused_forward(emb_flat,
                         prepped["wih0"], prepped["whh0"], prepped["b0"],
                         prepped["wih1"], prepped["whh1"], prepped["b1"],
                         prepped["wh"], prepped["bh"], L=B, N=T)   # (B, 4)


# ---------------------------------------------------------------------------
# Pure-JAX f32 reference (for a correctness sanity check)
# ---------------------------------------------------------------------------
def reference_forward(x_tokens, params):
    emb = params["embedding"][x_tokens].astype(jnp.float32)

    def run_dir(inp, wih_t, whh_t, b):
        def step(h, x_t):
            h_new = jnp.maximum(x_t @ wih_t + h @ whh_t + b[0], 0.0)
            return h_new, h_new
        h0 = jnp.zeros((inp.shape[1], whh_t.shape[1]), jnp.float32)
        _, ys = jax.lax.scan(step, h0, inp)
        return ys

    def bidir(inp, lp):
        fwd = run_dir(inp, lp["wih_f"], lp["whh_f"], lp["b_f"])
        bwd = jnp.flip(run_dir(jnp.flip(inp, 0),
                               lp["wih_b"], lp["whh_b"], lp["b_b"]), 0)
        return jnp.concatenate([fwd, bwd], axis=-1)

    h1 = bidir(bidir(emb, params["rnn_l0"]), params["rnn_l1"])
    pooled = jnp.max(h1, axis=1)
    logits = (pooled @ params["w1_t"] + params["b1"][0]) @ params["w2_t"] \
        + params["b2"][0]
    return jax.nn.softmax(logits, axis=-1)


# ---------------------------------------------------------------------------
def make_params(key, vocab):
    ks = jax.random.split(key, 32)
    ki = iter(ks)

    def uni(shape, bound):
        return jax.random.uniform(next(ki), shape, jnp.float32, -bound, bound)

    bnd = 1.0 / jnp.sqrt(HIDDEN)

    def rnn_layer(d_in):
        return {
            "wih_f": uni((d_in, HIDDEN), bnd),
            "whh_f": uni((HIDDEN, HIDDEN), bnd),
            "b_f": uni((1, HIDDEN), bnd) + uni((1, HIDDEN), bnd),  # b_ih + b_hh
            "wih_b": uni((d_in, HIDDEN), bnd),
            "whh_b": uni((HIDDEN, HIDDEN), bnd),
            "b_b": uni((1, HIDDEN), bnd) + uni((1, HIDDEN), bnd),
        }

    return {
        # padding_idx row is NOT zeroed: the PyTorch module overwrites .weight
        # with the provided embeddings, so forward semantics are a plain gather.
        "embedding": jax.random.normal(next(ki), (vocab, EMBED), jnp.float32),
        "rnn_l0": rnn_layer(EMBED),
        "rnn_l1": rnn_layer(H2),
        "w1_t": uni((H2, HIDDEN), 1.0 / jnp.sqrt(H2)),
        "b1": uni((1, HIDDEN), 1.0 / jnp.sqrt(H2)),
        "w2_t": uni((HIDDEN, NUM_CLASSES), 1.0 / jnp.sqrt(HIDDEN)),
        "b2": uni((1, NUM_CLASSES), 1.0 / jnp.sqrt(HIDDEN)),
    }


if __name__ == "__main__":
    # NOTE: the PyTorch module (batch_first=False RNN fed a (B,T,E) tensor)
    # really does recur over the batch dim; we reproduce that as-written.
    VOCAB, B, T = 50, 8, 16
    key = jax.random.PRNGKey(0)
    kp, kx = jax.random.split(key)
    params = make_params(kp, VOCAB)
    x = jax.random.randint(kx, (B, T), 0, VOCAB, dtype=jnp.int32)

    prepped = prepare_params(params)            # one-time packing (hoisted)

    out = jax.block_until_ready(recurrent_network_forward(x, prepped))
    ref = jax.block_until_ready(reference_forward(x, params))

    assert out.shape == (B, NUM_CLASSES)
    assert bool(jnp.all(jnp.isfinite(out)))
    # Kernel uses bf16 MXU operands (per perf review) vs pure-f32 reference.
    assert bool(jnp.allclose(out, ref, atol=2e-2, rtol=2e-2)), \
        f"max abs err {float(jnp.max(jnp.abs(out - ref)))}"

    print("KERNEL_OK")
</pallas_src>

<mosaic_0001>
module attributes {stable_mosaic.version = 11 : i64} {
  func.func @_fused_kernel(%arg0: i32, %arg1: memref<128x128xbf16, #tpu.memory_space<vmem>>, %arg2: memref<128x128xbf16, #tpu.memory_space<vmem>>, %arg3: memref<128x128xbf16, #tpu.memory_space<vmem>>, %arg4: memref<1x128xf32, #tpu.memory_space<vmem>>, %arg5: memref<128x128xbf16, #tpu.memory_space<vmem>>, %arg6: memref<128x128xbf16, #tpu.memory_space<vmem>>, %arg7: memref<1x128xf32, #tpu.memory_space<vmem>>, %arg8: memref<128x4xf32, #tpu.memory_space<vmem>>, %arg9: memref<1x4xf32, #tpu.memory_space<vmem>>, %arg10: memref<8x4xf32, #tpu.memory_space<vmem>>, %arg11: memref<8x16x128xf32, #tpu.memory_space<vmem>>, %arg12: memref<128x128xf32, #tpu.memory_space<vmem>>, %arg13: memref<8x16x128xf32, #tpu.memory_space<vmem>>) attributes {dimension_semantics = [#tpu.dimension_semantics<arbitrary>], iteration_bounds = array<i64: 1>, scalar_prefetch = 0 : i64, scratch_operands = 3 : i64, tpu.core_type = #tpu.core_type<tc>, window_params = [{pipeline_mode = #tpu.pipeline_mode<synchronous>, transform_indices = @transform_0, window_bounds = array<i64: 128, 128>}, {pipeline_mode = #tpu.pipeline_mode<synchronous>, transform_indices = @transform_1, window_bounds = array<i64: 128, 128>}, {pipeline_mode = #tpu.pipeline_mode<synchronous>, transform_indices = @transform_2, window_bounds = array<i64: 128, 128>}, {pipeline_mode = #tpu.pipeline_mode<synchronous>, transform_indices = @transform_3, window_bounds = array<i64: 1, 128>}, {pipeline_mode = #tpu.pipeline_mode<synchronous>, transform_indices = @transform_4, window_bounds = array<i64: 128, 128>}, {pipeline_mode = #tpu.pipeline_mode<synchronous>, transform_indices = @transform_5, window_bounds = array<i64: 128, 128>}, {pipeline_mode = #tpu.pipeline_mode<synchronous>, transform_indices = @transform_6, window_bounds = array<i64: 1, 128>}, {pipeline_mode = #tpu.pipeline_mode<synchronous>, transform_indices = @transform_7, window_bounds = array<i64: 128, 4>}, {pipeline_mode = #tpu.pipeline_mode<synchronous>, transform_indices = @transform_8, window_bounds = array<i64: 1, 4>}, {pipeline_mode = #tpu.pipeline_mode<synchronous>, transform_indices = @transform_9, window_bounds = array<i64: 8, 4>}]} {
    %c0 = arith.constant 0 : index
    %c0_0 = arith.constant 0 : index
    %0 = vector.load %arg1[%c0, %c0_0] : memref<128x128xbf16, #tpu.memory_space<vmem>>, vector<128x128xbf16>
    %c0_1 = arith.constant 0 : index
    %c0_2 = arith.constant 0 : index
    %1 = vector.load %arg2[%c0_1, %c0_2] : memref<128x128xbf16, #tpu.memory_space<vmem>>, vector<128x128xbf16>
    %cst = arith.constant dense<0.000000e+00> : vector<128x128xf32>
    %2 = tpu.matmul %0, %1, %cst {dimension_numbers = #tpu.dot_dimension_numbers<[1], [0], [0], [1], [0, 0, 1, 1], [], []>} : vector<128x128xbf16>, vector<128x128xbf16>, vector<128x128xf32> -> vector<128x128xf32>
    %c0_3 = arith.constant 0 : index
    %c0_4 = arith.constant 0 : index
    %3 = vector.load %arg4[%c0_3, %c0_4] : memref<1x128xf32, #tpu.memory_space<vmem>>, vector<1x128xf32>
    %4 = vector.broadcast %3 : vector<1x128xf32> to vector<128x128xf32>
    %5 = arith.addf %2, %4 : vector<128x128xf32>
    %6 = vector.extract_strided_slice %5 {offsets = [0, 0], sizes = [16, 128], strides = [1, 1]} : vector<128x128xf32> to vector<16x128xf32>
    %7 = vector.extract_strided_slice %6 {offsets = [0, 0], sizes = [16, 64], strides = [1, 1]} : vector<16x128xf32> to vector<16x64xf32>
    %c0_5 = arith.constant 0 : index
    %c0_6 = arith.constant 0 : index
    %c0_7 = arith.constant 0 : index
    %8 = vector.load %arg11[%c0_5, %c0_6, %c0_7] : memref<8x16x128xf32, #tpu.memory_space<vmem>>, vector<1x16x64xf32>
    %9 = vector.shape_cast %8 : vector<1x16x64xf32> to vector<16x64xf32>
    %10 = vector.shape_cast %7 : vector<16x64xf32> to vector<1x16x64xf32>
    tpu.vector_store %arg11[%c0_5, %c0_6, %c0_7], %10 {strides = array<i32>} : memref<8x16x128xf32, #tpu.memory_space<vmem>>, vector<1x16x64xf32>,
    %11 = vector.extract_strided_slice %6 {offsets = [0, 64], sizes = [16, 64], strides = [1, 1]} : vector<16x128xf32> to vector<16x64xf32>
    %c7 = arith.constant 7 : index
    %c0_8 = arith.constant 0 : index
    %c64 = arith.constant 64 : index
    %12 = vector.load %arg11[%c7, %c0_8, %c64] : memref<8x16x128xf32, #tpu.memory_space<vmem>>, vector<1x16x64xf32>
    %13 = vector.shape_cast %12 : vector<1x16x64xf32> to vector<16x64xf32>
    %14 = vector.shape_cast %11 : vector<16x64xf32> to vector<1x16x64xf32>
    tpu.vector_store %arg11[%c7, %c0_8, %c64], %14 {strides = array<i32>} : memref<8x16x128xf32, #tpu.memory_space<vmem>>, vector<1x16x64xf32>,
    %15 = vector.extract_strided_slice %5 {offsets = [16, 0], sizes = [16, 128], strides = [1, 1]} : vector<128x128xf32> to vector<16x128xf32>
    %16 = vector.extract_strided_slice %15 {offsets = [0, 0], sizes = [16, 64], strides = [1, 1]} : vector<16x128xf32> to vector<16x64xf32>
    %c1 = arith.constant 1 : index
    %c0_9 = arith.constant 0 : index
    %c0_10 = arith.constant 0 : index
    %17 = vector.load %arg11[%c1, %c0_9, %c0_10] : memref<8x16x128xf32, #tpu.memory_space<vmem>>, vector<1x16x64xf32>
    %18 = vector.shape_cast %17 : vector<1x16x64xf32> to vector<16x64xf32>
    %19 = vector.shape_cast %16 : vector<16x64xf32> to vector<1x16x64xf32>
    tpu.vector_store %arg11[%c1, %c0_9, %c0_10], %19 {strides = array<i32>} : memref<8x16x128xf32, #tpu.memory_space<vmem>>, vector<1x16x64xf32>,
    %20 = vector.extract_strided_slice %15 {offsets = [0, 64], sizes = [16, 64], strides = [1, 1]} : vector<16x128xf32> to vector<16x64xf32>
    %c6 = arith.constant 6 : index
    %c0_11 = arith.constant 0 : index
    %c64_12 = arith.constant 64 : index
    %21 = vector.load %arg11[%c6, %c0_11, %c64_12] : memref<8x16x128xf32, #tpu.memory_space<vmem>>, vector<1x16x64xf32>
    %22 = vector.shape_cast %21 : vector<1x16x64xf32> to vector<16x64xf32>
    %23 = vector.shape_cast %20 : vector<16x64xf32> to vector<1x16x64xf32>
    tpu.vector_store %arg11[%c6, %c0_11, %c64_12], %23 {strides = array<i32>} : memref<8x16x128xf32, #tpu.memory_space<vmem>>, vector<1x16x64xf32>,
    %24 = vector.extract_strided_slice %5 {offsets = [32, 0], sizes = [16, 128], strides = [1, 1]} : vector<128x128xf32> to vector<16x128xf32>
    %25 = vector.extract_strided_slice %24 {offsets = [0, 0], sizes = [16, 64], strides = [1, 1]} : vector<16x128xf32> to vector<16x64xf32>
    %c2 = arith.constant 2 : index
    %c0_13 = arith.constant 0 : index
    %c0_14 = arith.constant 0 : index
    %26 = vector.load %arg11[%c2, %c0_13, %c0_14] : memref<8x16x128xf32, #tpu.memory_space<vmem>>, vector<1x16x64xf32>
    %27 = vector.shape_cast %26 : vector<1x16x64xf32> to vector<16x64xf32>
    %28 = vector.shape_cast %25 : vector<16x64xf32> to vector<1x16x64xf32>
    tpu.vector_store %arg11[%c2, %c0_13, %c0_14], %28 {strides = array<i32>} : memref<8x16x128xf32, #tpu.memory_space<vmem>>, vector<1x16x64xf32>,
    %29 = vector.extract_strided_slice %24 {offsets = [0, 64], sizes = [16, 64], strides = [1, 1]} : vector<16x128xf32> to vector<16x64xf32>
    %c5 = arith.constant 5 : index
    %c0_15 = arith.constant 0 : index
    %c64_16 = arith.constant 64 : index
    %30 = vector.load %arg11[%c5, %c0_15, %c64_16] : memref<8x16x128xf32, #tpu.memory_space<vmem>>, vector<1x16x64xf32>
    %31 = vector.shape_cast %30 : vector<1x16x64xf32> to vector<16x64xf32>
    %32 = vector.shape_cast %29 : vector<16x64xf32> to vector<1x16x64xf32>
    tpu.vector_store %arg11[%c5, %c0_15, %c64_16], %32 {strides = array<i32>} : memref<8x16x128xf32, #tpu.memory_space<vmem>>, vector<1x16x64xf32>,
    %33 = vector.extract_strided_slice %5 {offsets = [48, 0], sizes = [16, 128], strides = [1, 1]} : vector<128x128xf32> to vector<16x128xf32>
    %34 = vector.extract_strided_slice %33 {offsets = [0, 0], sizes = [16, 64], strides = [1, 1]} : vector<16x128xf32> to vector<16x64xf32>
    %c3 = arith.constant 3 : index
    %c0_17 = arith.constant 0 : index
    %c0_18 = arith.constant 0 : index
    %35 = vector.load %arg11[%c3, %c0_17, %c0_18] : memref<8x16x128xf32, #tpu.memory_space<vmem>>, vector<1x16x64xf32>
    %36 = vector.shape_cast %35 : vector<1x16x64xf32> to vector<16x64xf32>
    %37 = vector.shape_cast %34 : vector<16x64xf32> to vector<1x16x64xf32>
    tpu.vector_store %arg11[%c3, %c0_17, %c0_18], %37 {strides = array<i32>} : memref<8x16x128xf32, #tpu.memory_space<vmem>>, vector<1x16x64xf32>,
    %38 = vector.extract_strided_slice %33 {offsets = [0, 64], sizes = [16, 64], strides = [1, 1]} : vector<16x128xf32> to vector<16x64xf32>
    %c4 = arith.constant 4 : index
    %c0_19 = arith.constant 0 : index
    %c64_20 = arith.constant 64 : index
    %39 = vector.load %arg11[%c4, %c0_19, %c64_20] : memref<8x16x128xf32, #tpu.memory_space<vmem>>, vector<1x16x64xf32>
    %40 = vector.shape_cast %39 : vector<1x16x64xf32> to vector<16x64xf32>
    %41 = vector.shape_cast %38 : vector<16x64xf32> to vector<1x16x64xf32>
    tpu.vector_store %arg11[%c4, %c0_19, %c64_20], %41 {strides = array<i32>} : memref<8x16x128xf32, #tpu.memory_space<vmem>>, vector<1x16x64xf32>,
    %42 = vector.extract_strided_slice %5 {offsets = [64, 0], sizes = [16, 128], strides = [1, 1]} : vector<128x128xf32> to vector<16x128xf32>
    %43 = vector.extract_strided_slice %42 {offsets = [0, 0], sizes = [16, 64], strides = [1, 1]} : vector<16x128xf32> to vector<16x64xf32>
    %c4_21 = arith.constant 4 : index
    %c0_22 = arith.constant 0 : index
    %c0_23 = arith.constant 0 : index
    %44 = vector.load %arg11[%c4_21, %c0_22, %c0_23] : memref<8x16x128xf32, #tpu.memory_space<vmem>>, vector<1x16x64xf32>
    %45 = vector.shape_cast %44 : vector<1x16x64xf32> to vector<16x64xf32>
    %46 = vector.shape_cast %43 : vector<16x64xf32> to vector<1x16x64xf32>
    tpu.vector_store %arg11[%c4_21, %c0_22, %c0_23], %46 {strides = array<i32>} : memref<8x16x128xf32, #tpu.memory_space<vmem>>, vector<1x16x64xf32>,
    %47 = vector.extract_strided_slice %42 {offsets = [0, 64], sizes = [16, 64], strides = [1, 1]} : vector<16x128xf32> to vector<16x64xf32>
    %c3_24 = arith.constant 3 : index
    %c0_25 = arith.constant 0 : index
    %c64_26 = arith.constant 64 : index
    %48 = vector.load %arg11[%c3_24, %c0_25, %c64_26] : memref<8x16x128xf32, #tpu.memory_space<vmem>>, vector<1x16x64xf32>
    %49 = vector.shape_cast %48 : vector<1x16x64xf32> to vector<16x64xf32>
    %50 = vector.shape_cast %47 : vector<16x64xf32> to vector<1x16x64xf32>
    tpu.vector_store %arg11[%c3_24, %c0_25, %c64_26], %50 {strides = array<i32>} : memref<8x16x128xf32, #tpu.memory_space<vmem>>, vector<1x16x64xf32>,
    %51 = vector.extract_strided_slice %5 {offsets = [80, 0], sizes = [16, 128], strides = [1, 1]} : vector<128x128xf32> to vector<16x128xf32>
    %52 = vector.extract_strided_slice %51 {offsets = [0, 0], sizes = [16, 64], strides = [1, 1]} : vector<16x128xf32> to vector<16x64xf32>
    %c5_27 = arith.constant 5 : index
    %c0_28 = arith.constant 0 : index
    %c0_29 = arith.constant 0 : index
    %53 = vector.load %arg11[%c5_27, %c0_28, %c0_29] : memref<8x16x128xf32, #tpu.memory_space<vmem>>, vector<1x16x64xf32>
    %54 = vector.shape_cast %53 : vector<1x16x64xf32> to vector<16x64xf32>
    %55 = vector.shape_cast %52 : vector<16x64xf32> to vector<1x16x64xf32>
    tpu.vector_store %arg11[%c5_27, %c0_28, %c0_29], %55 {strides = array<i32>} : memref<8x16x128xf32, #tpu.memory_space<vmem>>, vector<1x16x64xf32>,
    %56 = vector.extract_strided_slice %51 {offsets = [0, 64], sizes = [16, 64], strides = [1, 1]} : vector<16x128xf32> to vector<16x64xf32>
    %c2_30 = arith.constant 2 : index
    %c0_31 = arith.constant 0 : index
    %c64_32 = arith.constant 64 : index
    %57 = vector.load %arg11[%c2_30, %c0_31, %c64_32] : memref<8x16x128xf32, #tpu.memory_space<vmem>>, vector<1x16x64xf32>
    %58 = vector.shape_cast %57 : vector<1x16x64xf32> to vector<16x64xf32>
    %59 = vector.shape_cast %56 : vector<16x64xf32> to vector<1x16x64xf32>
    tpu.vector_store %arg11[%c2_30, %c0_31, %c64_32], %59 {strides = array<i32>} : memref<8x16x128xf32, #tpu.memory_space<vmem>>, vector<1x16x64xf32>,
    %60 = vector.extract_strided_slice %5 {offsets = [96, 0], sizes = [16, 128], strides = [1, 1]} : vector<128x128xf32> to vector<16x128xf32>
    %61 = vector.extract_strided_slice %60 {offsets = [0, 0], sizes = [16, 64], strides = [1, 1]} : vector<16x128xf32> to vector<16x64xf32>
    %c6_33 = arith.constant 6 : index
    %c0_34 = arith.constant 0 : index
    %c0_35 = arith.constant 0 : index
    %62 = vector.load %arg11[%c6_33, %c0_34, %c0_35] : memref<8x16x128xf32, #tpu.memory_space<vmem>>, vector<1x16x64xf32>
    %63 = vector.shape_cast %62 : vector<1x16x64xf32> to vector<16x64xf32>
    %64 = vector.shape_cast %61 : vector<16x64xf32> to vector<1x16x64xf32>
    tpu.vector_store %arg11[%c6_33, %c0_34, %c0_35], %64 {strides = array<i32>} : memref<8x16x128xf32, #tpu.memory_space<vmem>>, vector<1x16x64xf32>,
    %65 = vector.extract_strided_slice %60 {offsets = [0, 64], sizes = [16, 64], strides = [1, 1]} : vector<16x128xf32> to vector<16x64xf32>
    %c1_36 = arith.constant 1 : index
    %c0_37 = arith.constant 0 : index
    %c64_38 = arith.constant 64 : index
    %66 = vector.load %arg11[%c1_36, %c0_37, %c64_38] : memref<8x16x128xf32, #tpu.memory_space<vmem>>, vector<1x16x64xf32>
    %67 = vector.shape_cast %66 : vector<1x16x64xf32> to vector<16x64xf32>
    %68 = vector.shape_cast %65 : vector<16x64xf32> to vector<1x16x64xf32>
    tpu.vector_store %arg11[%c1_36, %c0_37, %c64_38], %68 {strides = array<i32>} : memref<8x16x128xf32, #tpu.memory_space<vmem>>, vector<1x16x64xf32>,
    %69 = vector.extract_strided_slice %5 {offsets = [112, 0], sizes = [16, 128], strides = [1, 1]} : vector<128x128xf32> to vector<16x128xf32>
    %70 = vector.extract_strided_slice %69 {offsets = [0, 0], sizes = [16, 64], strides = [1, 1]} : vector<16x128xf32> to vector<16x64xf32>
    %c7_39 = arith.constant 7 : index
    %c0_40 = arith.constant 0 : index
    %c0_41 = arith.constant 0 : index
    %71 = vector.load %arg11[%c7_39, %c0_40, %c0_41] : memref<8x16x128xf32, #tpu.memory_space<vmem>>, vector<1x16x64xf32>
    %72 = vector.shape_cast %71 : vector<1x16x64xf32> to vector<16x64xf32>
    %73 = vector.shape_cast %70 : vector<16x64xf32> to vector<1x16x64xf32>
    tpu.vector_store %arg11[%c7_39, %c0_40, %c0_41], %73 {strides = array<i32>} : memref<8x16x128xf32, #tpu.memory_space<vmem>>, vector<1x16x64xf32>,
    %74 = vector.extract_strided_slice %69 {offsets = [0, 64], sizes = [16, 64], strides = [1, 1]} : vector<16x128xf32> to vector<16x64xf32>
    %c0_42 = arith.constant 0 : index
    %c0_43 = arith.constant 0 : index
    %c64_44 = arith.constant 64 : index
    %75 = vector.load %arg11[%c0_42, %c0_43, %c64_44] : memref<8x16x128xf32, #tpu.memory_space<vmem>>, vector<1x16x64xf32>
    %76 = vector.shape_cast %75 : vector<1x16x64xf32> to vector<16x64xf32>
    %77 = vector.shape_cast %74 : vector<16x64xf32> to vector<1x16x64xf32>
    tpu.vector_store %arg11[%c0_42, %c0_43, %c64_44], %77 {strides = array<i32>} : memref<8x16x128xf32, #tpu.memory_space<vmem>>, vector<1x16x64xf32>,
    %c0_45 = arith.constant 0 : index
    %c0_46 = arith.constant 0 : index
    %78 = vector.load %arg3[%c0_45, %c0_46] : memref<128x128xbf16, #tpu.memory_space<vmem>>, vector<128x128xbf16>
    %cst_47 = arith.constant 0.000000e+00 : f32
    %79 = vector.broadcast %cst_47 : f32 to vector<16x128xf32>
    %c0_48 = arith.constant 0 : index
    %c0_49 = arith.constant 0 : index
    %c0_50 = arith.constant 0 : index
    %80 = vector.load %arg11[%c0_48, %c0_49, %c0_50] : memref<8x16x128xf32, #tpu.memory_space<vmem>>, vector<1x16x128xf32>
    %81 = vector.shape_cast %80 : vector<1x16x128xf32> to vector<16x128xf32>
    %82 = arith.truncf %79 : vector<16x128xf32> to vector<16x128xbf16>
    %cst_51 = arith.constant dense<0.000000e+00> : vector<16x128xf32>
    %83 = tpu.matmul %82, %78, %cst_51 {dimension_numbers = #tpu.dot_dimension_numbers<[1], [0], [0], [1], [0, 0, 1, 1], [], []>} : vector<16x128xbf16>, vector<128x128xbf16>, vector<16x128xf32> -> vector<16x128xf32>
    %84 = arith.addf %81, %83 : vector<16x128xf32>
    %cst_52 = arith.constant 0.000000e+00 : f32
    %85 = vector.broadcast %cst_52 : f32 to vector<16x128xf32>
    %86 = arith.maximumf %84, %85 : vector<16x128xf32>
    %c0_53 = arith.constant 0 : index
    %c0_54 = arith.constant 0 : index
    %87 = vector.load %arg12[%c0_53, %c0_54] : memref<128x128xf32, #tpu.memory_space<vmem>>, vector<16x128xf32>
    tpu.vector_store %arg12[%c0_53, %c0_54], %86 {strides = array<i32>} : memref<128x128xf32, #tpu.memory_space<vmem>>, vector<16x128xf32>,
    %c1_55 = arith.constant 1 : index
    %c0_56 = arith.constant 0 : index
    %c0_57 = arith.constant 0 : index
    %88 = vector.load %arg11[%c1_55, %c0_56, %c0_57] : memref<8x16x128xf32, #tpu.memory_space<vmem>>, vector<1x16x128xf32>
    %89 = vector.shape_cast %88 : vector<1x16x128xf32> to vector<16x128xf32>
    %90 = arith.truncf %86 : vector<16x128xf32> to vector<16x128xbf16>
    %cst_58 = arith.constant dense<0.000000e+00> : vector<16x128xf32>
    %91 = tpu.matmul %90, %78, %cst_58 {dimension_numbers = #tpu.dot_dimension_numbers<[1], [0], [0], [1], [0, 0, 1, 1], [], []>} : vector<16x128xbf16>, vector<128x128xbf16>, vector<16x128xf32> -> vector<16x128xf32>
    %92 = arith.addf %89, %91 : vector<16x128xf32>
    %cst_59 = arith.constant 0.000000e+00 : f32
    %93 = vector.broadcast %cst_59 : f32 to vector<16x128xf32>
    %94 = arith.maximumf %92, %93 : vector<16x128xf32>
    %c16 = arith.constant 16 : index
    %c0_60 = arith.constant 0 : index
    %95 = vector.load %arg12[%c16, %c0_60] : memref<128x128xf32, #tpu.memory_space<vmem>>, vector<16x128xf32>
    tpu.vector_store %arg12[%c16, %c0_60], %94 {strides = array<i32>} : memref<128x128xf32, #tpu.memory_space<vmem>>, vector<16x128xf32>,
    %c2_61 = arith.constant 2 : index
    %c0_62 = arith.constant 0 : index
    %c0_63 = arith.constant 0 : index
    %96 = vector.load %arg11[%c2_61, %c0_62, %c0_63] : memref<8x16x128xf32, #tpu.memory_space<vmem>>, vector<1x16x128xf32>
    %97 = vector.shape_cast %96 : vector<1x16x128xf32> to vector<16x128xf32>
    %98 = arith.truncf %94 : vector<16x128xf32> to vector<16x128xbf16>
    %cst_64 = arith.constant dense<0.000000e+00> : vector<16x128xf32>
    %99 = tpu.matmul %98, %78, %cst_64 {dimension_numbers = #tpu.dot_dimension_numbers<[1], [0], [0], [1], [0, 0, 1, 1], [], []>} : vector<16x128xbf16>, vector<128x128xbf16>, vector<16x128xf32> -> vector<16x128xf32>
    %100 = arith.addf %97, %99 : vector<16x128xf32>
    %cst_65 = arith.constant 0.000000e+00 : f32
    %101 = vector.broadcast %cst_65 : f32 to vector<16x128xf32>
    %102 = arith.maximumf %100, %101 : vector<16x128xf32>
    %c32 = arith.constant 32 : index
    %c0_66 = arith.constant 0 : index
    %103 = vector.load %arg12[%c32, %c0_66] : memref<128x128xf32, #tpu.memory_space<vmem>>, vector<16x128xf32>
    tpu.vector_store %arg12[%c32, %c0_66], %102 {strides = array<i32>} : memref<128x128xf32, #tpu.memory_space<vmem>>, vector<16x128xf32>,
    %c3_67 = arith.constant 3 : index
    %c0_68 = arith.constant 0 : index
    %c0_69 = arith.constant 0 : index
    %104 = vector.load %arg11[%c3_67, %c0_68, %c0_69] : memref<8x16x128xf32, #tpu.memory_space<vmem>>, vector<1x16x128xf32>
    %105 = vector.shape_cast %104 : vector<1x16x128xf32> to vector<16x128xf32>
    %106 = arith.truncf %102 : vector<16x128xf32> to vector<16x128xbf16>
    %cst_70 = arith.constant dense<0.000000e+00> : vector<16x128xf32>
    %107 = tpu.matmul %106, %78, %cst_70 {dimension_numbers = #tpu.dot_dimension_numbers<[1], [0], [0], [1], [0, 0, 1, 1], [], []>} : vector<16x128xbf16>, vector<128x128xbf16>, vector<16x128xf32> -> vector<16x128xf32>
    %108 = arith.addf %105, %107 : vector<16x128xf32>
    %cst_71 = arith.constant 0.000000e+00 : f32
    %109 = vector.broadcast %cst_71 : f32 to vector<16x128xf32>
    %110 = arith.maximumf %108, %109 : vector<16x128xf32>
    %c48 = arith.constant 48 : index
    %c0_72 = arith.constant 0 : index
    %111 = vector.load %arg12[%c48, %c0_72] : memref<128x128xf32, #tpu.memory_space<vmem>>, vector<16x128xf32>
    tpu.vector_store %arg12[%c48, %c0_72], %110 {strides = array<i32>} : memref<128x128xf32, #tpu.memory_space<vmem>>, vector<16x128xf32>,
    %c4_73 = arith.constant 4 : index
    %c0_74 = arith.constant 0 : index
    %c0_75 = arith.constant 0 : index
    %112 = vector.load %arg11[%c4_73, %c0_74, %c0_75] : memref<8x16x128xf32, #tpu.memory_space<vmem>>, vector<1x16x128xf32>
    %113 = vector.shape_cast %112 : vector<1x16x128xf32> to vector<16x128xf32>
    %114 = arith.truncf %110 : vector<16x128xf32> to vector<16x128xbf16>
    %cst_76 = arith.constant dense<0.000000e+00> : vector<16x128xf32>
    %115 = tpu.matmul %114, %78, %cst_76 {dimension_numbers = #tpu.dot_dimension_numbers<[1], [0], [0], [1], [0, 0, 1, 1], [], []>} : vector<16x128xbf16>, vector<128x128xbf16>, vector<16x128xf32> -> vector<16x128xf32>
    %116 = arith.addf %113, %115 : vector<16x128xf32>
    %cst_77 = arith.constant 0.000000e+00 : f32
    %117 = vector.broadcast %cst_77 : f32 to vector<16x128xf32>
    %118 = arith.maximumf %116, %117 : vector<16x128xf32>
    %c64_78 = arith.constant 64 : index
    %c0_79 = arith.constant 0 : index
    %119 = vector.load %arg12[%c64_78, %c0_79] : memref<128x128xf32, #tpu.memory_space<vmem>>, vector<16x128xf32>
    tpu.vector_store %arg12[%c64_78, %c0_79], %118 {strides = array<i32>} : memref<128x128xf32, #tpu.memory_space<vmem>>, vector<16x128xf32>,
    %c5_80 = arith.constant 5 : index
    %c0_81 = arith.constant 0 : index
    %c0_82 = arith.constant 0 : index
    %120 = vector.load %arg11[%c5_80, %c0_81, %c0_82] : memref<8x16x128xf32, #tpu.memory_space<vmem>>, vector<1x16x128xf32>
    %121 = vector.shape_cast %120 : vector<1x16x128xf32> to vector<16x128xf32>
    %122 = arith.truncf %118 : vector<16x128xf32> to vector<16x128xbf16>
    %cst_83 = arith.constant dense<0.000000e+00> : vector<16x128xf32>
    %123 = tpu.matmul %122, %78, %cst_83 {dimension_numbers = #tpu.dot_dimension_numbers<[1], [0], [0], [1], [0, 0, 1, 1], [], []>} : vector<16x128xbf16>, vector<128x128xbf16>, vector<16x128xf32> -> vector<16x128xf32>
    %124 = arith.addf %121, %123 : vector<16x128xf32>
    %cst_84 = arith.constant 0.000000e+00 : f32
    %125 = vector.broadcast %cst_84 : f32 to vector<16x128xf32>
    %126 = arith.maximumf %124, %125 : vector<16x128xf32>
    %c80 = arith.constant 80 : index
    %c0_85 = arith.constant 0 : index
    %127 = vector.load %arg12[%c80, %c0_85] : memref<128x128xf32, #tpu.memory_space<vmem>>, vector<16x128xf32>
    tpu.vector_store %arg12[%c80, %c0_85], %126 {strides = array<i32>} : memref<128x128xf32, #tpu.memory_space<vmem>>, vector<16x128xf32>,
    %c6_86 = arith.constant 6 : index
    %c0_87 = arith.constant 0 : index
    %c0_88 = arith.constant 0 : index
    %128 = vector.load %arg11[%c6_86, %c0_87, %c0_88] : memref<8x16x128xf32, #tpu.memory_space<vmem>>, vector<1x16x128xf32>
    %129 = vector.shape_cast %128 : vector<1x16x128xf32> to vector<16x128xf32>
    %130 = arith.truncf %126 : vector<16x128xf32> to vector<16x128xbf16>
    %cst_89 = arith.constant dense<0.000000e+00> : vector<16x128xf32>
    %131 = tpu.matmul %130, %78, %cst_89 {dimension_numbers = #tpu.dot_dimension_numbers<[1], [0], [0], [1], [0, 0, 1, 1], [], []>} : vector<16x128xbf16>, vector<128x128xbf16>, vector<16x128xf32> -> vector<16x128xf32>
    %132 = arith.addf %129, %131 : vector<16x128xf32>
    %cst_90 = arith.constant 0.000000e+00 : f32
    %133 = vector.broadcast %cst_90 : f32 to vector<16x128xf32>
    %134 = arith.maximumf %132, %133 : vector<16x128xf32>
    %c96 = arith.constant 96 : index
    %c0_91 = arith.constant 0 : index
    %135 = vector.load %arg12[%c96, %c0_91] : memref<128x128xf32, #tpu.memory_space<vmem>>, vector<16x128xf32>
    tpu.vector_store %arg12[%c96, %c0_91], %134 {strides = array<i32>} : memref<128x128xf32, #tpu.memory_space<vmem>>, vector<16x128xf32>,
    %c7_92 = arith.constant 7 : index
    %c0_93 = arith.constant 0 : index
    %c0_94 = arith.constant 0 : index
    %136 = vector.load %arg11[%c7_92, %c0_93, %c0_94] : memref<8x16x128xf32, #tpu.memory_space<vmem>>, vector<1x16x128xf32>
    %137 = vector.shape_cast %136 : vector<1x16x128xf32> to vector<16x128xf32>
    %138 = arith.truncf %134 : vector<16x128xf32> to vector<16x128xbf16>
    %cst_95 = arith.constant dense<0.000000e+00> : vector<16x128xf32>
    %139 = tpu.matmul %138, %78, %cst_95 {dimension_numbers = #tpu.dot_dimension_numbers<[1], [0], [0], [1], [0, 0, 1, 1], [], []>} : vector<16x128xbf16>, vector<128x128xbf16>, vector<16x128xf32> -> vector<16x128xf32>
    %140 = arith.addf %137, %139 : vector<16x128xf32>
    %cst_96 = arith.constant 0.000000e+00 : f32
    %141 = vector.broadcast %cst_96 : f32 to vector<16x128xf32>
    %142 = arith.maximumf %140, %141 : vector<16x128xf32>
    %c112 = arith.constant 112 : index
    %c0_97 = arith.constant 0 : index
    %143 = vector.load %arg12[%c112, %c0_97] : memref<128x128xf32, #tpu.memory_space<vmem>>, vector<16x128xf32>
    tpu.vector_store %arg12[%c112, %c0_97], %142 {strides = array<i32>} : memref<128x128xf32, #tpu.memory_space<vmem>>, vector<16x128xf32>,
    %c0_98 = arith.constant 0 : index
    %c0_99 = arith.constant 0 : index
    %144 = vector.load %arg12[%c0_98, %c0_99] : memref<128x128xf32, #tpu.memory_space<vmem>>, vector<128x128xf32>
    %145 = arith.truncf %144 : vector<128x128xf32> to vector<128x128xbf16>
    %146 = vector.extract_strided_slice %145 {offsets = [0, 0], sizes = [128, 64], strides = [1, 1]} : vector<128x128xbf16> to vector<128x64xbf16>
    %c0_100 = arith.constant 0 : index
    %c0_101 = arith.constant 0 : index
    %147 = vector.load %arg5[%c0_100, %c0_101] : memref<128x128xbf16, #tpu.memory_space<vmem>>, vector<64x128xbf16>
    %cst_102 = arith.constant dense<0.000000e+00> : vector<128x128xf32>
    %148 = tpu.matmul %146, %147, %cst_102 {dimension_numbers = #tpu.dot_dimension_numbers<[1], [0], [0], [1], [0, 0, 1, 1], [], []>} : vector<128x64xbf16>, vector<64x128xbf16>, vector<128x128xf32> -> vector<128x128xf32>
    %149 = vector.extract_strided_slice %145 {offsets = [0, 64], sizes = [128, 64], strides = [1, 1]} : vector<128x128xbf16> to vector<128x64xbf16>
    %c64_103 = arith.constant 64 : index
    %c0_104 = arith.constant 0 : index
    %150 = vector.load %arg5[%c64_103, %c0_104] : memref<128x128xbf16, #tpu.memory_space<vmem>>, vector<64x128xbf16>
    %cst_105 = arith.constant dense<0.000000e+00> : vector<128x128xf32>
    %151 = tpu.matmul %149, %150, %cst_105 {dimension_numbers = #tpu.dot_dimension_numbers<[1], [0], [0], [1], [0, 0, 1, 1], [], []>} : vector<128x64xbf16>, vector<64x128xbf16>, vector<128x128xf32> -> vector<128x128xf32>
    %c0_106 = arith.constant 0 : index
    %c0_107 = arith.constant 0 : index
    %152 = vector.load %arg7[%c0_106, %c0_107] : memref<1x128xf32, #tpu.memory_space<vmem>>, vector<1x128xf32>
    %153 = vector.extract_strided_slice %148 {offsets = [0, 0], sizes = [16, 128], strides = [1, 1]} : vector<128x128xf32> to vector<16x128xf32>
    %154 = vector.extract_strided_slice %151 {offsets = [112, 0], sizes = [16, 128], strides = [1, 1]} : vector<128x128xf32> to vector<16x128xf32>
    %155 = arith.addf %153, %154 : vector<16x128xf32>
    %156 = vector.broadcast %152 : vector<1x128xf32> to vector<16x128xf32>
    %157 = arith.addf %155, %156 : vector<16x128xf32>
    %158 = vector.extract_strided_slice %157 {offsets = [0, 0], sizes = [16, 64], strides = [1, 1]} : vector<16x128xf32> to vector<16x64xf32>
    %c0_108 = arith.constant 0 : index
    %c0_109 = arith.constant 0 : index
    %c0_110 = arith.constant 0 : index
    %159 = vector.load %arg11[%c0_108, %c0_109, %c0_110] : memref<8x16x128xf32, #tpu.memory_space<vmem>>, vector<1x16x64xf32>
    %160 = vector.shape_cast %159 : vector<1x16x64xf32> to vector<16x64xf32>
    %161 = vector.shape_cast %158 : vector<16x64xf32> to vector<1x16x64xf32>
    tpu.vector_store %arg11[%c0_108, %c0_109, %c0_110], %161 {strides = array<i32>} : memref<8x16x128xf32, #tpu.memory_space<vmem>>, vector<1x16x64xf32>,
    %162 = vector.extract_strided_slice %157 {offsets = [0, 64], sizes = [16, 64], strides = [1, 1]} : vector<16x128xf32> to vector<16x64xf32>
    %c7_111 = arith.constant 7 : index
    %c0_112 = arith.constant 0 : index
    %c64_113 = arith.constant 64 : index
    %163 = vector.load %arg11[%c7_111, %c0_112, %c64_113] : memref<8x16x128xf32, #tpu.memory_space<vmem>>, vector<1x16x64xf32>
    %164 = vector.shape_cast %163 : vector<1x16x64xf32> to vector<16x64xf32>
    %165 = vector.shape_cast %162 : vector<16x64xf32> to vector<1x16x64xf32>
    tpu.vector_store %arg11[%c7_111, %c0_112, %c64_113], %165 {strides = array<i32>} : memref<8x16x128xf32, #tpu.memory_space<vmem>>, vector<1x16x64xf32>,
    %166 = vector.extract_strided_slice %148 {offsets = [16, 0], sizes = [16, 128], strides = [1, 1]} : vector<128x128xf32> to vector<16x128xf32>
    %167 = vector.extract_strided_slice %151 {offsets = [96, 0], sizes = [16, 128], strides = [1, 1]} : vector<128x128xf32> to vector<16x128xf32>
    %168 = arith.addf %166, %167 : vector<16x128xf32>
    %169 = vector.broadcast %152 : vector<1x128xf32> to vector<16x128xf32>
    %170 = arith.addf %168, %169 : vector<16x128xf32>
    %171 = vector.extract_strided_slice %170 {offsets = [0, 0], sizes = [16, 64], strides = [1, 1]} : vector<16x128xf32> to vector<16x64xf32>
    %c1_114 = arith.constant 1 : index
    %c0_115 = arith.constant 0 : index
    %c0_116 = arith.constant 0 : index
    %172 = vector.load %arg11[%c1_114, %c0_115, %c0_116] : memref<8x16x128xf32, #tpu.memory_space<vmem>>, vector<1x16x64xf32>
    %173 = vector.shape_cast %172 : vector<1x16x64xf32> to vector<16x64xf32>
    %174 = vector.shape_cast %171 : vector<16x64xf32> to vector<1x16x64xf32>
    tpu.vector_store %arg11[%c1_114, %c0_115, %c0_116], %174 {strides = array<i32>} : memref<8x16x128xf32, #tpu.memory_space<vmem>>, vector<1x16x64xf32>,
    %175 = vector.extract_strided_slice %170 {offsets = [0, 64], sizes = [16, 64], strides = [1, 1]} : vector<16x128xf32> to vector<16x64xf32>
    %c6_117 = arith.constant 6 : index
    %c0_118 = arith.constant 0 : index
    %c64_119 = arith.constant 64 : index
    %176 = vector.load %arg11[%c6_117, %c0_118, %c64_119] : memref<8x16x128xf32, #tpu.memory_space<vmem>>, vector<1x16x64xf32>
    %177 = vector.shape_cast %176 : vector<1x16x64xf32> to vector<16x64xf32>
    %178 = vector.shape_cast %175 : vector<16x64xf32> to vector<1x16x64xf32>
    tpu.vector_store %arg11[%c6_117, %c0_118, %c64_119], %178 {strides = array<i32>} : memref<8x16x128xf32, #tpu.memory_space<vmem>>, vector<1x16x64xf32>,
    %179 = vector.extract_strided_slice %148 {offsets = [32, 0], sizes = [16, 128], strides = [1, 1]} : vector<128x128xf32> to vector<16x128xf32>
    %180 = vector.extract_strided_slice %151 {offsets = [80, 0], sizes = [16, 128], strides = [1, 1]} : vector<128x128xf32> to vector<16x128xf32>
    %181 = arith.addf %179, %180 : vector<16x128xf32>
    %182 = vector.broadcast %152 : vector<1x128xf32> to vector<16x128xf32>
    %183 = arith.addf %181, %182 : vector<16x128xf32>
    %184 = vector.extract_strided_slice %183 {offsets = [0, 0], sizes = [16, 64], strides = [1, 1]} : vector<16x128xf32> to vector<16x64xf32>
    %c2_120 = arith.constant 2 : index
    %c0_121 = arith.constant 0 : index
    %c0_122 = arith.constant 0 : index
    %185 = vector.load %arg11[%c2_120, %c0_121, %c0_122] : memref<8x16x128xf32, #tpu.memory_space<vmem>>, vector<1x16x64xf32>
    %186 = vector.shape_cast %185 : vector<1x16x64xf32> to vector<16x64xf32>
    %187 = vector.shape_cast %184 : vector<16x64xf32> to vector<1x16x64xf32>
    tpu.vector_store %arg11[%c2_120, %c0_121, %c0_122], %187 {strides = array<i32>} : memref<8x16x128xf32, #tpu.memory_space<vmem>>, vector<1x16x64xf32>,
    %188 = vector.extract_strided_slice %183 {offsets = [0, 64], sizes = [16, 64], strides = [1, 1]} : vector<16x128xf32> to vector<16x64xf32>
    %c5_123 = arith.constant 5 : index
    %c0_124 = arith.constant 0 : index
    %c64_125 = arith.constant 64 : index
    %189 = vector.load %arg11[%c5_123, %c0_124, %c64_125] : memref<8x16x128xf32, #tpu.memory_space<vmem>>, vector<1x16x64xf32>
    %190 = vector.shape_cast %189 : vector<1x16x64xf32> to vector<16x64xf32>
    %191 = vector.shape_cast %188 : vector<16x64xf32> to vector<1x16x64xf32>
    tpu.vector_store %arg11[%c5_123, %c0_124, %c64_125], %191 {strides = array<i32>} : memref<8x16x128xf32, #tpu.memory_space<vmem>>, vector<1x16x64xf32>,
    %192 = vector.extract_strided_slice %148 {offsets = [48, 0], sizes = [16, 128], strides = [1, 1]} : vector<128x128xf32> to vector<16x128xf32>
    %193 = vector.extract_strided_slice %151 {offsets = [64, 0], sizes = [16, 128], strides = [1, 1]} : vector<128x128xf32> to vector<16x128xf32>
    %194 = arith.addf %192, %193 : vector<16x128xf32>
    %195 = vector.broadcast %152 : vector<1x128xf32> to vector<16x128xf32>
    %196 = arith.addf %194, %195 : vector<16x128xf32>
    %197 = vector.extract_strided_slice %196 {offsets = [0, 0], sizes = [16, 64], strides = [1, 1]} : vector<16x128xf32> to vector<16x64xf32>
    %c3_126 = arith.constant 3 : index
    %c0_127 = arith.constant 0 : index
    %c0_128 = arith.constant 0 : index
    %198 = vector.load %arg11[%c3_126, %c0_127, %c0_128] : memref<8x16x128xf32, #tpu.memory_space<vmem>>, vector<1x16x64xf32>
    %199 = vector.shape_cast %198 : vector<1x16x64xf32> to vector<16x64xf32>
    %200 = vector.shape_cast %197 : vector<16x64xf32> to vector<1x16x64xf32>
    tpu.vector_store %arg11[%c3_126, %c0_127, %c0_128], %200 {strides = array<i32>} : memref<8x16x128xf32, #tpu.memory_space<vmem>>, vector<1x16x64xf32>,
    %201 = vector.extract_strided_slice %196 {offsets = [0, 64], sizes = [16, 64], strides = [1, 1]} : vector<16x128xf32> to vector<16x64xf32>
    %c4_129 = arith.constant 4 : index
    %c0_130 = arith.constant 0 : index
    %c64_131 = arith.constant 64 : index
    %202 = vector.load %arg11[%c4_129, %c0_130, %c64_131] : memref<8x16x128xf32, #tpu.memory_space<vmem>>, vector<1x16x64xf32>
    %203 = vector.shape_cast %202 : vector<1x16x64xf32> to vector<16x64xf32>
    %204 = vector.shape_cast %201 : vector<16x64xf32> to vector<1x16x64xf32>
    tpu.vector_store %arg11[%c4_129, %c0_130, %c64_131], %204 {strides = array<i32>} : memref<8x16x128xf32, #tpu.memory_space<vmem>>, vector<1x16x64xf32>,
    %205 = vector.extract_strided_slice %148 {offsets = [64, 0], sizes = [16, 128], strides = [1, 1]} : vector<128x128xf32> to vector<16x128xf32>
    %206 = vector.extract_strided_slice %151 {offsets = [48, 0], sizes = [16, 128], strides = [1, 1]} : vector<128x128xf32> to vector<16x128xf32>
    %207 = arith.addf %205, %206 : vector<16x128xf32>
    %208 = vector.broadcast %152 : vector<1x128xf32> to vector<16x128xf32>
    %209 = arith.addf %207, %208 : vector<16x128xf32>
    %210 = vector.extract_strided_slice %209 {offsets = [0, 0], sizes = [16, 64], strides = [1, 1]} : vector<16x128xf32> to vector<16x64xf32>
    %c4_132 = arith.constant 4 : index
    %c0_133 = arith.constant 0 : index
    %c0_134 = arith.constant 0 : index
    %211 = vector.load %arg11[%c4_132, %c0_133, %c0_134] : memref<8x16x128xf32, #tpu.memory_space<vmem>>, vector<1x16x64xf32>
    %212 = vector.shape_cast %211 : vector<1x16x64xf32> to vector<16x64xf32>
    %213 = vector.shape_cast %210 : vector<16x64xf32> to vector<1x16x64xf32>
    tpu.vector_store %arg11[%c4_132, %c0_133, %c0_134], %213 {strides = array<i32>} : memref<8x16x128xf32, #tpu.memory_space<vmem>>, vector<1x16x64xf32>,
    %214 = vector.extract_strided_slice %209 {offsets = [0, 64], sizes = [16, 64], strides = [1, 1]} : vector<16x128xf32> to vector<16x64xf32>
    %c3_135 = arith.constant 3 : index
    %c0_136 = arith.constant 0 : index
    %c64_137 = arith.constant 64 : index
    %215 = vector.load %arg11[%c3_135, %c0_136, %c64_137] : memref<8x16x128xf32, #tpu.memory_space<vmem>>, vector<1x16x64xf32>
    %216 = vector.shape_cast %215 : vector<1x16x64xf32> to vector<16x64xf32>
    %217 = vector.shape_cast %214 : vector<16x64xf32> to vector<1x16x64xf32>
    tpu.vector_store %arg11[%c3_135, %c0_136, %c64_137], %217 {strides = array<i32>} : memref<8x16x128xf32, #tpu.memory_space<vmem>>, vector<1x16x64xf32>,
    %218 = vector.extract_strided_slice %148 {offsets = [80, 0], sizes = [16, 128], strides = [1, 1]} : vector<128x128xf32> to vector<16x128xf32>
    %219 = vector.extract_strided_slice %151 {offsets = [32, 0], sizes = [16, 128], strides = [1, 1]} : vector<128x128xf32> to vector<16x128xf32>
    %220 = arith.addf %218, %219 : vector<16x128xf32>
    %221 = vector.broadcast %152 : vector<1x128xf32> to vector<16x128xf32>
    %222 = arith.addf %220, %221 : vector<16x128xf32>
    %223 = vector.extract_strided_slice %222 {offsets = [0, 0], sizes = [16, 64], strides = [1, 1]} : vector<16x128xf32> to vector<16x64xf32>
    %c5_138 = arith.constant 5 : index
    %c0_139 = arith.constant 0 : index
    %c0_140 = arith.constant 0 : index
    %224 = vector.load %arg11[%c5_138, %c0_139, %c0_140] : memref<8x16x128xf32, #tpu.memory_space<vmem>>, vector<1x16x64xf32>
    %225 = vector.shape_cast %224 : vector<1x16x64xf32> to vector<16x64xf32>
    %226 = vector.shape_cast %223 : vector<16x64xf32> to vector<1x16x64xf32>
    tpu.vector_store %arg11[%c5_138, %c0_139, %c0_140], %226 {strides = array<i32>} : memref<8x16x128xf32, #tpu.memory_space<vmem>>, vector<1x16x64xf32>,
    %227 = vector.extract_strided_slice %222 {offsets = [0, 64], sizes = [16, 64], strides = [1, 1]} : vector<16x128xf32> to vector<16x64xf32>
    %c2_141 = arith.constant 2 : index
    %c0_142 = arith.constant 0 : index
    %c64_143 = arith.constant 64 : index
    %228 = vector.load %arg11[%c2_141, %c0_142, %c64_143] : memref<8x16x128xf32, #tpu.memory_space<vmem>>, vector<1x16x64xf32>
    %229 = vector.shape_cast %228 : vector<1x16x64xf32> to vector<16x64xf32>
    %230 = vector.shape_cast %227 : vector<16x64xf32> to vector<1x16x64xf32>
    tpu.vector_store %arg11[%c2_141, %c0_142, %c64_143], %230 {strides = array<i32>} : memref<8x16x128xf32, #tpu.memory_space<vmem>>, vector<1x16x64xf32>,
    %231 = vector.extract_strided_slice %148 {offsets = [96, 0], sizes = [16, 128], strides = [1, 1]} : vector<128x128xf32> to vector<16x128xf32>
    %232 = vector.extract_strided_slice %151 {offsets = [16, 0], sizes = [16, 128], strides = [1, 1]} : vector<128x128xf32> to vector<16x128xf32>
    %233 = arith.addf %231, %232 : vector<16x128xf32>
    %234 = vector.broadcast %152 : vector<1x128xf32> to vector<16x128xf32>
    %235 = arith.addf %233, %234 : vector<16x128xf32>
    %236 = vector.extract_strided_slice %235 {offsets = [0, 0], sizes = [16, 64], strides = [1, 1]} : vector<16x128xf32> to vector<16x64xf32>
    %c6_144 = arith.constant 6 : index
    %c0_145 = arith.constant 0 : index
    %c0_146 = arith.constant 0 : index
    %237 = vector.load %arg11[%c6_144, %c0_145, %c0_146] : memref<8x16x128xf32, #tpu.memory_space<vmem>>, vector<1x16x64xf32>
    %238 = vector.shape_cast %237 : vector<1x16x64xf32> to vector<16x64xf32>
    %239 = vector.shape_cast %236 : vector<16x64xf32> to vector<1x16x64xf32>
    tpu.vector_store %arg11[%c6_144, %c0_145, %c0_146], %239 {strides = array<i32>} : memref<8x16x128xf32, #tpu.memory_space<vmem>>, vector<1x16x64xf32>,
    %240 = vector.extract_strided_slice %235 {offsets = [0, 64], sizes = [16, 64], strides = [1, 1]} : vector<16x128xf32> to vector<16x64xf32>
    %c1_147 = arith.constant 1 : index
    %c0_148 = arith.constant 0 : index
    %c64_149 = arith.constant 64 : index
    %241 = vector.load %arg11[%c1_147, %c0_148, %c64_149] : memref<8x16x128xf32, #tpu.memory_space<vmem>>, vector<1x16x64xf32>
    %242 = vector.shape_cast %241 : vector<1x16x64xf32> to vector<16x64xf32>
    %243 = vector.shape_cast %240 : vector<16x64xf32> to vector<1x16x64xf32>
    tpu.vector_store %arg11[%c1_147, %c0_148, %c64_149], %243 {strides = array<i32>} : memref<8x16x128xf32, #tpu.memory_space<vmem>>, vector<1x16x64xf32>,
    %244 = vector.extract_strided_slice %148 {offsets = [112, 0], sizes = [16, 128], strides = [1, 1]} : vector<128x128xf32> to vector<16x128xf32>
    %245 = vector.extract_strided_slice %151 {offsets = [0, 0], sizes = [16, 128], strides = [1, 1]} : vector<128x128xf32> to vector<16x128xf32>
    %246 = arith.addf %244, %245 : vector<16x128xf32>
    %247 = vector.broadcast %152 : vector<1x128xf32> to vector<16x128xf32>
    %248 = arith.addf %246, %247 : vector<16x128xf32>
    %249 = vector.extract_strided_slice %248 {offsets = [0, 0], sizes = [16, 64], strides = [1, 1]} : vector<16x128xf32> to vector<16x64xf32>
    %c7_150 = arith.constant 7 : index
    %c0_151 = arith.constant 0 : index
    %c0_152 = arith.constant 0 : index
    %250 = vector.load %arg11[%c7_150, %c0_151, %c0_152] : memref<8x16x128xf32, #tpu.memory_space<vmem>>, vector<1x16x64xf32>
    %251 = vector.shape_cast %250 : vector<1x16x64xf32> to vector<16x64xf32>
    %252 = vector.shape_cast %249 : vector<16x64xf32> to vector<1x16x64xf32>
    tpu.vector_store %arg11[%c7_150, %c0_151, %c0_152], %252 {strides = array<i32>} : memref<8x16x128xf32, #tpu.memory_space<vmem>>, vector<1x16x64xf32>,
    %253 = vector.extract_strided_slice %248 {offsets = [0, 64], sizes = [16, 64], strides = [1, 1]} : vector<16x128xf32> to vector<16x64xf32>
    %c0_153 = arith.constant 0 : index
    %c0_154 = arith.constant 0 : index
    %c64_155 = arith.constant 64 : index
    %254 = vector.load %arg11[%c0_153, %c0_154, %c64_155] : memref<8x16x128xf32, #tpu.memory_space<vmem>>, vector<1x16x64xf32>
    %255 = vector.shape_cast %254 : vector<1x16x64xf32> to vector<16x64xf32>
    %256 = vector.shape_cast %253 : vector<16x64xf32> to vector<1x16x64xf32>
    tpu.vector_store %arg11[%c0_153, %c0_154, %c64_155], %256 {strides = array<i32>} : memref<8x16x128xf32, #tpu.memory_space<vmem>>, vector<1x16x64xf32>,
    %c0_156 = arith.constant 0 : index
    %c0_157 = arith.constant 0 : index
    %257 = vector.load %arg6[%c0_156, %c0_157] : memref<128x128xbf16, #tpu.memory_space<vmem>>, vector<128x128xbf16>
    %cst_158 = arith.constant 0.000000e+00 : f32
    %258 = vector.broadcast %cst_158 : f32 to vector<16x128xf32>
    %c0_159 = arith.constant 0 : index
    %c0_160 = arith.constant 0 : index
    %c0_161 = arith.constant 0 : index
    %259 = vector.load %arg11[%c0_159, %c0_160, %c0_161] : memref<8x16x128xf32, #tpu.memory_space<vmem>>, vector<1x16x128xf32>
    %260 = vector.shape_cast %259 : vector<1x16x128xf32> to vector<16x128xf32>
    %261 = arith.truncf %258 : vector<16x128xf32> to vector<16x128xbf16>
    %cst_162 = arith.constant dense<0.000000e+00> : vector<16x128xf32>
    %262 = tpu.matmul %261, %257, %cst_162 {dimension_numbers = #tpu.dot_dimension_numbers<[1], [0], [0], [1], [0, 0, 1, 1], [], []>} : vector<16x128xbf16>, vector<128x128xbf16>, vector<16x128xf32> -> vector<16x128xf32>
    %263 = arith.addf %260, %262 : vector<16x128xf32>
    %cst_163 = arith.constant 0.000000e+00 : f32
    %264 = vector.broadcast %cst_163 : f32 to vector<16x128xf32>
    %265 = arith.maximumf %263, %264 : vector<16x128xf32>
    %c0_164 = arith.constant 0 : index
    %c0_165 = arith.constant 0 : index
    %c0_166 = arith.constant 0 : index
    %266 = vector.load %arg13[%c0_164, %c0_165, %c0_166] : memref<8x16x128xf32, #tpu.memory_space<vmem>>, vector<1x16x128xf32>
    %267 = vector.shape_cast %266 : vector<1x16x128xf32> to vector<16x128xf32>
    %268 = vector.shape_cast %265 : vector<16x128xf32> to vector<1x16x128xf32>
    tpu.vector_store %arg13[%c0_164, %c0_165, %c0_166], %268 {strides = array<i32>} : memref<8x16x128xf32, #tpu.memory_space<vmem>>, vector<1x16x128xf32>,
    %c1_167 = arith.constant 1 : index
    %c0_168 = arith.constant 0 : index
    %c0_169 = arith.constant 0 : index
    %269 = vector.load %arg11[%c1_167, %c0_168, %c0_169] : memref<8x16x128xf32, #tpu.memory_space<vmem>>, vector<1x16x128xf32>
    %270 = vector.shape_cast %269 : vector<1x16x128xf32> to vector<16x128xf32>
    %271 = arith.truncf %265 : vector<16x128xf32> to vector<16x128xbf16>
    %cst_170 = arith.constant dense<0.000000e+00> : vector<16x128xf32>
    %272 = tpu.matmul %271, %257, %cst_170 {dimension_numbers = #tpu.dot_dimension_numbers<[1], [0], [0], [1], [0, 0, 1, 1], [], []>} : vector<16x128xbf16>, vector<128x128xbf16>, vector<16x128xf32> -> vector<16x128xf32>
    %273 = arith.addf %270, %272 : vector<16x128xf32>
    %cst_171 = arith.constant 0.000000e+00 : f32
    %274 = vector.broadcast %cst_171 : f32 to vector<16x128xf32>
    %275 = arith.maximumf %273, %274 : vector<16x128xf32>
    %c1_172 = arith.constant 1 : index
    %c0_173 = arith.constant 0 : index
    %c0_174 = arith.constant 0 : index
    %276 = vector.load %arg13[%c1_172, %c0_173, %c0_174] : memref<8x16x128xf32, #tpu.memory_space<vmem>>, vector<1x16x128xf32>
    %277 = vector.shape_cast %276 : vector<1x16x128xf32> to vector<16x128xf32>
    %278 = vector.shape_cast %275 : vector<16x128xf32> to vector<1x16x128xf32>
    tpu.vector_store %arg13[%c1_172, %c0_173, %c0_174], %278 {strides = array<i32>} : memref<8x16x128xf32, #tpu.memory_space<vmem>>, vector<1x16x128xf32>,
    %c2_175 = arith.constant 2 : index
    %c0_176 = arith.constant 0 : index
    %c0_177 = arith.constant 0 : index
    %279 = vector.load %arg11[%c2_175, %c0_176, %c0_177] : memref<8x16x128xf32, #tpu.memory_space<vmem>>, vector<1x16x128xf32>
    %280 = vector.shape_cast %279 : vector<1x16x128xf32> to vector<16x128xf32>
    %281 = arith.truncf %275 : vector<16x128xf32> to vector<16x128xbf16>
    %cst_178 = arith.constant dense<0.000000e+00> : vector<16x128xf32>
    %282 = tpu.matmul %281, %257, %cst_178 {dimension_numbers = #tpu.dot_dimension_numbers<[1], [0], [0], [1], [0, 0, 1, 1], [], []>} : vector<16x128xbf16>, vector<128x128xbf16>, vector<16x128xf32> -> vector<16x128xf32>
    %283 = arith.addf %280, %282 : vector<16x128xf32>
    %cst_179 = arith.constant 0.000000e+00 : f32
    %284 = vector.broadcast %cst_179 : f32 to vector<16x128xf32>
    %285 = arith.maximumf %283, %284 : vector<16x128xf32>
    %c2_180 = arith.constant 2 : index
    %c0_181 = arith.constant 0 : index
    %c0_182 = arith.constant 0 : index
    %286 = vector.load %arg13[%c2_180, %c0_181, %c0_182] : memref<8x16x128xf32, #tpu.memory_space<vmem>>, vector<1x16x128xf32>
    %287 = vector.shape_cast %286 : vector<1x16x128xf32> to vector<16x128xf32>
    %288 = vector.shape_cast %285 : vector<16x128xf32> to vector<1x16x128xf32>
    tpu.vector_store %arg13[%c2_180, %c0_181, %c0_182], %288 {strides = array<i32>} : memref<8x16x128xf32, #tpu.memory_space<vmem>>, vector<1x16x128xf32>,
    %c3_183 = arith.constant 3 : index
    %c0_184 = arith.constant 0 : index
    %c0_185 = arith.constant 0 : index
    %289 = vector.load %arg11[%c3_183, %c0_184, %c0_185] : memref<8x16x128xf32, #tpu.memory_space<vmem>>, vector<1x16x128xf32>
    %290 = vector.shape_cast %289 : vector<1x16x128xf32> to vector<16x128xf32>
    %291 = arith.truncf %285 : vector<16x128xf32> to vector<16x128xbf16>
    %cst_186 = arith.constant dense<0.000000e+00> : vector<16x128xf32>
    %292 = tpu.matmul %291, %257, %cst_186 {dimension_numbers = #tpu.dot_dimension_numbers<[1], [0], [0], [1], [0, 0, 1, 1], [], []>} : vector<16x128xbf16>, vector<128x128xbf16>, vector<16x128xf32> -> vector<16x128xf32>
    %293 = arith.addf %290, %292 : vector<16x128xf32>
    %cst_187 = arith.constant 0.000000e+00 : f32
    %294 = vector.broadcast %cst_187 : f32 to vector<16x128xf32>
    %295 = arith.maximumf %293, %294 : vector<16x128xf32>
    %c3_188 = arith.constant 3 : index
    %c0_189 = arith.constant 0 : index
    %c0_190 = arith.constant 0 : index
    %296 = vector.load %arg13[%c3_188, %c0_189, %c0_190] : memref<8x16x128xf32, #tpu.memory_space<vmem>>, vector<1x16x128xf32>
    %297 = vector.shape_cast %296 : vector<1x16x128xf32> to vector<16x128xf32>
    %298 = vector.shape_cast %295 : vector<16x128xf32> to vector<1x16x128xf32>
    tpu.vector_store %arg13[%c3_188, %c0_189, %c0_190], %298 {strides = array<i32>} : memref<8x16x128xf32, #tpu.memory_space<vmem>>, vector<1x16x128xf32>,
    %c4_191 = arith.constant 4 : index
    %c0_192 = arith.constant 0 : index
    %c0_193 = arith.constant 0 : index
    %299 = vector.load %arg11[%c4_191, %c0_192, %c0_193] : memref<8x16x128xf32, #tpu.memory_space<vmem>>, vector<1x16x128xf32>
    %300 = vector.shape_cast %299 : vector<1x16x128xf32> to vector<16x128xf32>
    %301 = arith.truncf %295 : vector<16x128xf32> to vector<16x128xbf16>
    %cst_194 = arith.constant dense<0.000000e+00> : vector<16x128xf32>
    %302 = tpu.matmul %301, %257, %cst_194 {dimension_numbers = #tpu.dot_dimension_numbers<[1], [0], [0], [1], [0, 0, 1, 1], [], []>} : vector<16x128xbf16>, vector<128x128xbf16>, vector<16x128xf32> -> vector<16x128xf32>
    %303 = arith.addf %300, %302 : vector<16x128xf32>
    %cst_195 = arith.constant 0.000000e+00 : f32
    %304 = vector.broadcast %cst_195 : f32 to vector<16x128xf32>
    %305 = arith.maximumf %303, %304 : vector<16x128xf32>
    %c4_196 = arith.constant 4 : index
    %c0_197 = arith.constant 0 : index
    %c0_198 = arith.constant 0 : index
    %306 = vector.load %arg13[%c4_196, %c0_197, %c0_198] : memref<8x16x128xf32, #tpu.memory_space<vmem>>, vector<1x16x128xf32>
    %307 = vector.shape_cast %306 : vector<1x16x128xf32> to vector<16x128xf32>
    %308 = vector.shape_cast %305 : vector<16x128xf32> to vector<1x16x128xf32>
    tpu.vector_store %arg13[%c4_196, %c0_197, %c0_198], %308 {strides = array<i32>} : memref<8x16x128xf32, #tpu.memory_space<vmem>>, vector<1x16x128xf32>,
    %c5_199 = arith.constant 5 : index
    %c0_200 = arith.constant 0 : index
    %c0_201 = arith.constant 0 : index
    %309 = vector.load %arg11[%c5_199, %c0_200, %c0_201] : memref<8x16x128xf32, #tpu.memory_space<vmem>>, vector<1x16x128xf32>
    %310 = vector.shape_cast %309 : vector<1x16x128xf32> to vector<16x128xf32>
    %311 = arith.truncf %305 : vector<16x128xf32> to vector<16x128xbf16>
    %cst_202 = arith.constant dense<0.000000e+00> : vector<16x128xf32>
    %312 = tpu.matmul %311, %257, %cst_202 {dimension_numbers = #tpu.dot_dimension_numbers<[1], [0], [0], [1], [0, 0, 1, 1], [], []>} : vector<16x128xbf16>, vector<128x128xbf16>, vector<16x128xf32> -> vector<16x128xf32>
    %313 = arith.addf %310, %312 : vector<16x128xf32>
    %cst_203 = arith.constant 0.000000e+00 : f32
    %314 = vector.broadcast %cst_203 : f32 to vector<16x128xf32>
    %315 = arith.maximumf %313, %314 : vector<16x128xf32>
    %c5_204 = arith.constant 5 : index
    %c0_205 = arith.constant 0 : index
    %c0_206 = arith.constant 0 : index
    %316 = vector.load %arg13[%c5_204, %c0_205, %c0_206] : memref<8x16x128xf32, #tpu.memory_space<vmem>>, vector<1x16x128xf32>
    %317 = vector.shape_cast %316 : vector<1x16x128xf32> to vector<16x128xf32>
    %318 = vector.shape_cast %315 : vector<16x128xf32> to vector<1x16x128xf32>
    tpu.vector_store %arg13[%c5_204, %c0_205, %c0_206], %318 {strides = array<i32>} : memref<8x16x128xf32, #tpu.memory_space<vmem>>, vector<1x16x128xf32>,
    %c6_207 = arith.constant 6 : index
    %c0_208 = arith.constant 0 : index
    %c0_209 = arith.constant 0 : index
    %319 = vector.load %arg11[%c6_207, %c0_208, %c0_209] : memref<8x16x128xf32, #tpu.memory_space<vmem>>, vector<1x16x128xf32>
    %320 = vector.shape_cast %319 : vector<1x16x128xf32> to vector<16x128xf32>
    %321 = arith.truncf %315 : vector<16x128xf32> to vector<16x128xbf16>
    %cst_210 = arith.constant dense<0.000000e+00> : vector<16x128xf32>
    %322 = tpu.matmul %321, %257, %cst_210 {dimension_numbers = #tpu.dot_dimension_numbers<[1], [0], [0], [1], [0, 0, 1, 1], [], []>} : vector<16x128xbf16>, vector<128x128xbf16>, vector<16x128xf32> -> vector<16x128xf32>
    %323 = arith.addf %320, %322 : vector<16x128xf32>
    %cst_211 = arith.constant 0.000000e+00 : f32
    %324 = vector.broadcast %cst_211 : f32 to vector<16x128xf32>
    %325 = arith.maximumf %323, %324 : vector<16x128xf32>
    %c6_212 = arith.constant 6 : index
    %c0_213 = arith.constant 0 : index
    %c0_214 = arith.constant 0 : index
    %326 = vector.load %arg13[%c6_212, %c0_213, %c0_214] : memref<8x16x128xf32, #tpu.memory_space<vmem>>, vector<1x16x128xf32>
    %327 = vector.shape_cast %326 : vector<1x16x128xf32> to vector<16x128xf32>
    %328 = vector.shape_cast %325 : vector<16x128xf32> to vector<1x16x128xf32>
    tpu.vector_store %arg13[%c6_212, %c0_213, %c0_214], %328 {strides = array<i32>} : memref<8x16x128xf32, #tpu.memory_space<vmem>>, vector<1x16x128xf32>,
    %c7_215 = arith.constant 7 : index
    %c0_216 = arith.constant 0 : index
    %c0_217 = arith.constant 0 : index
    %329 = vector.load %arg11[%c7_215, %c0_216, %c0_217] : memref<8x16x128xf32, #tpu.memory_space<vmem>>, vector<1x16x128xf32>
    %330 = vector.shape_cast %329 : vector<1x16x128xf32> to vector<16x128xf32>
    %331 = arith.truncf %325 : vector<16x128xf32> to vector<16x128xbf16>
    %cst_218 = arith.constant dense<0.000000e+00> : vector<16x128xf32>
    %332 = tpu.matmul %331, %257, %cst_218 {dimension_numbers = #tpu.dot_dimension_numbers<[1], [0], [0], [1], [0, 0, 1, 1], [], []>} : vector<16x128xbf16>, vector<128x128xbf16>, vector<16x128xf32> -> vector<16x128xf32>
    %333 = arith.addf %330, %332 : vector<16x128xf32>
    %cst_219 = arith.constant 0.000000e+00 : f32
    %334 = vector.broadcast %cst_219 : f32 to vector<16x128xf32>
    %335 = arith.maximumf %333, %334 : vector<16x128xf32>
    %c7_220 = arith.constant 7 : index
    %c0_221 = arith.constant 0 : index
    %c0_222 = arith.constant 0 : index
    %336 = vector.load %arg13[%c7_220, %c0_221, %c0_222] : memref<8x16x128xf32, #tpu.memory_space<vmem>>, vector<1x16x128xf32>
    %337 = vector.shape_cast %336 : vector<1x16x128xf32> to vector<16x128xf32>
    %338 = vector.shape_cast %335 : vector<16x128xf32> to vector<1x16x128xf32>
    tpu.vector_store %arg13[%c7_220, %c0_221, %c0_222], %338 {strides = array<i32>} : memref<8x16x128xf32, #tpu.memory_space<vmem>>, vector<1x16x128xf32>,
    %c0_223 = arith.constant 0 : index
    %c0_224 = arith.constant 0 : index
    %c0_225 = arith.constant 0 : index
    %339 = vector.load %arg13[%c0_223, %c0_224, %c0_225] : memref<8x16x128xf32, #tpu.memory_space<vmem>>, vector<8x16x128xf32>
    %cst_226 = arith.constant dense<0xFF800000> : vector<8x128xf32>
    %340 = vector.multi_reduction <maximumf>, %339, %cst_226 [1] : vector<8x16x128xf32> to vector<8x128xf32>
    %341 = vector.extract_strided_slice %340 {offsets = [0, 0], sizes = [1, 64], strides = [1, 1]} : vector<8x128xf32> to vector<1x64xf32>
    %342 = vector.extract_strided_slice %340 {offsets = [7, 64], sizes = [1, 64], strides = [1, 1]} : vector<8x128xf32> to vector<1x64xf32>
    %343 = tpu.concatenate %341, %342 in 1 : vector<1x64xf32>, vector<1x64xf32> -> vector<1x128xf32>
    %344 = vector.extract_strided_slice %340 {offsets = [1, 0], sizes = [1, 64], strides = [1, 1]} : vector<8x128xf32> to vector<1x64xf32>
    %345 = vector.extract_strided_slice %340 {offsets = [6, 64], sizes = [1, 64], strides = [1, 1]} : vector<8x128xf32> to vector<1x64xf32>
    %346 = tpu.concatenate %344, %345 in 1 : vector<1x64xf32>, vector<1x64xf32> -> vector<1x128xf32>
    %347 = vector.extract_strided_slice %340 {offsets = [2, 0], sizes = [1, 64], strides = [1, 1]} : vector<8x128xf32> to vector<1x64xf32>
    %348 = vector.extract_strided_slice %340 {offsets = [5, 64], sizes = [1, 64], strides = [1, 1]} : vector<8x128xf32> to vector<1x64xf32>
    %349 = tpu.concatenate %347, %348 in 1 : vector<1x64xf32>, vector<1x64xf32> -> vector<1x128xf32>
    %350 = vector.extract_strided_slice %340 {offsets = [3, 0], sizes = [1, 64], strides = [1, 1]} : vector<8x128xf32> to vector<1x64xf32>
    %351 = vector.extract_strided_slice %340 {offsets = [4, 64], sizes = [1, 64], strides = [1, 1]} : vector<8x128xf32> to vector<1x64xf32>
    %352 = tpu.concatenate %350, %351 in 1 : vector<1x64xf32>, vector<1x64xf32> -> vector<1x128xf32>
    %353 = vector.extract_strided_slice %340 {offsets = [4, 0], sizes = [1, 64], strides = [1, 1]} : vector<8x128xf32> to vector<1x64xf32>
    %354 = vector.extract_strided_slice %340 {offsets = [3, 64], sizes = [1, 64], strides = [1, 1]} : vector<8x128xf32> to vector<1x64xf32>
    %355 = tpu.concatenate %353, %354 in 1 : vector<1x64xf32>, vector<1x64xf32> -> vector<1x128xf32>
    %356 = vector.extract_strided_slice %340 {offsets = [5, 0], sizes = [1, 64], strides = [1, 1]} : vector<8x128xf32> to vector<1x64xf32>
    %357 = vector.extract_strided_slice %340 {offsets = [2, 64], sizes = [1, 64], strides = [1, 1]} : vector<8x128xf32> to vector<1x64xf32>
    %358 = tpu.concatenate %356, %357 in 1 : vector<1x64xf32>, vector<1x64xf32> -> vector<1x128xf32>
    %359 = vector.extract_strided_slice %340 {offsets = [6, 0], sizes = [1, 64], strides = [1, 1]} : vector<8x128xf32> to vector<1x64xf32>
    %360 = vector.extract_strided_slice %340 {offsets = [1, 64], sizes = [1, 64], strides = [1, 1]} : vector<8x128xf32> to vector<1x64xf32>
    %361 = tpu.concatenate %359, %360 in 1 : vector<1x64xf32>, vector<1x64xf32> -> vector<1x128xf32>
    %362 = vector.extract_strided_slice %340 {offsets = [7, 0], sizes = [1, 64], strides = [1, 1]} : vector<8x128xf32> to vector<1x64xf32>
    %363 = vector.extract_strided_slice %340 {offsets = [0, 64], sizes = [1, 64], strides = [1, 1]} : vector<8x128xf32> to vector<1x64xf32>
    %364 = tpu.concatenate %362, %363 in 1 : vector<1x64xf32>, vector<1x64xf32> -> vector<1x128xf32>
    %365 = tpu.concatenate %343, %346, %349, %352, %355, %358, %361, %364 in 0 : vector<1x128xf32>, vector<1x128xf32>, vector<1x128xf32>, vector<1x128xf32>, vector<1x128xf32>, vector<1x128xf32>, vector<1x128xf32>, vector<1x128xf32> -> vector<8x128xf32>
    %c0_227 = arith.constant 0 : index
    %c0_228 = arith.constant 0 : index
    %366 = vector.load %arg8[%c0_227, %c0_228] : memref<128x4xf32, #tpu.memory_space<vmem>>, vector<128x4xf32>
    %cst_229 = arith.constant dense<0.000000e+00> : vector<8x4xf32>
    %367 = tpu.matmul %365, %366, %cst_229 {dimension_numbers = #tpu.dot_dimension_numbers<[1], [0], [0], [1], [0, 0, 1, 1], [], []>} : vector<8x128xf32>, vector<128x4xf32>, vector<8x4xf32> -> vector<8x4xf32>
    %c0_230 = arith.constant 0 : index
    %c0_231 = arith.constant 0 : index
    %368 = vector.load %arg9[%c0_230, %c0_231] : memref<1x4xf32, #tpu.memory_space<vmem>>, vector<1x4xf32>
    %369 = vector.broadcast %368 : vector<1x4xf32> to vector<8x4xf32>
    %370 = arith.addf %367, %369 : vector<8x4xf32>
    %cst_232 = arith.constant dense<0xFF800000> : vector<8xf32>
    %371 = vector.multi_reduction <maximumf>, %370, %cst_232 [1] : vector<8x4xf32> to vector<8xf32>
    %372 = vector.shape_cast %371 : vector<8xf32> to vector<8x1xf32>
    %373 = vector.broadcast %372 : vector<8x1xf32> to vector<8x4xf32>
    %374 = arith.subf %370, %373 : vector<8x4xf32>
    %375 = math.exp %374 : vector<8x4xf32>
    %cst_233 = arith.constant dense<0.000000e+00> : vector<8xf32>
    %376 = vector.multi_reduction <add>, %375, %cst_233 [1] : vector<8x4xf32> to vector<8xf32>
    %377 = vector.shape_cast %376 : vector<8xf32> to vector<8x1xf32>
    %378 = tpu.reciprocal %377 {approx = true} : vector<8x1xf32> -> vector<8x1xf32>
    %379 = vector.broadcast %378 : vector<8x1xf32> to vector<8x4xf32>
    %380 = arith.mulf %375, %379 : vector<8x4xf32>
    %c0_234 = arith.constant 0 : index
    %c0_235 = arith.constant 0 : index
    %381 = vector.load %arg10[%c0_234, %c0_235] : memref<8x4xf32, #tpu.memory_space<vmem>>, vector<8x4xf32>
    tpu.vector_store %arg10[%c0_234, %c0_235], %380 {strides = array<i32>} : memref<8x4xf32, #tpu.memory_space<vmem>>, vector<8x4xf32>,
    return
  }
  func.func @transform_0(%arg0: i32) -> (i32, i32) {
    %c0_i32 = arith.constant 0 : i32
    %c0_i32_0 = arith.constant 0 : i32
    %c0_i32_1 = arith.constant 0 : i32
    return %c0_i32, %c0_i32_0 : i32, i32
  }
  func.func @transform_1(%arg0: i32) -> (i32, i32) {
    %c0_i32 = arith.constant 0 : i32
    %c0_i32_0 = arith.constant 0 : i32
    %c0_i32_1 = arith.constant 0 : i32
    return %c0_i32, %c0_i32_0 : i32, i32
  }
  func.func @transform_2(%arg0: i32) -> (i32, i32) {
    %c0_i32 = arith.constant 0 : i32
    %c0_i32_0 = arith.constant 0 : i32
    %c0_i32_1 = arith.constant 0 : i32
    return %c0_i32, %c0_i32_0 : i32, i32
  }
  func.func @transform_3(%arg0: i32) -> (i32, i32) {
    %c0_i32 = arith.constant 0 : i32
    %c0_i32_0 = arith.constant 0 : i32
    %c0_i32_1 = arith.constant 0 : i32
    return %c0_i32, %c0_i32_0 : i32, i32
  }
  func.func @transform_4(%arg0: i32) -> (i32, i32) {
    %c0_i32 = arith.constant 0 : i32
    %c0_i32_0 = arith.constant 0 : i32
    %c0_i32_1 = arith.constant 0 : i32
    return %c0_i32, %c0_i32_0 : i32, i32
  }
  func.func @transform_5(%arg0: i32) -> (i32, i32) {
    %c0_i32 = arith.constant 0 : i32
    %c0_i32_0 = arith.constant 0 : i32
    %c0_i32_1 = arith.constant 0 : i32
    return %c0_i32, %c0_i32_0 : i32, i32
  }
  func.func @transform_6(%arg0: i32) -> (i32, i32) {
    %c0_i32 = arith.constant 0 : i32
    %c0_i32_0 = arith.constant 0 : i32
    %c0_i32_1 = arith.constant 0 : i32
    return %c0_i32, %c0_i32_0 : i32, i32
  }
  func.func @transform_7(%arg0: i32) -> (i32, i32) {
    %c0_i32 = arith.constant 0 : i32
    %c0_i32_0 = arith.constant 0 : i32
    %c0_i32_1 = arith.constant 0 : i32
    return %c0_i32, %c0_i32_0 : i32, i32
  }
  func.func @transform_8(%arg0: i32) -> (i32, i32) {
    %c0_i32 = arith.constant 0 : i32
    %c0_i32_0 = arith.constant 0 : i32
    %c0_i32_1 = arith.constant 0 : i32
    return %c0_i32, %c0_i32_0 : i32, i32
  }
  func.func @transform_9(%arg0: i32) -> (i32, i32) {
    %c0_i32 = arith.constant 0 : i32
    %c0_i32_0 = arith.constant 0 : i32
    %c0_i32_1 = arith.constant 0 : i32
    return %c0_i32, %c0_i32_0 : i32, i32
  }
}

</mosaic_0001>

<llo_original>
// kernel: recurrent_network_forward.1
$region0: #{recurrent_network_forward.1}
  #allocation0 [shape = 'u32[]', space=smem, size = 0x4, offset = 0x4, fixed_abs, tag = 'smem constant byte address 0x4 - core index']
  #allocation1 [shape = 'u32[144,128]{1,0:T(1,128)}', space=vmem, size = 0x12000, scoped, tag = 'internal scratch']
  #allocation2 [shape = 'f32[8,16,128]{2,1,0:T(8,128)}', space=vmem, size = 0x10000, scoped, tag = 'scratch operand']
  #allocation3 [shape = 'f32[128,128]{1,0:T(8,128)}', space=vmem, size = 0x10000, scoped, tag = 'scratch operand']
  #allocation4 [shape = 'f32[8,16,128]{2,1,0:T(8,128)}', space=vmem, size = 0x10000, scoped, tag = 'scratch operand']
  %s0 = inlined_call_operand.vmem [shape: bf16[128,128], index: 0, kind: input, shape index: {}]
  %s1 = inlined_call_operand.vmem [shape: bf16[128,128], index: 1, kind: input, shape index: {}]
  %s2 = inlined_call_operand.vmem [shape: bf16[128,128], index: 2, kind: input, shape index: {}]
  %s3 = inlined_call_operand.vmem [shape: f32[1,128], index: 3, kind: input, shape index: {}]
  %s4 = inlined_call_operand.vmem [shape: bf16[128,128], index: 4, kind: input, shape index: {}]
  %s5 = inlined_call_operand.vmem [shape: bf16[128,128], index: 5, kind: input, shape index: {}]
  %s6 = inlined_call_operand.vmem [shape: f32[1,128], index: 6, kind: input, shape index: {}]
  %s7 = inlined_call_operand.vmem [shape: f32[128,4], index: 7, kind: input, shape index: {}]
  %s8 = inlined_call_operand.vmem [shape: f32[1,4], index: 8, kind: input, shape index: {}]
  %s9 = inlined_call_operand.vmem [shape: f32[8,4], index: 9, kind: output, shape index: {}]
  %s10 = sld [smem:[#allocation0]]
  $region46: #{recurrent_network_forward.1} parent=0
    _
  %s12 = ssub.s32 1, %s10
  %s13 = scalar_select 0, %s12, %s10
  // Predicated region
  $region2: #{recurrent_network_forward.1} parent=0 // pred_check
    _
  $region3: #{recurrent_network_forward.1} parent=0 // pred_check_branch
    %15 = sbr.rel (0) target = $region5
  $region4: #{recurrent_network_forward.1} parent=0 // pred_region
    _
  $region5: #{recurrent_network_forward.1} parent=0 // pred_fallthru
    _
  // Predicated region
  $region6: #{recurrent_network_forward.1} parent=0 // pred_check
    _
  $region7: #{recurrent_network_forward.1} parent=0 // pred_check_branch
    %17 = sbr.rel (0) target = $region9
  $region8: #{recurrent_network_forward.1} parent=0 // pred_region
    _
  $region9: #{recurrent_network_forward.1} parent=0 // pred_fallthru
    _
  // Predicated region
  $region10: #{recurrent_network_forward.1} parent=0 // pred_check
    _
  $region11: #{recurrent_network_forward.1} parent=0 // pred_check_branch
    %19 = sbr.rel (0) target = $region13
  $region12: #{recurrent_network_forward.1} parent=0 // pred_region
    _
  $region13: #{recurrent_network_forward.1} parent=0 // pred_fallthru
    _
  // Predicated region
  $region14: #{recurrent_network_forward.1} parent=0 // pred_check
    _
  $region15: #{recurrent_network_forward.1} parent=0 // pred_check_branch
    %21 = sbr.rel (0) target = $region17
  $region16: #{recurrent_network_forward.1} parent=0 // pred_region
    _
  $region17: #{recurrent_network_forward.1} parent=0 // pred_fallthru
    _
  // Predicated region
  $region18: #{recurrent_network_forward.1} parent=0 // pred_check
    _
  $region19: #{recurrent_network_forward.1} parent=0 // pred_check_branch
    %23 = sbr.rel (0) target = $region21
  $region20: #{recurrent_network_forward.1} parent=0 // pred_region
    _
  $region21: #{recurrent_network_forward.1} parent=0 // pred_fallthru
    _
  // Predicated region
  $region22: #{recurrent_network_forward.1} parent=0 // pred_check
    _
  $region23: #{recurrent_network_forward.1} parent=0 // pred_check_branch
    %25 = sbr.rel (0) target = $region25
  $region24: #{recurrent_network_forward.1} parent=0 // pred_region
    _
  $region25: #{recurrent_network_forward.1} parent=0 // pred_fallthru
    _
  // Predicated region
  $region26: #{recurrent_network_forward.1} parent=0 // pred_check
    _
  $region27: #{recurrent_network_forward.1} parent=0 // pred_check_branch
    %27 = sbr.rel (0) target = $region29
  $region28: #{recurrent_network_forward.1} parent=0 // pred_region
    _
  $region29: #{recurrent_network_forward.1} parent=0 // pred_fallthru
    _
  // Predicated region
  $region30: #{recurrent_network_forward.1} parent=0 // pred_check
    _
  $region31: #{recurrent_network_forward.1} parent=0 // pred_check_branch
    %29 = sbr.rel (0) target = $region33
  $region32: #{recurrent_network_forward.1} parent=0 // pred_region
    _
  $region33: #{recurrent_network_forward.1} parent=0 // pred_fallthru
    _
  // Predicated region
  $region34: #{recurrent_network_forward.1} parent=0 // pred_check
    _
  $region35: #{recurrent_network_forward.1} parent=0 // pred_check_branch
    %31 = sbr.rel (0) target = $region37
  $region36: #{recurrent_network_forward.1} parent=0 // pred_region
    _
  $region37: #{recurrent_network_forward.1} parent=0 // pred_fallthru
    _
  %v33 = vld [vmem:[%s0] sm:$0xf]
  %v34 = vld [vmem:[%s0 + $0x4] sm:$0xf]
  %v35 = vld [vmem:[%s0 + $0x8] sm:$0xf]
  %v36 = vld [vmem:[%s0 + $0xc] sm:$0xf]
  %v37 = vld [vmem:[%s0 + $0x10] sm:$0xf]
  %v38 = vld [vmem:[%s0 + $0x14] sm:$0xf]
  %v39 = vld [vmem:[%s0 + $0x18] sm:$0xf]
  %v40 = vld [vmem:[%s0 + $0x1c] sm:$0xf]
  %v41 = vld [vmem:[%s0 + $0x20] sm:$0xf]
  %v42 = vld [vmem:[%s0 + $0x24] sm:$0xf]
  %v43 = vld [vmem:[%s0 + $0x28] sm:$0xf]
  %v44 = vld [vmem:[%s0 + $0x2c] sm:$0xf]
  %v45 = vld [vmem:[%s0 + $0x30] sm:$0xf]
  %v46 = vld [vmem:[%s0 + $0x34] sm:$0xf]
  %v47 = vld [vmem:[%s0 + $0x38] sm:$0xf]
  %v48 = vld [vmem:[%s0 + $0x3c] sm:$0xf]
  %v49 = vld [vmem:[%s1] sm:$0xf]
  %v50 = vld [vmem:[%s1 + $0x4] sm:$0xf]
  %v51 = vld [vmem:[%s1 + $0x8] sm:$0xf]
  %v52 = vld [vmem:[%s1 + $0xc] sm:$0xf]
  %v53 = vld [vmem:[%s1 + $0x10] sm:$0xf]
  %v54 = vld [vmem:[%s1 + $0x14] sm:$0xf]
  %v55 = vld [vmem:[%s1 + $0x18] sm:$0xf]
  %v56 = vld [vmem:[%s1 + $0x1c] sm:$0xf]
  %v57 = vld [vmem:[%s1 + $0x20] sm:$0xf]
  %v58 = vld [vmem:[%s1 + $0x24] sm:$0xf]
  %v59 = vld [vmem:[%s1 + $0x28] sm:$0xf]
  %v60 = vld [vmem:[%s1 + $0x2c] sm:$0xf]
  %v61 = vld [vmem:[%s1 + $0x30] sm:$0xf]
  %v62 = vld [vmem:[%s1 + $0x34] sm:$0xf]
  %v63 = vld [vmem:[%s1 + $0x38] sm:$0xf]
  %v64 = vld [vmem:[%s1 + $0x3c] sm:$0xf]
  %v65 = vld [vmem:[%s3] sm:$0x1]
  %v67 = vlaneseq
  %v68 = vshrl.u32 %v67, 7
  %v69 = vsub.s32 0, %v68
  %v70 = vrot.slane %v65, %v69
  %v88 = vunpack.c.l.b16 %v33
  %v89 = vunpack.c.l.b16 %v34
  %v90 = vunpack.c.l.b16 %v35
  %v91 = vunpack.c.l.b16 %v36
  %v92 = vunpack.c.l.b16 %v37
  %v93 = vunpack.c.l.b16 %v38
  %v94 = vunpack.c.l.b16 %v39
  %v95 = vunpack.c.l.b16 %v40
  %v96 = vunpack.c.l.b16 %v41
  %v97 = vunpack.c.l.b16 %v42
  %v98 = vunpack.c.l.b16 %v43
  %v99 = vunpack.c.l.b16 %v44
  %v100 = vunpack.c.l.b16 %v45
  %v101 = vunpack.c.l.b16 %v46
  %v102 = vunpack.c.l.b16 %v47
  %v103 = vunpack.c.l.b16 %v48
  %v104 = vpack.c.b16 %v89, %v88
  %v105 = vpack.c.b16 %v91, %v90
  %v106 = vpack.c.b16 %v93, %v92
  %v107 = vpack.c.b16 %v95, %v94
  %v108 = vpack.c.b16 %v97, %v96
  %v109 = vpack.c.b16 %v99, %v98
  %v110 = vpack.c.b16 %v101, %v100
  %v111 = vpack.c.b16 %v103, %v102
  %v136 = vunpack.c.l.b16 %v49
  %v137 = vunpack.c.l.b16 %v50
  %v138 = vunpack.c.l.b16 %v51
  %v139 = vunpack.c.l.b16 %v52
  %v140 = vunpack.c.l.b16 %v53
  %v141 = vunpack.c.l.b16 %v54
  %v142 = vunpack.c.l.b16 %v55
  %v143 = vunpack.c.l.b16 %v56
  %v144 = vunpack.c.l.b16 %v57
  %v145 = vunpack.c.l.b16 %v58
  %v146 = vunpack.c.l.b16 %v59
  %v147 = vunpack.c.l.b16 %v60
  %v148 = vunpack.c.l.b16 %v61
  %v149 = vunpack.c.l.b16 %v62
  %v150 = vunpack.c.l.b16 %v63
  %v151 = vunpack.c.l.b16 %v64
  %v152 = vpack.c.b16 %v137, %v136
  %v153 = vpack.c.b16 %v139, %v138
  %v154 = vpack.c.b16 %v141, %v140
  %v155 = vpack.c.b16 %v143, %v142
  %v156 = vpack.c.b16 %v145, %v144
  %v157 = vpack.c.b16 %v147, %v146
  %v158 = vpack.c.b16 %v149, %v148
  %v159 = vpack.c.b16 %v151, %v150
  %168 = vmatprep.subr.bf16.mxu0 0
  %169 = vmatpush1.bf16.msra.mxu0 %v152
  %170 = vmatprep.subr.bf16.mxu0 0
  %171 = vmatpush1.bf16.msra.mxu0 %v153
  %172 = vmatprep.subr.bf16.mxu0 0
  %173 = vmatpush1.bf16.msra.mxu0 %v154
  %174 = vmatprep.subr.bf16.mxu0 0
  %175 = vmatpush1.bf16.msra.mxu0 %v155
  %176 = vmatprep.subr.bf16.mxu0 0
  %177 = vmatpush1.bf16.msra.mxu0 %v156
  %178 = vmatprep.subr.bf16.mxu0 0
  %179 = vmatpush1.bf16.msra.mxu0 %v157
  %180 = vmatprep.subr.bf16.mxu0 0
  %181 = vmatpush1.bf16.msra.mxu0 %v158
  %182 = vmatprep.subr.bf16.mxu0 0
  %183 = vmatpush1.bf16.msra.mxu0 %v159
  %184 = vmatprep.subr.bf16.mxu0 0
  %185 = vmatpush1.bf16.msra.mxu0 0
  %186 = vmatprep.subr.bf16.mxu0 0
  %187 = vmatpush1.bf16.msra.mxu0 0
  %188 = vmatprep.subr.bf16.mxu0 0
  %189 = vmatpush1.bf16.msra.mxu0 0
  %190 = vmatprep.subr.bf16.mxu0 0
  %191 = vmatpush1.bf16.msra.mxu0 0
  %192 = vmatprep.subr.bf16.mxu0 0
  %193 = vmatpush1.bf16.msra.mxu0 0
  %194 = vmatprep.subr.bf16.mxu0 0
  %195 = vmatpush1.bf16.msra.mxu0 0
  %196 = vmatprep.subr.bf16.mxu0 0
  %197 = vmatpush1.bf16.msra.mxu0 0
  %198 = vmatprep.subr.bf16.mxu0 0
  %199 = vmatpush1.bf16.msra.mxu0 0
  %200 = vmatprep.mubr.bf16.mxu0 0
  %201 = vmatmul.mubr.bf16.gmra.mrb[0].mxu0 %v104
  %v202 = vpop.f32.mrb[0].mxu0
  %v203 = vadd.f32 %v70, %v202
  %v204 = vpop.f32.mrb[0].mxu0
  %v205 = vpop.f32.mrb[0].mxu0
  %v206 = vadd.f32 %v70, %v205
  %v207 = vpop.f32.mrb[0].mxu0
  %208 = vmatprep.mubr.bf16.mxu0 0
  %209 = vmatmul.mubr.bf16.gmra.mrb[0].mxu0 %v105
  %v210 = vpop.f32.mrb[0].mxu0
  %v211 = vadd.f32 %v70, %v210
  %v212 = vpop.f32.mrb[0].mxu0
  %v213 = vpop.f32.mrb[0].mxu0
  %v214 = vadd.f32 %v70, %v213
  %v215 = vpop.f32.mrb[0].mxu0
  %216 = vmatprep.mubr.bf16.mxu0 0
  %217 = vmatmul.mubr.bf16.gmra.mrb[0].mxu0 %v106
  %v218 = vpop.f32.mrb[0].mxu0
  %v219 = vadd.f32 %v70, %v218
  %v220 = vpop.f32.mrb[0].mxu0
  %v221 = vpop.f32.mrb[0].mxu0
  %v222 = vadd.f32 %v70, %v221
  %v223 = vpop.f32.mrb[0].mxu0
  %224 = vmatprep.mubr.bf16.mxu0 0
  %225 = vmatmul.mubr.bf16.gmra.mrb[0].mxu0 %v107
  %v226 = vpop.f32.mrb[0].mxu0
  %v227 = vadd.f32 %v70, %v226
  %v228 = vpop.f32.mrb[0].mxu0
  %v229 = vpop.f32.mrb[0].mxu0
  %v230 = vadd.f32 %v70, %v229
  %v231 = vpop.f32.mrb[0].mxu0
  %232 = vmatprep.mubr.bf16.mxu0 0
  %233 = vmatmul.mubr.bf16.gmra.mrb[0].mxu0 %v108
  %v234 = vpop.f32.mrb[0].mxu0
  %v235 = vadd.f32 %v70, %v234
  %v236 = vpop.f32.mrb[0].mxu0
  %v237 = vpop.f32.mrb[0].mxu0
  %v238 = vadd.f32 %v70, %v237
  %v239 = vpop.f32.mrb[0].mxu0
  %240 = vmatprep.mubr.bf16.mxu0 0
  %241 = vmatmul.mubr.bf16.gmra.mrb[0].mxu0 %v109
  %v242 = vpop.f32.mrb[0].mxu0
  %v243 = vadd.f32 %v70, %v242
  %v244 = vpop.f32.mrb[0].mxu0
  %v245 = vpop.f32.mrb[0].mxu0
  %v246 = vadd.f32 %v70, %v245
  %v247 = vpop.f32.mrb[0].mxu0
  %248 = vmatprep.mubr.bf16.mxu0 0
  %249 = vmatmul.mubr.bf16.gmra.mrb[0].mxu0 %v110
  %v250 = vpop.f32.mrb[0].mxu0
  %v251 = vadd.f32 %v70, %v250
  %v252 = vpop.f32.mrb[0].mxu0
  %v253 = vpop.f32.mrb[0].mxu0
  %v254 = vadd.f32 %v70, %v253
  %v255 = vpop.f32.mrb[0].mxu0
  %256 = vmatprep.mubr.bf16.mxu0 0
  %257 = vmatmul.mubr.bf16.gmra.mrb[0].mxu0 %v111
  %v258 = vpop.f32.mrb[0].mxu0
  %v259 = vadd.f32 %v70, %v258
  %v260 = vpop.f32.mrb[0].mxu0
  %v261 = vpop.f32.mrb[0].mxu0
  %v262 = vadd.f32 %v70, %v261
  %v263 = vpop.f32.mrb[0].mxu0
  %264 = vdwg.mxu0
  %vm265 = vcmask 523264
  %266 = vst.msk [vmem:[#allocation2] sm:$0xff] %vm265, %v203
  %267 = vst.msk [vmem:[#allocation2 + $0x8] sm:$0xff] %vm265, %v206
  %s268 = scalar_lea.vmem [#allocation2], 112
  %vm269 = vcmask 1048064
  %270 = vst.msk [vmem:[%s268] sm:$0xff] %vm269, %v203
  %271 = vst.msk [vmem:[%s268 + $0x8] sm:$0xff] %vm269, %v206
  %s272 = scalar_lea.vmem [#allocation2], 16
  %273 = vst.msk [vmem:[%s272] sm:$0xff] %vm265, %v211
  %274 = vst.msk [vmem:[%s272 + $0x8] sm:$0xff] %vm265, %v214
  %s275 = scalar_lea.vmem [#allocation2], 96
  %276 = vst.msk [vmem:[%s275] sm:$0xff] %vm269, %v211
  %277 = vst.msk [vmem:[%s275 + $0x8] sm:$0xff] %vm269, %v214
  %s278 = scalar_lea.vmem [#allocation2], 32
  %279 = vst.msk [vmem:[%s278] sm:$0xff] %vm265, %v219
  %280 = vst.msk [vmem:[%s278 + $0x8] sm:$0xff] %vm265, %v222
  %s281 = scalar_lea.vmem [#allocation2], 80
  %282 = vst.msk [vmem:[%s281] sm:$0xff] %vm269, %v219
  %283 = vst.msk [vmem:[%s281 + $0x8] sm:$0xff] %vm269, %v222
  %s284 = scalar_lea.vmem [#allocation2], 48
  %285 = vst.msk [vmem:[%s284] sm:$0xff] %vm265, %v227
  %286 = vst.msk [vmem:[%s284 + $0x8] sm:$0xff] %vm265, %v230
  %s287 = scalar_lea.vmem [#allocation2], 64
  %288 = vst.msk [vmem:[%s287] sm:$0xff] %vm269, %v227
  %289 = vst.msk [vmem:[%s287 + $0x8] sm:$0xff] %vm269, %v230
  %290 = vst.msk [vmem:[%s287] sm:$0xff] %vm265, %v235
  %291 = vst.msk [vmem:[%s287 + $0x8] sm:$0xff] %vm265, %v238
  %292 = vst.msk [vmem:[%s284] sm:$0xff] %vm269, %v235
  %293 = vst.msk [vmem:[%s284 + $0x8] sm:$0xff] %vm269, %v238
  %294 = vst.msk [vmem:[%s281] sm:$0xff] %vm265, %v243
  %295 = vst.msk [vmem:[%s281 + $0x8] sm:$0xff] %vm265, %v246
  %296 = vst.msk [vmem:[%s278] sm:$0xff] %vm269, %v243
  %297 = vst.msk [vmem:[%s278 + $0x8] sm:$0xff] %vm269, %v246
  %298 = vst.msk [vmem:[%s275] sm:$0xff] %vm265, %v251
  %299 = vst.msk [vmem:[%s275 + $0x8] sm:$0xff] %vm265, %v254
  %300 = vst.msk [vmem:[%s272] sm:$0xff] %vm269, %v251
  %301 = vst.msk [vmem:[%s272 + $0x8] sm:$0xff] %vm269, %v254
  %302 = vst.msk [vmem:[%s268] sm:$0xff] %vm265, %v259
  %303 = vst.msk [vmem:[%s268 + $0x8] sm:$0xff] %vm265, %v262
  %304 = vst.msk [vmem:[#allocation2] sm:$0xff] %vm269, %v259
  %305 = vst.msk [vmem:[#allocation2 + $0x8] sm:$0xff] %vm269, %v262
  %v306 = vld [vmem:[%s2] sm:$0xf]
  %v307 = vld [vmem:[%s2 + $0x4] sm:$0xf]
  %v308 = vld [vmem:[%s2 + $0x8] sm:$0xf]
  %v309 = vld [vmem:[%s2 + $0xc] sm:$0xf]
  %v310 = vld [vmem:[%s2 + $0x10] sm:$0xf]
  %v311 = vld [vmem:[%s2 + $0x14] sm:$0xf]
  %v312 = vld [vmem:[%s2 + $0x18] sm:$0xf]
  %v313 = vld [vmem:[%s2 + $0x1c] sm:$0xf]
  %v314 = vld [vmem:[%s2 + $0x20] sm:$0xf]
  %v315 = vld [vmem:[%s2 + $0x24] sm:$0xf]
  %v316 = vld [vmem:[%s2 + $0x28] sm:$0xf]
  %v317 = vld [vmem:[%s2 + $0x2c] sm:$0xf]
  %v318 = vld [vmem:[%s2 + $0x30] sm:$0xf]
  %v319 = vld [vmem:[%s2 + $0x34] sm:$0xf]
  %v320 = vld [vmem:[%s2 + $0x38] sm:$0xf]
  %v321 = vld [vmem:[%s2 + $0x3c] sm:$0xf]
  %v322 = vld [vmem:[#allocation2] sm:$0xff]
  %v323 = vld [vmem:[#allocation2 + $0x8] sm:$0xff]
  %v340 = vunpack.c.l.b16 %v306
  %v341 = vunpack.c.l.b16 %v307
  %v342 = vunpack.c.l.b16 %v308
  %v343 = vunpack.c.l.b16 %v309
  %v344 = vunpack.c.l.b16 %v310
  %v345 = vunpack.c.l.b16 %v311
  %v346 = vunpack.c.l.b16 %v312
  %v347 = vunpack.c.l.b16 %v313
  %v348 = vunpack.c.l.b16 %v314
  %v349 = vunpack.c.l.b16 %v315
  %v350 = vunpack.c.l.b16 %v316
  %v351 = vunpack.c.l.b16 %v317
  %v352 = vunpack.c.l.b16 %v318
  %v353 = vunpack.c.l.b16 %v319
  %v354 = vunpack.c.l.b16 %v320
  %v355 = vunpack.c.l.b16 %v321
  %v356 = vpack.c.b16 %v341, %v340
  %v357 = vpack.c.b16 %v343, %v342
  %v358 = vpack.c.b16 %v345, %v344
  %v359 = vpack.c.b16 %v347, %v346
  %v360 = vpack.c.b16 %v349, %v348
  %v361 = vpack.c.b16 %v351, %v350
  %v362 = vpack.c.b16 %v353, %v352
  %v363 = vpack.c.b16 %v355, %v354
  %372 = vmatprep.subr.bf16.mxu0 0
  %373 = vmatpush1.bf16.msra.mxu0 %v356
  %374 = vmatprep.subr.bf16.mxu0 0
  %375 = vmatpush1.bf16.msra.mxu0 %v357
  %376 = vmatprep.subr.bf16.mxu0 0
  %377 = vmatpush1.bf16.msra.mxu0 %v358
  %378 = vmatprep.subr.bf16.mxu0 0
  %379 = vmatpush1.bf16.msra.mxu0 %v359
  %380 = vmatprep.subr.bf16.mxu0 0
  %381 = vmatpush1.bf16.msra.mxu0 %v360
  %382 = vmatprep.subr.bf16.mxu0 0
  %383 = vmatpush1.bf16.msra.mxu0 %v361
  %384 = vmatprep.subr.bf16.mxu0 0
  %385 = vmatpush1.bf16.msra.mxu0 %v362
  %386 = vmatprep.subr.bf16.mxu0 0
  %387 = vmatpush1.bf16.msra.mxu0 %v363
  %388 = vmatprep.subr.bf16.mxu0 0
  %389 = vmatpush1.bf16.msra.mxu0 0
  %390 = vmatprep.subr.bf16.mxu0 0
  %391 = vmatpush1.bf16.msra.mxu0 0
  %392 = vmatprep.subr.bf16.mxu0 0
  %393 = vmatpush1.bf16.msra.mxu0 0
  %394 = vmatprep.subr.bf16.mxu0 0
  %395 = vmatpush1.bf16.msra.mxu0 0
  %396 = vmatprep.subr.bf16.mxu0 0
  %397 = vmatpush1.bf16.msra.mxu0 0
  %398 = vmatprep.subr.bf16.mxu0 0
  %399 = vmatpush1.bf16.msra.mxu0 0
  %400 = vmatprep.subr.bf16.mxu0 0
  %401 = vmatpush1.bf16.msra.mxu0 0
  %402 = vmatprep.subr.bf16.mxu0 0
  %403 = vmatpush1.bf16.msra.mxu0 0
  %404 = vmatprep.mubr.bf16.mxu0 0
  %405 = vmatmul.mubr.bf16.gmra.mrb[0].mxu0 0
  %v406 = vpop.f32.mrb[0].mxu0
  %v407 = vadd.f32 0.0, %v406
  %v408 = vpop.f32.mrb[0].mxu0
  %v409 = vpop.f32.mrb[0].mxu0
  %v410 = vadd.f32 0.0, %v409
  %v411 = vpop.f32.mrb[0].mxu0
  %412 = vdwg.mxu0
  %v413 = vadd.f32 %v322, %v407
  %v414 = vadd.f32 %v323, %v410
  %v415 = vmax.f32 %v413, 0.0
  %v416 = vmax.f32 %v414, 0.0
  %417 = vst [vmem:[#allocation3] sm:$0xff] %v415
  %418 = vst [vmem:[#allocation3 + $0x8] sm:$0xff] %v416
  %v419 = vld [vmem:[%s272] sm:$0xff]
  %v420 = vld [vmem:[%s272 + $0x8] sm:$0xff]
  %v421 = vpack.c.bf16 %v416, %v415
  %422 = vmatprep.subr.bf16.mxu0 0
  %423 = vmatpush1.bf16.msra.mxu0 %v356
  %424 = vmatprep.subr.bf16.mxu0 0
  %425 = vmatpush1.bf16.msra.mxu0 %v357
  %426 = vmatprep.subr.bf16.mxu0 0
  %427 = vmatpush1.bf16.msra.mxu0 %v358
  %428 = vmatprep.subr.bf16.mxu0 0
  %429 = vmatpush1.bf16.msra.mxu0 %v359
  %430 = vmatprep.subr.bf16.mxu0 0
  %431 = vmatpush1.bf16.msra.mxu0 %v360
  %432 = vmatprep.subr.bf16.mxu0 0
  %433 = vmatpush1.bf16.msra.mxu0 %v361
  %434 = vmatprep.subr.bf16.mxu0 0
  %435 = vmatpush1.bf16.msra.mxu0 %v362
  %436 = vmatprep.subr.bf16.mxu0 0
  %437 = vmatpush1.bf16.msra.mxu0 %v363
  %438 = vmatprep.subr.bf16.mxu0 0
  %439 = vmatpush1.bf16.msra.mxu0 0
  %440 = vmatprep.subr.bf16.mxu0 0
  %441 = vmatpush1.bf16.msra.mxu0 0
  %442 = vmatprep.subr.bf16.mxu0 0
  %443 = vmatpush1.bf16.msra.mxu0 0
  %444 = vmatprep.subr.bf16.mxu0 0
  %445 = vmatpush1.bf16.msra.mxu0 0
  %446 = vmatprep.subr.bf16.mxu0 0
  %447 = vmatpush1.bf16.msra.mxu0 0
  %448 = vmatprep.subr.bf16.mxu0 0
  %449 = vmatpush1.bf16.msra.mxu0 0
  %450 = vmatprep.subr.bf16.mxu0 0
  %451 = vmatpush1.bf16.msra.mxu0 0
  %452 = vmatprep.subr.bf16.mxu0 0
  %453 = vmatpush1.bf16.msra.mxu0 0
  %454 = vmatprep.mubr.bf16.mxu0 0
  %455 = vmatmul.mubr.bf16.gmra.mrb[0].mxu0 %v421
  %v456 = vpop.f32.mrb[0].mxu0
  %v457 = vadd.f32 0.0, %v456
  %v458 = vpop.f32.mrb[0].mxu0
  %v459 = vpop.f32.mrb[0].mxu0
  %v460 = vadd.f32 0.0, %v459
  %v461 = vpop.f32.mrb[0].mxu0
  %462 = vdwg.mxu0
  %v463 = vadd.f32 %v419, %v457
  %v464 = vadd.f32 %v420, %v460
  %v465 = vmax.f32 %v463, 0.0
  %v466 = vmax.f32 %v464, 0.0
  %467 = vst [vmem:[#allocation3 + $0x10] sm:$0xff] %v465
  %468 = vst [vmem:[#allocation3 + $0x18] sm:$0xff] %v466
  %v469 = vld [vmem:[%s278] sm:$0xff]
  %v470 = vld [vmem:[%s278 + $0x8] sm:$0xff]
  %v471 = vpack.c.bf16 %v466, %v465
  %472 = vmatprep.subr.bf16.mxu0 0
  %473 = vmatpush1.bf16.msra.mxu0 %v356
  %474 = vmatprep.subr.bf16.mxu0 0
  %475 = vmatpush1.bf16.msra.mxu0 %v357
  %476 = vmatprep.subr.bf16.mxu0 0
  %477 = vmatpush1.bf16.msra.mxu0 %v358
  %478 = vmatprep.subr.bf16.mxu0 0
  %479 = vmatpush1.bf16.msra.mxu0 %v359
  %480 = vmatprep.subr.bf16.mxu0 0
  %481 = vmatpush1.bf16.msra.mxu0 %v360
  %482 = vmatprep.subr.bf16.mxu0 0
  %483 = vmatpush1.bf16.msra.mxu0 %v361
  %484 = vmatprep.subr.bf16.mxu0 0
  %485 = vmatpush1.bf16.msra.mxu0 %v362
  %486 = vmatprep.subr.bf16.mxu0 0
  %487 = vmatpush1.bf16.msra.mxu0 %v363
  %488 = vmatprep.subr.bf16.mxu0 0
  %489 = vmatpush1.bf16.msra.mxu0 0
  %490 = vmatprep.subr.bf16.mxu0 0
  %491 = vmatpush1.bf16.msra.mxu0 0
  %492 = vmatprep.subr.bf16.mxu0 0
  %493 = vmatpush1.bf16.msra.mxu0 0
  %494 = vmatprep.subr.bf16.mxu0 0
  %495 = vmatpush1.bf16.msra.mxu0 0
  %496 = vmatprep.subr.bf16.mxu0 0
  %497 = vmatpush1.bf16.msra.mxu0 0
  %498 = vmatprep.subr.bf16.mxu0 0
  %499 = vmatpush1.bf16.msra.mxu0 0
  %500 = vmatprep.subr.bf16.mxu0 0
  %501 = vmatpush1.bf16.msra.mxu0 0
  %502 = vmatprep.subr.bf16.mxu0 0
  %503 = vmatpush1.bf16.msra.mxu0 0
  %504 = vmatprep.mubr.bf16.mxu0 0
  %505 = vmatmul.mubr.bf16.gmra.mrb[0].mxu0 %v471
  %v506 = vpop.f32.mrb[0].mxu0
  %v507 = vadd.f32 0.0, %v506
  %v508 = vpop.f32.mrb[0].mxu0
  %v509 = vpop.f32.mrb[0].mxu0
  %v510 = vadd.f32 0.0, %v509
  %v511 = vpop.f32.mrb[0].mxu0
  %512 = vdwg.mxu0
  %v513 = vadd.f32 %v469, %v507
  %v514 = vadd.f32 %v470, %v510
  %v515 = vmax.f32 %v513, 0.0
  %v516 = vmax.f32 %v514, 0.0
  %517 = vst [vmem:[#allocation3 + $0x20] sm:$0xff] %v515
  %518 = vst [vmem:[#allocation3 + $0x28] sm:$0xff] %v516
  %v519 = vld [vmem:[%s284] sm:$0xff]
  %v520 = vld [vmem:[%s284 + $0x8] sm:$0xff]
  %v521 = vpack.c.bf16 %v516, %v515
  %522 = vmatprep.subr.bf16.mxu0 0
  %523 = vmatpush1.bf16.msra.mxu0 %v356
  %524 = vmatprep.subr.bf16.mxu0 0
  %525 = vmatpush1.bf16.msra.mxu0 %v357
  %526 = vmatprep.subr.bf16.mxu0 0
  %527 = vmatpush1.bf16.msra.mxu0 %v358
  %528 = vmatprep.subr.bf16.mxu0 0
  %529 = vmatpush1.bf16.msra.mxu0 %v359
  %530 = vmatprep.subr.bf16.mxu0 0
  %531 = vmatpush1.bf16.msra.mxu0 %v360
  %532 = vmatprep.subr.bf16.mxu0 0
  %533 = vmatpush1.bf16.msra.mxu0 %v361
  %534 = vmatprep.subr.bf16.mxu0 0
  %535 = vmatpush1.bf16.msra.mxu0 %v362
  %536 = vmatprep.subr.bf16.mxu0 0
  %537 = vmatpush1.bf16.msra.mxu0 %v363
  %538 = vmatprep.subr.bf16.mxu0 0
  %539 = vmatpush1.bf16.msra.mxu0 0
  %540 = vmatprep.subr.bf16.mxu0 0
  %541 = vmatpush1.bf16.msra.mxu0 0
  %542 = vmatprep.subr.bf16.mxu0 0
  %543 = vmatpush1.bf16.msra.mxu0 0
  %544 = vmatprep.subr.bf16.mxu0 0
  %545 = vmatpush1.bf16.msra.mxu0 0
  %546 = vmatprep.subr.bf16.mxu0 0
  %547 = vmatpush1.bf16.msra.mxu0 0
  %548 = vmatprep.subr.bf16.mxu0 0
  %549 = vmatpush1.bf16.msra.mxu0 0
  %550 = vmatprep.subr.bf16.mxu0 0
  %551 = vmatpush1.bf16.msra.mxu0 0
  %552 = vmatprep.subr.bf16.mxu0 0
  %553 = vmatpush1.bf16.msra.mxu0 0
  %554 = vmatprep.mubr.bf16.mxu0 0
  %555 = vmatmul.mubr.bf16.gmra.mrb[0].mxu0 %v521
  %v556 = vpop.f32.mrb[0].mxu0
  %v557 = vadd.f32 0.0, %v556
  %v558 = vpop.f32.mrb[0].mxu0
  %v559 = vpop.f32.mrb[0].mxu0
  %v560 = vadd.f32 0.0, %v559
  %v561 = vpop.f32.mrb[0].mxu0
  %562 = vdwg.mxu0
  %v563 = vadd.f32 %v519, %v557
  %v564 = vadd.f32 %v520, %v560
  %v565 = vmax.f32 %v563, 0.0
  %v566 = vmax.f32 %v564, 0.0
  %567 = vst [vmem:[#allocation3 + $0x30] sm:$0xff] %v565
  %568 = vst [vmem:[#allocation3 + $0x38] sm:$0xff] %v566
  %v569 = vld [vmem:[%s287] sm:$0xff]
  %v570 = vld [vmem:[%s287 + $0x8] sm:$0xff]
  %v571 = vpack.c.bf16 %v566, %v565
  %572 = vmatprep.subr.bf16.mxu0 0
  %573 = vmatpush1.bf16.msra.mxu0 %v356
  %574 = vmatprep.subr.bf16.mxu0 0
  %575 = vmatpush1.bf16.msra.mxu0 %v357
  %576 = vmatprep.subr.bf16.mxu0 0
  %577 = vmatpush1.bf16.msra.mxu0 %v358
  %578 = vmatprep.subr.bf16.mxu0 0
  %579 = vmatpush1.bf16.msra.mxu0 %v359
  %580 = vmatprep.subr.bf16.mxu0 0
  %581 = vmatpush1.bf16.msra.mxu0 %v360
  %582 = vmatprep.subr.bf16.mxu0 0
  %583 = vmatpush1.bf16.msra.mxu0 %v361
  %584 = vmatprep.subr.bf16.mxu0 0
  %585 = vmatpush1.bf16.msra.mxu0 %v362
  %586 = vmatprep.subr.bf16.mxu0 0
  %587 = vmatpush1.bf16.msra.mxu0 %v363
  %588 = vmatprep.subr.bf16.mxu0 0
  %589 = vmatpush1.bf16.msra.mxu0 0
  %590 = vmatprep.subr.bf16.mxu0 0
  %591 = vmatpush1.bf16.msra.mxu0 0
  %592 = vmatprep.subr.bf16.mxu0 0
  %593 = vmatpush1.bf16.msra.mxu0 0
  %594 = vmatprep.subr.bf16.mxu0 0
  %595 = vmatpush1.bf16.msra.mxu0 0
  %596 = vmatprep.subr.bf16.mxu0 0
  %597 = vmatpush1.bf16.msra.mxu0 0
  %598 = vmatprep.subr.bf16.mxu0 0
  %599 = vmatpush1.bf16.msra.mxu0 0
  %600 = vmatprep.subr.bf16.mxu0 0
  %601 = vmatpush1.bf16.msra.mxu0 0
  %602 = vmatprep.subr.bf16.mxu0 0
  %603 = vmatpush1.bf16.msra.mxu0 0
  %604 = vmatprep.mubr.bf16.mxu0 0
  %605 = vmatmul.mubr.bf16.gmra.mrb[0].mxu0 %v571
  %v606 = vpop.f32.mrb[0].mxu0
  %v607 = vadd.f32 0.0, %v606
  %v608 = vpop.f32.mrb[0].mxu0
  %v609 = vpop.f32.mrb[0].mxu0
  %v610 = vadd.f32 0.0, %v609
  %v611 = vpop.f32.mrb[0].mxu0
  %612 = vdwg.mxu0
  %v613 = vadd.f32 %v569, %v607
  %v614 = vadd.f32 %v570, %v610
  %v615 = vmax.f32 %v613, 0.0
  %v616 = vmax.f32 %v614, 0.0
  %617 = vst [vmem:[#allocation3 + $0x40] sm:$0xff] %v615
  %618 = vst [vmem:[#allocation3 + $0x48] sm:$0xff] %v616
  %v619 = vld [vmem:[%s281] sm:$0xff]
  %v620 = vld [vmem:[%s281 + $0x8] sm:$0xff]
  %v621 = vpack.c.bf16 %v616, %v615
  %622 = vmatprep.subr.bf16.mxu0 0
  %623 = vmatpush1.bf16.msra.mxu0 %v356
  %624 = vmatprep.subr.bf16.mxu0 0
  %625 = vmatpush1.bf16.msra.mxu0 %v357
  %626 = vmatprep.subr.bf16.mxu0 0
  %627 = vmatpush1.bf16.msra.mxu0 %v358
  %628 = vmatprep.subr.bf16.mxu0 0
  %629 = vmatpush1.bf16.msra.mxu0 %v359
  %630 = vmatprep.subr.bf16.mxu0 0
  %631 = vmatpush1.bf16.msra.mxu0 %v360
  %632 = vmatprep.subr.bf16.mxu0 0
  %633 = vmatpush1.bf16.msra.mxu0 %v361
  %634 = vmatprep.subr.bf16.mxu0 0
  %635 = vmatpush1.bf16.msra.mxu0 %v362
  %636 = vmatprep.subr.bf16.mxu0 0
  %637 = vmatpush1.bf16.msra.mxu0 %v363
  %638 = vmatprep.subr.bf16.mxu0 0
  %639 = vmatpush1.bf16.msra.mxu0 0
  %640 = vmatprep.subr.bf16.mxu0 0
  %641 = vmatpush1.bf16.msra.mxu0 0
  %642 = vmatprep.subr.bf16.mxu0 0
  %643 = vmatpush1.bf16.msra.mxu0 0
  %644 = vmatprep.subr.bf16.mxu0 0
  %645 = vmatpush1.bf16.msra.mxu0 0
  %646 = vmatprep.subr.bf16.mxu0 0
  %647 = vmatpush1.bf16.msra.mxu0 0
  %648 = vmatprep.subr.bf16.mxu0 0
  %649 = vmatpush1.bf16.msra.mxu0 0
  %650 = vmatprep.subr.bf16.mxu0 0
  %651 = vmatpush1.bf16.msra.mxu0 0
  %652 = vmatprep.subr.bf16.mxu0 0
  %653 = vmatpush1.bf16.msra.mxu0 0
  %654 = vmatprep.mubr.bf16.mxu0 0
  %655 = vmatmul.mubr.bf16.gmra.mrb[0].mxu0 %v621
  %v656 = vpop.f32.mrb[0].mxu0
  %v657 = vadd.f32 0.0, %v656
  %v658 = vpop.f32.mrb[0].mxu0
  %v659 = vpop.f32.mrb[0].mxu0
  %v660 = vadd.f32 0.0, %v659
  %v661 = vpop.f32.mrb[0].mxu0
  %662 = vdwg.mxu0
  %v663 = vadd.f32 %v619, %v657
  %v664 = vadd.f32 %v620, %v660
  %v665 = vmax.f32 %v663, 0.0
  %v666 = vmax.f32 %v664, 0.0
  %667 = vst [vmem:[#allocation3 + $0x50] sm:$0xff] %v665
  %668 = vst [vmem:[#allocation3 + $0x58] sm:$0xff] %v666
  %v669 = vld [vmem:[%s275] sm:$0xff]
  %v670 = vld [vmem:[%s275 + $0x8] sm:$0xff]
  %v671 = vpack.c.bf16 %v666, %v665
  %672 = vmatprep.subr.bf16.mxu0 0
  %673 = vmatpush1.bf16.msra.mxu0 %v356
  %674 = vmatprep.subr.bf16.mxu0 0
  %675 = vmatpush1.bf16.msra.mxu0 %v357
  %676 = vmatprep.subr.bf16.mxu0 0
  %677 = vmatpush1.bf16.msra.mxu0 %v358
  %678 = vmatprep.subr.bf16.mxu0 0
  %679 = vmatpush1.bf16.msra.mxu0 %v359
  %680 = vmatprep.subr.bf16.mxu0 0
  %681 = vmatpush1.bf16.msra.mxu0 %v360
  %682 = vmatprep.subr.bf16.mxu0 0
  %683 = vmatpush1.bf16.msra.mxu0 %v361
  %684 = vmatprep.subr.bf16.mxu0 0
  %685 = vmatpush1.bf16.msra.mxu0 %v362
  %686 = vmatprep.subr.bf16.mxu0 0
  %687 = vmatpush1.bf16.msra.mxu0 %v363
  %688 = vmatprep.subr.bf16.mxu0 0
  %689 = vmatpush1.bf16.msra.mxu0 0
  %690 = vmatprep.subr.bf16.mxu0 0
  %691 = vmatpush1.bf16.msra.mxu0 0
  %692 = vmatprep.subr.bf16.mxu0 0
  %693 = vmatpush1.bf16.msra.mxu0 0
  %694 = vmatprep.subr.bf16.mxu0 0
  %695 = vmatpush1.bf16.msra.mxu0 0
  %696 = vmatprep.subr.bf16.mxu0 0
  %697 = vmatpush1.bf16.msra.mxu0 0
  %698 = vmatprep.subr.bf16.mxu0 0
  %699 = vmatpush1.bf16.msra.mxu0 0
  %700 = vmatprep.subr.bf16.mxu0 0
  %701 = vmatpush1.bf16.msra.mxu0 0
  %702 = vmatprep.subr.bf16.mxu0 0
  %703 = vmatpush1.bf16.msra.mxu0 0
  %704 = vmatprep.mubr.bf16.mxu0 0
  %705 = vmatmul.mubr.bf16.gmra.mrb[0].mxu0 %v671
  %v706 = vpop.f32.mrb[0].mxu0
  %v707 = vadd.f32 0.0, %v706
  %v708 = vpop.f32.mrb[0].mxu0
  %v709 = vpop.f32.mrb[0].mxu0
  %v710 = vadd.f32 0.0, %v709
  %v711 = vpop.f32.mrb[0].mxu0
  %712 = vdwg.mxu0
  %v713 = vadd.f32 %v669, %v707
  %v714 = vadd.f32 %v670, %v710
  %v715 = vmax.f32 %v713, 0.0
  %v716 = vmax.f32 %v714, 0.0
  %717 = vst [vmem:[#allocation3 + $0x60] sm:$0xff] %v715
  %718 = vst [vmem:[#allocation3 + $0x68] sm:$0xff] %v716
  %v719 = vld [vmem:[%s268] sm:$0xff]
  %v720 = vld [vmem:[%s268 + $0x8] sm:$0xff]
  %v721 = vpack.c.bf16 %v716, %v715
  %722 = vmatprep.subr.bf16.mxu0 0
  %723 = vmatpush1.bf16.msra.mxu0 %v356
  %724 = vmatprep.subr.bf16.mxu0 0
  %725 = vmatpush1.bf16.msra.mxu0 %v357
  %726 = vmatprep.subr.bf16.mxu0 0
  %727 = vmatpush1.bf16.msra.mxu0 %v358
  %728 = vmatprep.subr.bf16.mxu0 0
  %729 = vmatpush1.bf16.msra.mxu0 %v359
  %730 = vmatprep.subr.bf16.mxu0 0
  %731 = vmatpush1.bf16.msra.mxu0 %v360
  %732 = vmatprep.subr.bf16.mxu0 0
  %733 = vmatpush1.bf16.msra.mxu0 %v361
  %734 = vmatprep.subr.bf16.mxu0 0
  %735 = vmatpush1.bf16.msra.mxu0 %v362
  %736 = vmatprep.subr.bf16.mxu0 0
  %737 = vmatpush1.bf16.msra.mxu0 %v363
  %738 = vmatprep.subr.bf16.mxu0 0
  %739 = vmatpush1.bf16.msra.mxu0 0
  %740 = vmatprep.subr.bf16.mxu0 0
  %741 = vmatpush1.bf16.msra.mxu0 0
  %742 = vmatprep.subr.bf16.mxu0 0
  %743 = vmatpush1.bf16.msra.mxu0 0
  %744 = vmatprep.subr.bf16.mxu0 0
  %745 = vmatpush1.bf16.msra.mxu0 0
  %746 = vmatprep.subr.bf16.mxu0 0
  %747 = vmatpush1.bf16.msra.mxu0 0
  %748 = vmatprep.subr.bf16.mxu0 0
  %749 = vmatpush1.bf16.msra.mxu0 0
  %750 = vmatprep.subr.bf16.mxu0 0
  %751 = vmatpush1.bf16.msra.mxu0 0
  %752 = vmatprep.subr.bf16.mxu0 0
  %753 = vmatpush1.bf16.msra.mxu0 0
  %754 = vmatprep.mubr.bf16.mxu0 0
  %755 = vmatmul.mubr.bf16.gmra.mrb[0].mxu0 %v721
  %v756 = vpop.f32.mrb[0].mxu0
  %v757 = vadd.f32 0.0, %v756
  %v758 = vpop.f32.mrb[0].mxu0
  %v759 = vpop.f32.mrb[0].mxu0
  %v760 = vadd.f32 0.0, %v759
  %v761 = vpop.f32.mrb[0].mxu0
  %762 = vdwg.mxu0
  %v763 = vadd.f32 %v719, %v757
  %v764 = vadd.f32 %v720, %v760
  %v765 = vmax.f32 %v763, 0.0
  %v766 = vmax.f32 %v764, 0.0
  %767 = vst [vmem:[#allocation3 + $0x70] sm:$0xff] %v765
  %768 = vst [vmem:[#allocation3 + $0x78] sm:$0xff] %v766
  %v769 = vld [vmem:[#allocation3] sm:$0xff]
  %v770 = vld [vmem:[#allocation3 + $0x8] sm:$0xff]
  %v771 = vld [vmem:[#allocation3 + $0x10] sm:$0xff]
  %v772 = vld [vmem:[#allocation3 + $0x18] sm:$0xff]
  %v773 = vld [vmem:[#allocation3 + $0x20] sm:$0xff]
  %v774 = vld [vmem:[#allocation3 + $0x28] sm:$0xff]
  %v775 = vld [vmem:[#allocation3 + $0x30] sm:$0xff]
  %v776 = vld [vmem:[#allocation3 + $0x38] sm:$0xff]
  %v777 = vld [vmem:[#allocation3 + $0x40] sm:$0xff]
  %v778 = vld [vmem:[#allocation3 + $0x48] sm:$0xff]
  %v779 = vld [vmem:[#allocation3 + $0x50] sm:$0xff]
  %v780 = vld [vmem:[#allocation3 + $0x58] sm:$0xff]
  %v781 = vld [vmem:[#allocation3 + $0x60] sm:$0xff]
  %v782 = vld [vmem:[#allocation3 + $0x68] sm:$0xff]
  %v783 = vld [vmem:[#allocation3 + $0x70] sm:$0xff]
  %v784 = vld [vmem:[#allocation3 + $0x78] sm:$0xff]
  %v785 = vpack.c.bf16 %v770, %v769
  %v786 = vpack.c.bf16 %v772, %v771
  %v787 = vpack.c.bf16 %v774, %v773
  %v788 = vpack.c.bf16 %v776, %v775
  %v789 = vpack.c.bf16 %v778, %v777
  %v790 = vpack.c.bf16 %v780, %v779
  %v791 = vpack.c.bf16 %v782, %v781
  %v792 = vpack.c.bf16 %v784, %v783
  %v793 = vld [vmem:[%s4] sm:$0xf]
  %v794 = vld [vmem:[%s4 + $0x4] sm:$0xf]
  %v795 = vld [vmem:[%s4 + $0x8] sm:$0xf]
  %v796 = vld [vmem:[%s4 + $0xc] sm:$0xf]
  %v797 = vld [vmem:[%s4 + $0x10] sm:$0xf]
  %v798 = vld [vmem:[%s4 + $0x14] sm:$0xf]
  %v799 = vld [vmem:[%s4 + $0x18] sm:$0xf]
  %v800 = vld [vmem:[%s4 + $0x1c] sm:$0xf]
  %v809 = vunpack.c.l.b16 %v793
  %v810 = vunpack.c.l.b16 %v794
  %v811 = vunpack.c.l.b16 %v795
  %v812 = vunpack.c.l.b16 %v796
  %v813 = vunpack.c.l.b16 %v797
  %v814 = vunpack.c.l.b16 %v798
  %v815 = vunpack.c.l.b16 %v799
  %v816 = vunpack.c.l.b16 %v800
  %v817 = vpack.c.b16 %v810, %v809
  %v818 = vpack.c.b16 %v812, %v811
  %v819 = vpack.c.b16 %v814, %v813
  %v820 = vpack.c.b16 %v816, %v815
  %v826 = vsel %vm265, %v785, 0
  %v829 = vsel %vm265, %v786, 0
  %v832 = vsel %vm265, %v787, 0
  %v835 = vsel %vm265, %v788, 0
  %v838 = vsel %vm265, %v789, 0
  %v841 = vsel %vm265, %v790, 0
  %v844 = vsel %vm265, %v791, 0
  %v847 = vsel %vm265, %v792, 0
  %849 = vmatprep.subr.bf16.mxu0 0
  %850 = vmatpush1.bf16.msra.mxu0 %v817
  %851 = vmatprep.subr.bf16.mxu0 0
  %852 = vmatpush1.bf16.msra.mxu0 %v818
  %853 = vmatprep.subr.bf16.mxu0 0
  %854 = vmatpush1.bf16.msra.mxu0 %v819
  %855 = vmatprep.subr.bf16.mxu0 0
  %856 = vmatpush1.bf16.msra.mxu0 %v820
  %857 = vmatprep.subr.bf16.mxu0 0
  %858 = vmatpush1.bf16.msra.mxu0 0
  %859 = vmatprep.subr.bf16.mxu0 0
  %860 = vmatpush1.bf16.msra.mxu0 0
  %861 = vmatprep.subr.bf16.mxu0 0
  %862 = vmatpush1.bf16.msra.mxu0 0
  %863 = vmatprep.subr.bf16.mxu0 0
  %864 = vmatpush1.bf16.msra.mxu0 0
  %865 = vmatprep.subr.bf16.mxu0 0
  %866 = vmatpush1.bf16.msra.mxu0 0
  %867 = vmatprep.subr.bf16.mxu0 0
  %868 = vmatpush1.bf16.msra.mxu0 0
  %869 = vmatprep.subr.bf16.mxu0 0
  %870 = vmatpush1.bf16.msra.mxu0 0
  %871 = vmatprep.subr.bf16.mxu0 0
  %872 = vmatpush1.bf16.msra.mxu0 0
  %873 = vmatprep.subr.bf16.mxu0 0
  %874 = vmatpush1.bf16.msra.mxu0 0
  %875 = vmatprep.subr.bf16.mxu0 0
  %876 = vmatpush1.bf16.msra.mxu0 0
  %877 = vmatprep.subr.bf16.mxu0 0
  %878 = vmatpush1.bf16.msra.mxu0 0
  %879 = vmatprep.subr.bf16.mxu0 0
  %880 = vmatpush1.bf16.msra.mxu0 0
  %881 = vmatprep.mubr.bf16.mxu0 0
  %882 = vmatmul.mubr.bf16.gmra.mrb[0].mxu0 %v826
  %v883 = vpop.f32.mrb[0].mxu0
  %v884 = vadd.f32 0.0, %v883
  %v885 = vpop.f32.mrb[0].mxu0
  %v886 = vpop.f32.mrb[0].mxu0
  %v887 = vadd.f32 0.0, %v886
  %v888 = vpop.f32.mrb[0].mxu0
  %889 = vmatprep.mubr.bf16.mxu0 0
  %890 = vmatmul.mubr.bf16.gmra.mrb[0].mxu0 %v829
  %v891 = vpop.f32.mrb[0].mxu0
  %v892 = vadd.f32 0.0, %v891
  %v893 = vpop.f32.mrb[0].mxu0
  %v894 = vpop.f32.mrb[0].mxu0
  %v895 = vadd.f32 0.0, %v894
  %v896 = vpop.f32.mrb[0].mxu0
  %897 = vmatprep.mubr.bf16.mxu0 0
  %898 = vmatmul.mubr.bf16.gmra.mrb[0].mxu0 %v832
  %v899 = vpop.f32.mrb[0].mxu0
  %v900 = vadd.f32 0.0, %v899
  %v901 = vpop.f32.mrb[0].mxu0
  %v902 = vpop.f32.mrb[0].mxu0
  %v903 = vadd.f32 0.0, %v902
  %v904 = vpop.f32.mrb[0].mxu0
  %905 = vmatprep.mubr.bf16.mxu0 0
  %906 = vmatmul.mubr.bf16.gmra.mrb[0].mxu0 %v835
  %v907 = vpop.f32.mrb[0].mxu0
  %v908 = vadd.f32 0.0, %v907
  %v909 = vpop.f32.mrb[0].mxu0
  %v910 = vpop.f32.mrb[0].mxu0
  %v911 = vadd.f32 0.0, %v910
  %v912 = vpop.f32.mrb[0].mxu0
  %913 = vmatprep.mubr.bf16.mxu0 0
  %914 = vmatmul.mubr.bf16.gmra.mrb[0].mxu0 %v838
  %v915 = vpop.f32.mrb[0].mxu0
  %v916 = vadd.f32 0.0, %v915
  %v917 = vpop.f32.mrb[0].mxu0
  %v918 = vpop.f32.mrb[0].mxu0
  %v919 = vadd.f32 0.0, %v918
  %v920 = vpop.f32.mrb[0].mxu0
  %921 = vmatprep.mubr.bf16.mxu0 0
  %922 = vmatmul.mubr.bf16.gmra.mrb[0].mxu0 %v841
  %v923 = vpop.f32.mrb[0].mxu0
  %v924 = vadd.f32 0.0, %v923
  %v925 = vpop.f32.mrb[0].mxu0
  %v926 = vpop.f32.mrb[0].mxu0
  %v927 = vadd.f32 0.0, %v926
  %v928 = vpop.f32.mrb[0].mxu0
  %929 = vmatprep.mubr.bf16.mxu0 0
  %930 = vmatmul.mubr.bf16.gmra.mrb[0].mxu0 %v844
  %v931 = vpop.f32.mrb[0].mxu0
  %v932 = vadd.f32 0.0, %v931
  %v933 = vpop.f32.mrb[0].mxu0
  %v934 = vpop.f32.mrb[0].mxu0
  %v935 = vadd.f32 0.0, %v934
  %v936 = vpop.f32.mrb[0].mxu0
  %937 = vmatprep.mubr.bf16.mxu0 0
  %938 = vmatmul.mubr.bf16.gmra.mrb[0].mxu0 %v847
  %v939 = vpop.f32.mrb[0].mxu0
  %v940 = vadd.f32 0.0, %v939
  %v941 = vpop.f32.mrb[0].mxu0
  %v942 = vpop.f32.mrb[0].mxu0
  %v943 = vadd.f32 0.0, %v942
  %v944 = vpop.f32.mrb[0].mxu0
  %945 = vdwg.mxu0
  %v946 = vld [vmem:[%s4 + $0x20] sm:$0xf]
  %v947 = vld [vmem:[%s4 + $0x24] sm:$0xf]
  %v948 = vld [vmem:[%s4 + $0x28] sm:$0xf]
  %v949 = vld [vmem:[%s4 + $0x2c] sm:$0xf]
  %v950 = vld [vmem:[%s4 + $0x30] sm:$0xf]
  %v951 = vld [vmem:[%s4 + $0x34] sm:$0xf]
  %v952 = vld [vmem:[%s4 + $0x38] sm:$0xf]
  %v953 = vld [vmem:[%s4 + $0x3c] sm:$0xf]
  %962 = vrot.lane.b32.xlu0 %v785, 64
  %v963 = vpop.permute.xlu0 %962
  %964 = vrot.lane.b32.xlu0 %v786, 64
  %v965 = vpop.permute.xlu0 %964
  %966 = vrot.lane.b32.xlu0 %v787, 64
  %v967 = vpop.permute.xlu0 %966
  %968 = vrot.lane.b32.xlu0 %v788, 64
  %v969 = vpop.permute.xlu0 %968
  %970 = vrot.lane.b32.xlu0 %v789, 64
  %v971 = vpop.permute.xlu0 %970
  %972 = vrot.lane.b32.xlu0 %v790, 64
  %v973 = vpop.permute.xlu0 %972
  %974 = vrot.lane.b32.xlu0 %v791, 64
  %v975 = vpop.permute.xlu0 %974
  %976 = vrot.lane.b32.xlu0 %v792, 64
  %v977 = vpop.permute.xlu0 %976
  %v986 = vunpack.c.l.b16 %v946
  %v987 = vunpack.c.l.b16 %v947
  %v988 = vunpack.c.l.b16 %v948
  %v989 = vunpack.c.l.b16 %v949
  %v990 = vunpack.c.l.b16 %v950
  %v991 = vunpack.c.l.b16 %v951
  %v992 = vunpack.c.l.b16 %v952
  %v993 = vunpack.c.l.b16 %v953
  %v994 = vpack.c.b16 %v987, %v986
  %v995 = vpack.c.b16 %v989, %v988
  %v996 = vpack.c.b16 %v991, %v990
  %v997 = vpack.c.b16 %v993, %v992
  %v1003 = vsel %vm265, %v963, 0
  %v1006 = vsel %vm265, %v965, 0
  %v1009 = vsel %vm265, %v967, 0
  %v1012 = vsel %vm265, %v969, 0
  %v1015 = vsel %vm265, %v971, 0
  %v1018 = vsel %vm265, %v973, 0
  %v1021 = vsel %vm265, %v975, 0
  %v1024 = vsel %vm265, %v977, 0
  %1026 = vmatprep.subr.bf16.mxu0 0
  %1027 = vmatpush1.bf16.msra.mxu0 %v994
  %1028 = vmatprep.subr.bf16.mxu0 0
  %1029 = vmatpush1.bf16.msra.mxu0 %v995
  %1030 = vmatprep.subr.bf16.mxu0 0
  %1031 = vmatpush1.bf16.msra.mxu0 %v996
  %1032 = vmatprep.subr.bf16.mxu0 0
  %1033 = vmatpush1.bf16.msra.mxu0 %v997
  %1034 = vmatprep.subr.bf16.mxu0 0
  %1035 = vmatpush1.bf16.msra.mxu0 0
  %1036 = vmatprep.subr.bf16.mxu0 0
  %1037 = vmatpush1.bf16.msra.mxu0 0
  %1038 = vmatprep.subr.bf16.mxu0 0
  %1039 = vmatpush1.bf16.msra.mxu0 0
  %1040 = vmatprep.subr.bf16.mxu0 0
  %1041 = vmatpush1.bf16.msra.mxu0 0
  %1042 = vmatprep.subr.bf16.mxu0 0
  %1043 = vmatpush1.bf16.msra.mxu0 0
  %1044 = vmatprep.subr.bf16.mxu0 0
  %1045 = vmatpush1.bf16.msra.mxu0 0
  %1046 = vmatprep.subr.bf16.mxu0 0
  %1047 = vmatpush1.bf16.msra.mxu0 0
  %1048 = vmatprep.subr.bf16.mxu0 0
  %1049 = vmatpush1.bf16.msra.mxu0 0
  %1050 = vmatprep.subr.bf16.mxu0 0
  %1051 = vmatpush1.bf16.msra.mxu0 0
  %1052 = vmatprep.subr.bf16.mxu0 0
  %1053 = vmatpush1.bf16.msra.mxu0 0
  %1054 = vmatprep.subr.bf16.mxu0 0
  %1055 = vmatpush1.bf16.msra.mxu0 0
  %1056 = vmatprep.subr.bf16.mxu0 0
  %1057 = vmatpush1.bf16.msra.mxu0 0
  %1058 = vmatprep.mubr.bf16.mxu0 0
  %1059 = vmatmul.mubr.bf16.gmra.mrb[0].mxu0 %v1003
  %v1060 = vpop.f32.mrb[0].mxu0
  %v1061 = vadd.f32 0.0, %v1060
  %v1062 = vpop.f32.mrb[0].mxu0
  %v1063 = vpop.f32.mrb[0].mxu0
  %v1064 = vadd.f32 0.0, %v1063
  %v1065 = vpop.f32.mrb[0].mxu0
  %1066 = vmatprep.mubr.bf16.mxu0 0
  %1067 = vmatmul.mubr.bf16.gmra.mrb[0].mxu0 %v1006
  %v1068 = vpop.f32.mrb[0].mxu0
  %v1069 = vadd.f32 0.0, %v1068
  %v1070 = vpop.f32.mrb[0].mxu0
  %v1071 = vpop.f32.mrb[0].mxu0
  %v1072 = vadd.f32 0.0, %v1071
  %v1073 = vpop.f32.mrb[0].mxu0
  %1074 = vmatprep.mubr.bf16.mxu0 0
  %1075 = vmatmul.mubr.bf16.gmra.mrb[0].mxu0 %v1009
  %v1076 = vpop.f32.mrb[0].mxu0
  %v1077 = vadd.f32 0.0, %v1076
  %v1078 = vpop.f32.mrb[0].mxu0
  %v1079 = vpop.f32.mrb[0].mxu0
  %v1080 = vadd.f32 0.0, %v1079
  %v1081 = vpop.f32.mrb[0].mxu0
  %1082 = vmatprep.mubr.bf16.mxu0 0
  %1083 = vmatmul.mubr.bf16.gmra.mrb[0].mxu0 %v1012
  %v1084 = vpop.f32.mrb[0].mxu0
  %v1085 = vadd.f32 0.0, %v1084
  %v1086 = vpop.f32.mrb[0].mxu0
  %v1087 = vpop.f32.mrb[0].mxu0
  %v1088 = vadd.f32 0.0, %v1087
  %v1089 = vpop.f32.mrb[0].mxu0
  %1090 = vmatprep.mubr.bf16.mxu0 0
  %1091 = vmatmul.mubr.bf16.gmra.mrb[0].mxu0 %v1015
  %v1092 = vpop.f32.mrb[0].mxu0
  %v1093 = vadd.f32 0.0, %v1092
  %v1094 = vpop.f32.mrb[0].mxu0
  %v1095 = vpop.f32.mrb[0].mxu0
  %v1096 = vadd.f32 0.0, %v1095
  %v1097 = vpop.f32.mrb[0].mxu0
  %1098 = vmatprep.mubr.bf16.mxu0 0
  %1099 = vmatmul.mubr.bf16.gmra.mrb[0].mxu0 %v1018
  %v1100 = vpop.f32.mrb[0].mxu0
  %v1101 = vadd.f32 0.0, %v1100
  %v1102 = vpop.f32.mrb[0].mxu0
  %v1103 = vpop.f32.mrb[0].mxu0
  %v1104 = vadd.f32 0.0, %v1103
  %v1105 = vpop.f32.mrb[0].mxu0
  %1106 = vmatprep.mubr.bf16.mxu0 0
  %1107 = vmatmul.mubr.bf16.gmra.mrb[0].mxu0 %v1021
  %v1108 = vpop.f32.mrb[0].mxu0
  %v1109 = vadd.f32 0.0, %v1108
  %v1110 = vpop.f32.mrb[0].mxu0
  %v1111 = vpop.f32.mrb[0].mxu0
  %v1112 = vadd.f32 0.0, %v1111
  %v1113 = vpop.f32.mrb[0].mxu0
  %1114 = vmatprep.mubr.bf16.mxu0 0
  %1115 = vmatmul.mubr.bf16.gmra.mrb[0].mxu0 %v1024
  %v1116 = vpop.f32.mrb[0].mxu0
  %v1117 = vadd.f32 0.0, %v1116
  %v1118 = vpop.f32.mrb[0].mxu0
  %v1119 = vpop.f32.mrb[0].mxu0
  %v1120 = vadd.f32 0.0, %v1119
  %v1121 = vpop.f32.mrb[0].mxu0
  %1122 = vdwg.mxu0
  %v1123 = vld [vmem:[%s6] sm:$0x1]
  %v1124 = vadd.f32 %v884, %v1117
  %v1125 = vadd.f32 %v887, %v1120
  %v1127 = vlaneseq
  %v1128 = vshrl.u32 %v1127, 7
  %v1129 = vsub.s32 0, %v1128
  %v1130 = vrot.slane %v1123, %v1129
  %v1132 = vadd.f32 %v1124, %v1130
  %v1133 = vadd.f32 %v1125, %v1130
  %1134 = vst.msk [vmem:[#allocation2] sm:$0xff] %vm265, %v1132
  %1135 = vst.msk [vmem:[#allocation2 + $0x8] sm:$0xff] %vm265, %v1133
  %1136 = vst.msk [vmem:[%s268] sm:$0xff] %vm269, %v1132
  %1137 = vst.msk [vmem:[%s268 + $0x8] sm:$0xff] %vm269, %v1133
  %v1138 = vadd.f32 %v892, %v1109
  %v1139 = vadd.f32 %v895, %v1112
  %v1140 = vadd.f32 %v1138, %v1130
  %v1141 = vadd.f32 %v1139, %v1130
  %1142 = vst.msk [vmem:[%s272] sm:$0xff] %vm265, %v1140
  %1143 = vst.msk [vmem:[%s272 + $0x8] sm:$0xff] %vm265, %v1141
  %1144 = vst.msk [vmem:[%s275] sm:$0xff] %vm269, %v1140
  %1145 = vst.msk [vmem:[%s275 + $0x8] sm:$0xff] %vm269, %v1141
  %v1146 = vadd.f32 %v900, %v1101
  %v1147 = vadd.f32 %v903, %v1104
  %v1148 = vadd.f32 %v1146, %v1130
  %v1149 = vadd.f32 %v1147, %v1130
  %1150 = vst.msk [vmem:[%s278] sm:$0xff] %vm265, %v1148
  %1151 = vst.msk [vmem:[%s278 + $0x8] sm:$0xff] %vm265, %v1149
  %1152 = vst.msk [vmem:[%s281] sm:$0xff] %vm269, %v1148
  %1153 = vst.msk [vmem:[%s281 + $0x8] sm:$0xff] %vm269, %v1149
  %v1154 = vadd.f32 %v908, %v1093
  %v1155 = vadd.f32 %v911, %v1096
  %v1156 = vadd.f32 %v1154, %v1130
  %v1157 = vadd.f32 %v1155, %v1130
  %1158 = vst.msk [vmem:[%s284] sm:$0xff] %vm265, %v1156
  %1159 = vst.msk [vmem:[%s284 + $0x8] sm:$0xff] %vm265, %v1157
  %1160 = vst.msk [vmem:[%s287] sm:$0xff] %vm269, %v1156
  %1161 = vst.msk [vmem:[%s287 + $0x8] sm:$0xff] %vm269, %v1157
  %v1162 = vadd.f32 %v916, %v1085
  %v1163 = vadd.f32 %v919, %v1088
  %v1164 = vadd.f32 %v1162, %v1130
  %v1165 = vadd.f32 %v1163, %v1130
  %1166 = vst.msk [vmem:[%s287] sm:$0xff] %vm265, %v1164
  %1167 = vst.msk [vmem:[%s287 + $0x8] sm:$0xff] %vm265, %v1165
  %1168 = vst.msk [vmem:[%s284] sm:$0xff] %vm269, %v1164
  %1169 = vst.msk [vmem:[%s284 + $0x8] sm:$0xff] %vm269, %v1165
  %v1170 = vadd.f32 %v924, %v1077
  %v1171 = vadd.f32 %v927, %v1080
  %v1172 = vadd.f32 %v1170, %v1130
  %v1173 = vadd.f32 %v1171, %v1130
  %1174 = vst.msk [vmem:[%s281] sm:$0xff] %vm265, %v1172
  %1175 = vst.msk [vmem:[%s281 + $0x8] sm:$0xff] %vm265, %v1173
  %1176 = vst.msk [vmem:[%s278] sm:$0xff] %vm269, %v1172
  %1177 = vst.msk [vmem:[%s278 + $0x8] sm:$0xff] %vm269, %v1173
  %v1178 = vadd.f32 %v932, %v1069
  %v1179 = vadd.f32 %v935, %v1072
  %v1180 = vadd.f32 %v1178, %v1130
  %v1181 = vadd.f32 %v1179, %v1130
  %1182 = vst.msk [vmem:[%s275] sm:$0xff] %vm265, %v1180
  %1183 = vst.msk [vmem:[%s275 + $0x8] sm:$0xff] %vm265, %v1181
  %1184 = vst.msk [vmem:[%s272] sm:$0xff] %vm269, %v1180
  %1185 = vst.msk [vmem:[%s272 + $0x8] sm:$0xff] %vm269, %v1181
  %v1186 = vadd.f32 %v940, %v1061
  %v1187 = vadd.f32 %v943, %v1064
  %v1188 = vadd.f32 %v1186, %v1130
  %v1189 = vadd.f32 %v1187, %v1130
  %1190 = vst.msk [vmem:[%s268] sm:$0xff] %vm265, %v1188
  %1191 = vst.msk [vmem:[%s268 + $0x8] sm:$0xff] %vm265, %v1189
  %1192 = vst.msk [vmem:[#allocation2] sm:$0xff] %vm269, %v1188
  %1193 = vst.msk [vmem:[#allocation2 + $0x8] sm:$0xff] %vm269, %v1189
  %v1194 = vld [vmem:[%s5] sm:$0xf]
  %v1195 = vld [vmem:[%s5 + $0x4] sm:$0xf]
  %v1196 = vld [vmem:[%s5 + $0x8] sm:$0xf]
  %v1197 = vld [vmem:[%s5 + $0xc] sm:$0xf]
  %v1198 = vld [vmem:[%s5 + $0x10] sm:$0xf]
  %v1199 = vld [vmem:[%s5 + $0x14] sm:$0xf]
  %v1200 = vld [vmem:[%s5 + $0x18] sm:$0xf]
  %v1201 = vld [vmem:[%s5 + $0x1c] sm:$0xf]
  %v1202 = vld [vmem:[%s5 + $0x20] sm:$0xf]
  %v1203 = vld [vmem:[%s5 + $0x24] sm:$0xf]
  %v1204 = vld [vmem:[%s5 + $0x28] sm:$0xf]
  %v1205 = vld [vmem:[%s5 + $0x2c] sm:$0xf]
  %v1206 = vld [vmem:[%s5 + $0x30] sm:$0xf]
  %v1207 = vld [vmem:[%s5 + $0x34] sm:$0xf]
  %v1208 = vld [vmem:[%s5 + $0x38] sm:$0xf]
  %v1209 = vld [vmem:[%s5 + $0x3c] sm:$0xf]
  %v1210 = vld [vmem:[#allocation2] sm:$0xff]
  %v1211 = vld [vmem:[#allocation2 + $0x8] sm:$0xff]
  %v1228 = vunpack.c.l.b16 %v1194
  %v1229 = vunpack.c.l.b16 %v1195
  %v1230 = vunpack.c.l.b16 %v1196
  %v1231 = vunpack.c.l.b16 %v1197
  %v1232 = vunpack.c.l.b16 %v1198
  %v1233 = vunpack.c.l.b16 %v1199
  %v1234 = vunpack.c.l.b16 %v1200
  %v1235 = vunpack.c.l.b16 %v1201
  %v1236 = vunpack.c.l.b16 %v1202
  %v1237 = vunpack.c.l.b16 %v1203
  %v1238 = vunpack.c.l.b16 %v1204
  %v1239 = vunpack.c.l.b16 %v1205
  %v1240 = vunpack.c.l.b16 %v1206
  %v1241 = vunpack.c.l.b16 %v1207
  %v1242 = vunpack.c.l.b16 %v1208
  %v1243 = vunpack.c.l.b16 %v1209
  %v1244 = vpack.c.b16 %v1229, %v1228
  %v1245 = vpack.c.b16 %v1231, %v1230
  %v1246 = vpack.c.b16 %v1233, %v1232
  %v1247 = vpack.c.b16 %v1235, %v1234
  %v1248 = vpack.c.b16 %v1237, %v1236
  %v1249 = vpack.c.b16 %v1239, %v1238
  %v1250 = vpack.c.b16 %v1241, %v1240
  %v1251 = vpack.c.b16 %v1243, %v1242
  %1260 = vmatprep.subr.bf16.mxu0 0
  %1261 = vmatpush1.bf16.msra.mxu0 %v1244
  %1262 = vmatprep.subr.bf16.mxu0 0
  %1263 = vmatpush1.bf16.msra.mxu0 %v1245
  %1264 = vmatprep.subr.bf16.mxu0 0
  %1265 = vmatpush1.bf16.msra.mxu0 %v1246
  %1266 = vmatprep.subr.bf16.mxu0 0
  %1267 = vmatpush1.bf16.msra.mxu0 %v1247
  %1268 = vmatprep.subr.bf16.mxu0 0
  %1269 = vmatpush1.bf16.msra.mxu0 %v1248
  %1270 = vmatprep.subr.bf16.mxu0 0
  %1271 = vmatpush1.bf16.msra.mxu0 %v1249
  %1272 = vmatprep.subr.bf16.mxu0 0
  %1273 = vmatpush1.bf16.msra.mxu0 %v1250
  %1274 = vmatprep.subr.bf16.mxu0 0
  %1275 = vmatpush1.bf16.msra.mxu0 %v1251
  %1276 = vmatprep.subr.bf16.mxu0 0
  %1277 = vmatpush1.bf16.msra.mxu0 0
  %1278 = vmatprep.subr.bf16.mxu0 0
  %1279 = vmatpush1.bf16.msra.mxu0 0
  %1280 = vmatprep.subr.bf16.mxu0 0
  %1281 = vmatpush1.bf16.msra.mxu0 0
  %1282 = vmatprep.subr.bf16.mxu0 0
  %1283 = vmatpush1.bf16.msra.mxu0 0
  %1284 = vmatprep.subr.bf16.mxu0 0
  %1285 = vmatpush1.bf16.msra.mxu0 0
  %1286 = vmatprep.subr.bf16.mxu0 0
  %1287 = vmatpush1.bf16.msra.mxu0 0
  %1288 = vmatprep.subr.bf16.mxu0 0
  %1289 = vmatpush1.bf16.msra.mxu0 0
  %1290 = vmatprep.subr.bf16.mxu0 0
  %1291 = vmatpush1.bf16.msra.mxu0 0
  %1292 = vmatprep.mubr.bf16.mxu0 0
  %1293 = vmatmul.mubr.bf16.gmra.mrb[0].mxu0 0
  %v1294 = vpop.f32.mrb[0].mxu0
  %v1295 = vadd.f32 0.0, %v1294
  %v1296 = vpop.f32.mrb[0].mxu0
  %v1297 = vpop.f32.mrb[0].mxu0
  %v1298 = vadd.f32 0.0, %v1297
  %v1299 = vpop.f32.mrb[0].mxu0
  %1300 = vdwg.mxu0
  %v1301 = vadd.f32 %v1210, %v1295
  %v1302 = vadd.f32 %v1211, %v1298
  %v1303 = vmax.f32 %v1301, 0.0
  %v1304 = vmax.f32 %v1302, 0.0
  %1305 = vst [vmem:[#allocation4] sm:$0xff] %v1303
  %1306 = vst [vmem:[#allocation4 + $0x8] sm:$0xff] %v1304
  %v1307 = vld [vmem:[%s272] sm:$0xff]
  %v1308 = vld [vmem:[%s272 + $0x8] sm:$0xff]
  %v1309 = vpack.c.bf16 %v1304, %v1303
  %1310 = vmatprep.subr.bf16.mxu0 0
  %1311 = vmatpush1.bf16.msra.mxu0 %v1244
  %1312 = vmatprep.subr.bf16.mxu0 0
  %1313 = vmatpush1.bf16.msra.mxu0 %v1245
  %1314 = vmatprep.subr.bf16.mxu0 0
  %1315 = vmatpush1.bf16.msra.mxu0 %v1246
  %1316 = vmatprep.subr.bf16.mxu0 0
  %1317 = vmatpush1.bf16.msra.mxu0 %v1247
  %1318 = vmatprep.subr.bf16.mxu0 0
  %1319 = vmatpush1.bf16.msra.mxu0 %v1248
  %1320 = vmatprep.subr.bf16.mxu0 0
  %1321 = vmatpush1.bf16.msra.mxu0 %v1249
  %1322 = vmatprep.subr.bf16.mxu0 0
  %1323 = vmatpush1.bf16.msra.mxu0 %v1250
  %1324 = vmatprep.subr.bf16.mxu0 0
  %1325 = vmatpush1.bf16.msra.mxu0 %v1251
  %1326 = vmatprep.subr.bf16.mxu0 0
  %1327 = vmatpush1.bf16.msra.mxu0 0
  %1328 = vmatprep.subr.bf16.mxu0 0
  %1329 = vmatpush1.bf16.msra.mxu0 0
  %1330 = vmatprep.subr.bf16.mxu0 0
  %1331 = vmatpush1.bf16.msra.mxu0 0
  %1332 = vmatprep.subr.bf16.mxu0 0
  %1333 = vmatpush1.bf16.msra.mxu0 0
  %1334 = vmatprep.subr.bf16.mxu0 0
  %1335 = vmatpush1.bf16.msra.mxu0 0
  %1336 = vmatprep.subr.bf16.mxu0 0
  %1337 = vmatpush1.bf16.msra.mxu0 0
  %1338 = vmatprep.subr.bf16.mxu0 0
  %1339 = vmatpush1.bf16.msra.mxu0 0
  %1340 = vmatprep.subr.bf16.mxu0 0
  %1341 = vmatpush1.bf16.msra.mxu0 0
  %1342 = vmatprep.mubr.bf16.mxu0 0
  %1343 = vmatmul.mubr.bf16.gmra.mrb[0].mxu0 %v1309
  %v1344 = vpop.f32.mrb[0].mxu0
  %v1345 = vadd.f32 0.0, %v1344
  %v1346 = vpop.f32.mrb[0].mxu0
  %v1347 = vpop.f32.mrb[0].mxu0
  %v1348 = vadd.f32 0.0, %v1347
  %v1349 = vpop.f32.mrb[0].mxu0
  %1350 = vdwg.mxu0
  %v1351 = vadd.f32 %v1307, %v1345
  %v1352 = vadd.f32 %v1308, %v1348
  %v1353 = vmax.f32 %v1351, 0.0
  %v1354 = vmax.f32 %v1352, 0.0
  %s1355 = scalar_lea.vmem [#allocation4], 16
  %1356 = vst [vmem:[%s1355] sm:$0xff] %v1353
  %1357 = vst [vmem:[%s1355 + $0x8] sm:$0xff] %v1354
  %v1358 = vld [vmem:[%s278] sm:$0xff]
  %v1359 = vld [vmem:[%s278 + $0x8] sm:$0xff]
  %v1360 = vpack.c.bf16 %v1354, %v1353
  %1361 = vmatprep.subr.bf16.mxu0 0
  %1362 = vmatpush1.bf16.msra.mxu0 %v1244
  %1363 = vmatprep.subr.bf16.mxu0 0
  %1364 = vmatpush1.bf16.msra.mxu0 %v1245
  %1365 = vmatprep.subr.bf16.mxu0 0
  %1366 = vmatpush1.bf16.msra.mxu0 %v1246
  %1367 = vmatprep.subr.bf16.mxu0 0
  %1368 = vmatpush1.bf16.msra.mxu0 %v1247
  %1369 = vmatprep.subr.bf16.mxu0 0
  %1370 = vmatpush1.bf16.msra.mxu0 %v1248
  %1371 = vmatprep.subr.bf16.mxu0 0
  %1372 = vmatpush1.bf16.msra.mxu0 %v1249
  %1373 = vmatprep.subr.bf16.mxu0 0
  %1374 = vmatpush1.bf16.msra.mxu0 %v1250
  %1375 = vmatprep.subr.bf16.mxu0 0
  %1376 = vmatpush1.bf16.msra.mxu0 %v1251
  %1377 = vmatprep.subr.bf16.mxu0 0
  %1378 = vmatpush1.bf16.msra.mxu0 0
  %1379 = vmatprep.subr.bf16.mxu0 0
  %1380 = vmatpush1.bf16.msra.mxu0 0
  %1381 = vmatprep.subr.bf16.mxu0 0
  %1382 = vmatpush1.bf16.msra.mxu0 0
  %1383 = vmatprep.subr.bf16.mxu0 0
  %1384 = vmatpush1.bf16.msra.mxu0 0
  %1385 = vmatprep.subr.bf16.mxu0 0
  %1386 = vmatpush1.bf16.msra.mxu0 0
  %1387 = vmatprep.subr.bf16.mxu0 0
  %1388 = vmatpush1.bf16.msra.mxu0 0
  %1389 = vmatprep.subr.bf16.mxu0 0
  %1390 = vmatpush1.bf16.msra.mxu0 0
  %1391 = vmatprep.subr.bf16.mxu0 0
  %1392 = vmatpush1.bf16.msra.mxu0 0
  %1393 = vmatprep.mubr.bf16.mxu0 0
  %1394 = vmatmul.mubr.bf16.gmra.mrb[0].mxu0 %v1360
  %v1395 = vpop.f32.mrb[0].mxu0
  %v1396 = vadd.f32 0.0, %v1395
  %v1397 = vpop.f32.mrb[0].mxu0
  %v1398 = vpop.f32.mrb[0].mxu0
  %v1399 = vadd.f32 0.0, %v1398
  %v1400 = vpop.f32.mrb[0].mxu0
  %1401 = vdwg.mxu0
  %v1402 = vadd.f32 %v1358, %v1396
  %v1403 = vadd.f32 %v1359, %v1399
  %v1404 = vmax.f32 %v1402, 0.0
  %v1405 = vmax.f32 %v1403, 0.0
  %s1406 = scalar_lea.vmem [#allocation4], 32
  %1407 = vst [vmem:[%s1406] sm:$0xff] %v1404
  %1408 = vst [vmem:[%s1406 + $0x8] sm:$0xff] %v1405
  %v1409 = vld [vmem:[%s284] sm:$0xff]
  %v1410 = vld [vmem:[%s284 + $0x8] sm:$0xff]
  %v1411 = vpack.c.bf16 %v1405, %v1404
  %1412 = vmatprep.subr.bf16.mxu0 0
  %1413 = vmatpush1.bf16.msra.mxu0 %v1244
  %1414 = vmatprep.subr.bf16.mxu0 0
  %1415 = vmatpush1.bf16.msra.mxu0 %v1245
  %1416 = vmatprep.subr.bf16.mxu0 0
  %1417 = vmatpush1.bf16.msra.mxu0 %v1246
  %1418 = vmatprep.subr.bf16.mxu0 0
  %1419 = vmatpush1.bf16.msra.mxu0 %v1247
  %1420 = vmatprep.subr.bf16.mxu0 0
  %1421 = vmatpush1.bf16.msra.mxu0 %v1248
  %1422 = vmatprep.subr.bf16.mxu0 0
  %1423 = vmatpush1.bf16.msra.mxu0 %v1249
  %1424 = vmatprep.subr.bf16.mxu0 0
  %1425 = vmatpush1.bf16.msra.mxu0 %v1250
  %1426 = vmatprep.subr.bf16.mxu0 0
  %1427 = vmatpush1.bf16.msra.mxu0 %v1251
  %1428 = vmatprep.subr.bf16.mxu0 0
  %1429 = vmatpush1.bf16.msra.mxu0 0
  %1430 = vmatprep.subr.bf16.mxu0 0
  %1431 = vmatpush1.bf16.msra.mxu0 0
  %1432 = vmatprep.subr.bf16.mxu0 0
  %1433 = vmatpush1.bf16.msra.mxu0 0
  %1434 = vmatprep.subr.bf16.mxu0 0
  %1435 = vmatpush1.bf16.msra.mxu0 0
  %1436 = vmatprep.subr.bf16.mxu0 0
  %1437 = vmatpush1.bf16.msra.mxu0 0
  %1438 = vmatprep.subr.bf16.mxu0 0
  %1439 = vmatpush1.bf16.msra.mxu0 0
  %1440 = vmatprep.subr.bf16.mxu0 0
  %1441 = vmatpush1.bf16.msra.mxu0 0
  %1442 = vmatprep.subr.bf16.mxu0 0
  %1443 = vmatpush1.bf16.msra.mxu0 0
  %1444 = vmatprep.mubr.bf16.mxu0 0
  %1445 = vmatmul.mubr.bf16.gmra.mrb[0].mxu0 %v1411
  %v1446 = vpop.f32.mrb[0].mxu0
  %v1447 = vadd.f32 0.0, %v1446
  %v1448 = vpop.f32.mrb[0].mxu0
  %v1449 = vpop.f32.mrb[0].mxu0
  %v1450 = vadd.f32 0.0, %v1449
  %v1451 = vpop.f32.mrb[0].mxu0
  %1452 = vdwg.mxu0
  %v1453 = vadd.f32 %v1409, %v1447
  %v1454 = vadd.f32 %v1410, %v1450
  %v1455 = vmax.f32 %v1453, 0.0
  %v1456 = vmax.f32 %v1454, 0.0
  %s1457 = scalar_lea.vmem [#allocation4], 48
  %1458 = vst [vmem:[%s1457] sm:$0xff] %v1455
  %1459 = vst [vmem:[%s1457 + $0x8] sm:$0xff] %v1456
  %v1460 = vld [vmem:[%s287] sm:$0xff]
  %v1461 = vld [vmem:[%s287 + $0x8] sm:$0xff]
  %v1462 = vpack.c.bf16 %v1456, %v1455
  %1463 = vmatprep.subr.bf16.mxu0 0
  %1464 = vmatpush1.bf16.msra.mxu0 %v1244
  %1465 = vmatprep.subr.bf16.mxu0 0
  %1466 = vmatpush1.bf16.msra.mxu0 %v1245
  %1467 = vmatprep.subr.bf16.mxu0 0
  %1468 = vmatpush1.bf16.msra.mxu0 %v1246
  %1469 = vmatprep.subr.bf16.mxu0 0
  %1470 = vmatpush1.bf16.msra.mxu0 %v1247
  %1471 = vmatprep.subr.bf16.mxu0 0
  %1472 = vmatpush1.bf16.msra.mxu0 %v1248
  %1473 = vmatprep.subr.bf16.mxu0 0
  %1474 = vmatpush1.bf16.msra.mxu0 %v1249
  %1475 = vmatprep.subr.bf16.mxu0 0
  %1476 = vmatpush1.bf16.msra.mxu0 %v1250
  %1477 = vmatprep.subr.bf16.mxu0 0
  %1478 = vmatpush1.bf16.msra.mxu0 %v1251
  %1479 = vmatprep.subr.bf16.mxu0 0
  %1480 = vmatpush1.bf16.msra.mxu0 0
  %1481 = vmatprep.subr.bf16.mxu0 0
  %1482 = vmatpush1.bf16.msra.mxu0 0
  %1483 = vmatprep.subr.bf16.mxu0 0
  %1484 = vmatpush1.bf16.msra.mxu0 0
  %1485 = vmatprep.subr.bf16.mxu0 0
  %1486 = vmatpush1.bf16.msra.mxu0 0
  %1487 = vmatprep.subr.bf16.mxu0 0
  %1488 = vmatpush1.bf16.msra.mxu0 0
  %1489 = vmatprep.subr.bf16.mxu0 0
  %1490 = vmatpush1.bf16.msra.mxu0 0
  %1491 = vmatprep.subr.bf16.mxu0 0
  %1492 = vmatpush1.bf16.msra.mxu0 0
  %1493 = vmatprep.subr.bf16.mxu0 0
  %1494 = vmatpush1.bf16.msra.mxu0 0
  %1495 = vmatprep.mubr.bf16.mxu0 0
  %1496 = vmatmul.mubr.bf16.gmra.mrb[0].mxu0 %v1462
  %v1497 = vpop.f32.mrb[0].mxu0
  %v1498 = vadd.f32 0.0, %v1497
  %v1499 = vpop.f32.mrb[0].mxu0
  %v1500 = vpop.f32.mrb[0].mxu0
  %v1501 = vadd.f32 0.0, %v1500
  %v1502 = vpop.f32.mrb[0].mxu0
  %1503 = vdwg.mxu0
  %v1504 = vadd.f32 %v1460, %v1498
  %v1505 = vadd.f32 %v1461, %v1501
  %v1506 = vmax.f32 %v1504, 0.0
  %v1507 = vmax.f32 %v1505, 0.0
  %s1508 = scalar_lea.vmem [#allocation4], 64
  %1509 = vst [vmem:[%s1508] sm:$0xff] %v1506
  %1510 = vst [vmem:[%s1508 + $0x8] sm:$0xff] %v1507
  %v1511 = vld [vmem:[%s281] sm:$0xff]
  %v1512 = vld [vmem:[%s281 + $0x8] sm:$0xff]
  %v1513 = vpack.c.bf16 %v1507, %v1506
  %1514 = vmatprep.subr.bf16.mxu0 0
  %1515 = vmatpush1.bf16.msra.mxu0 %v1244
  %1516 = vmatprep.subr.bf16.mxu0 0
  %1517 = vmatpush1.bf16.msra.mxu0 %v1245
  %1518 = vmatprep.subr.bf16.mxu0 0
  %1519 = vmatpush1.bf16.msra.mxu0 %v1246
  %1520 = vmatprep.subr.bf16.mxu0 0
  %1521 = vmatpush1.bf16.msra.mxu0 %v1247
  %1522 = vmatprep.subr.bf16.mxu0 0
  %1523 = vmatpush1.bf16.msra.mxu0 %v1248
  %1524 = vmatprep.subr.bf16.mxu0 0
  %1525 = vmatpush1.bf16.msra.mxu0 %v1249
  %1526 = vmatprep.subr.bf16.mxu0 0
  %1527 = vmatpush1.bf16.msra.mxu0 %v1250
  %1528 = vmatprep.subr.bf16.mxu0 0
  %1529 = vmatpush1.bf16.msra.mxu0 %v1251
  %1530 = vmatprep.subr.bf16.mxu0 0
  %1531 = vmatpush1.bf16.msra.mxu0 0
  %1532 = vmatprep.subr.bf16.mxu0 0
  %1533 = vmatpush1.bf16.msra.mxu0 0
  %1534 = vmatprep.subr.bf16.mxu0 0
  %1535 = vmatpush1.bf16.msra.mxu0 0
  %1536 = vmatprep.subr.bf16.mxu0 0
  %1537 = vmatpush1.bf16.msra.mxu0 0
  %1538 = vmatprep.subr.bf16.mxu0 0
  %1539 = vmatpush1.bf16.msra.mxu0 0
  %1540 = vmatprep.subr.bf16.mxu0 0
  %1541 = vmatpush1.bf16.msra.mxu0 0
  %1542 = vmatprep.subr.bf16.mxu0 0
  %1543 = vmatpush1.bf16.msra.mxu0 0
  %1544 = vmatprep.subr.bf16.mxu0 0
  %1545 = vmatpush1.bf16.msra.mxu0 0
  %1546 = vmatprep.mubr.bf16.mxu0 0
  %1547 = vmatmul.mubr.bf16.gmra.mrb[0].mxu0 %v1513
  %v1548 = vpop.f32.mrb[0].mxu0
  %v1549 = vadd.f32 0.0, %v1548
  %v1550 = vpop.f32.mrb[0].mxu0
  %v1551 = vpop.f32.mrb[0].mxu0
  %v1552 = vadd.f32 0.0, %v1551
  %v1553 = vpop.f32.mrb[0].mxu0
  %1554 = vdwg.mxu0
  %v1555 = vadd.f32 %v1511, %v1549
  %v1556 = vadd.f32 %v1512, %v1552
  %v1557 = vmax.f32 %v1555, 0.0
  %v1558 = vmax.f32 %v1556, 0.0
  %s1559 = scalar_lea.vmem [#allocation4], 80
  %1560 = vst [vmem:[%s1559] sm:$0xff] %v1557
  %1561 = vst [vmem:[%s1559 + $0x8] sm:$0xff] %v1558
  %v1562 = vld [vmem:[%s275] sm:$0xff]
  %v1563 = vld [vmem:[%s275 + $0x8] sm:$0xff]
  %v1564 = vpack.c.bf16 %v1558, %v1557
  %1565 = vmatprep.subr.bf16.mxu0 0
  %1566 = vmatpush1.bf16.msra.mxu0 %v1244
  %1567 = vmatprep.subr.bf16.mxu0 0
  %1568 = vmatpush1.bf16.msra.mxu0 %v1245
  %1569 = vmatprep.subr.bf16.mxu0 0
  %1570 = vmatpush1.bf16.msra.mxu0 %v1246
  %1571 = vmatprep.subr.bf16.mxu0 0
  %1572 = vmatpush1.bf16.msra.mxu0 %v1247
  %1573 = vmatprep.subr.bf16.mxu0 0
  %1574 = vmatpush1.bf16.msra.mxu0 %v1248
  %1575 = vmatprep.subr.bf16.mxu0 0
  %1576 = vmatpush1.bf16.msra.mxu0 %v1249
  %1577 = vmatprep.subr.bf16.mxu0 0
  %1578 = vmatpush1.bf16.msra.mxu0 %v1250
  %1579 = vmatprep.subr.bf16.mxu0 0
  %1580 = vmatpush1.bf16.msra.mxu0 %v1251
  %1581 = vmatprep.subr.bf16.mxu0 0
  %1582 = vmatpush1.bf16.msra.mxu0 0
  %1583 = vmatprep.subr.bf16.mxu0 0
  %1584 = vmatpush1.bf16.msra.mxu0 0
  %1585 = vmatprep.subr.bf16.mxu0 0
  %1586 = vmatpush1.bf16.msra.mxu0 0
  %1587 = vmatprep.subr.bf16.mxu0 0
  %1588 = vmatpush1.bf16.msra.mxu0 0
  %1589 = vmatprep.subr.bf16.mxu0 0
  %1590 = vmatpush1.bf16.msra.mxu0 0
  %1591 = vmatprep.subr.bf16.mxu0 0
  %1592 = vmatpush1.bf16.msra.mxu0 0
  %1593 = vmatprep.subr.bf16.mxu0 0
  %1594 = vmatpush1.bf16.msra.mxu0 0
  %1595 = vmatprep.subr.bf16.mxu0 0
  %1596 = vmatpush1.bf16.msra.mxu0 0
  %1597 = vmatprep.mubr.bf16.mxu0 0
  %1598 = vmatmul.mubr.bf16.gmra.mrb[0].mxu0 %v1564
  %v1599 = vpop.f32.mrb[0].mxu0
  %v1600 = vadd.f32 0.0, %v1599
  %v1601 = vpop.f32.mrb[0].mxu0
  %v1602 = vpop.f32.mrb[0].mxu0
  %v1603 = vadd.f32 0.0, %v1602
  %v1604 = vpop.f32.mrb[0].mxu0
  %1605 = vdwg.mxu0
  %v1606 = vadd.f32 %v1562, %v1600
  %v1607 = vadd.f32 %v1563, %v1603
  %v1608 = vmax.f32 %v1606, 0.0
  %v1609 = vmax.f32 %v1607, 0.0
  %s1610 = scalar_lea.vmem [#allocation4], 96
  %1611 = vst [vmem:[%s1610] sm:$0xff] %v1608
  %1612 = vst [vmem:[%s1610 + $0x8] sm:$0xff] %v1609
  %v1613 = vld [vmem:[%s268] sm:$0xff]
  %v1614 = vld [vmem:[%s268 + $0x8] sm:$0xff]
  %v1615 = vpack.c.bf16 %v1609, %v1608
  %1616 = vmatprep.subr.bf16.mxu0 0
  %1617 = vmatpush1.bf16.msra.mxu0 %v1244
  %1618 = vmatprep.subr.bf16.mxu0 0
  %1619 = vmatpush1.bf16.msra.mxu0 %v1245
  %1620 = vmatprep.subr.bf16.mxu0 0
  %1621 = vmatpush1.bf16.msra.mxu0 %v1246
  %1622 = vmatprep.subr.bf16.mxu0 0
  %1623 = vmatpush1.bf16.msra.mxu0 %v1247
  %1624 = vmatprep.subr.bf16.mxu0 0
  %1625 = vmatpush1.bf16.msra.mxu0 %v1248
  %1626 = vmatprep.subr.bf16.mxu0 0
  %1627 = vmatpush1.bf16.msra.mxu0 %v1249
  %1628 = vmatprep.subr.bf16.mxu0 0
  %1629 = vmatpush1.bf16.msra.mxu0 %v1250
  %1630 = vmatprep.subr.bf16.mxu0 0
  %1631 = vmatpush1.bf16.msra.mxu0 %v1251
  %1632 = vmatprep.subr.bf16.mxu0 0
  %1633 = vmatpush1.bf16.msra.mxu0 0
  %1634 = vmatprep.subr.bf16.mxu0 0
  %1635 = vmatpush1.bf16.msra.mxu0 0
  %1636 = vmatprep.subr.bf16.mxu0 0
  %1637 = vmatpush1.bf16.msra.mxu0 0
  %1638 = vmatprep.subr.bf16.mxu0 0
  %1639 = vmatpush1.bf16.msra.mxu0 0
  %1640 = vmatprep.subr.bf16.mxu0 0
  %1641 = vmatpush1.bf16.msra.mxu0 0
  %1642 = vmatprep.subr.bf16.mxu0 0
  %1643 = vmatpush1.bf16.msra.mxu0 0
  %1644 = vmatprep.subr.bf16.mxu0 0
  %1645 = vmatpush1.bf16.msra.mxu0 0
  %1646 = vmatprep.subr.bf16.mxu0 0
  %1647 = vmatpush1.bf16.msra.mxu0 0
  %1648 = vmatprep.mubr.bf16.mxu0 0
  %1649 = vmatmul.mubr.bf16.gmra.mrb[0].mxu0 %v1615
  %v1650 = vpop.f32.mrb[0].mxu0
  %v1651 = vadd.f32 0.0, %v1650
  %v1652 = vpop.f32.mrb[0].mxu0
  %v1653 = vpop.f32.mrb[0].mxu0
  %v1654 = vadd.f32 0.0, %v1653
  %v1655 = vpop.f32.mrb[0].mxu0
  %1656 = vdwg.mxu0
  %v1657 = vadd.f32 %v1613, %v1651
  %v1658 = vadd.f32 %v1614, %v1654
  %v1659 = vmax.f32 %v1657, 0.0
  %v1660 = vmax.f32 %v1658, 0.0
  %s1661 = scalar_lea.vmem [#allocation4], 112
  %1662 = vst [vmem:[%s1661] sm:$0xff] %v1659
  %1663 = vst [vmem:[%s1661 + $0x8] sm:$0xff] %v1660
  %v1664 = vld [vmem:[#allocation4] sm:$0xff]
  %v1665 = vld [vmem:[#allocation4 + $0x8] sm:$0xff]
  %v1666 = vld [vmem:[#allocation4 + $0x10] sm:$0xff]
  %v1667 = vld [vmem:[#allocation4 + $0x18] sm:$0xff]
  %v1668 = vld [vmem:[#allocation4 + $0x20] sm:$0xff]
  %v1669 = vld [vmem:[#allocation4 + $0x28] sm:$0xff]
  %v1670 = vld [vmem:[#allocation4 + $0x30] sm:$0xff]
  %v1671 = vld [vmem:[#allocation4 + $0x38] sm:$0xff]
  %v1672 = vld [vmem:[#allocation4 + $0x40] sm:$0xff]
  %v1673 = vld [vmem:[#allocation4 + $0x48] sm:$0xff]
  %v1674 = vld [vmem:[#allocation4 + $0x50] sm:$0xff]
  %v1675 = vld [vmem:[#allocation4 + $0x58] sm:$0xff]
  %v1676 = vld [vmem:[#allocation4 + $0x60] sm:$0xff]
  %v1677 = vld [vmem:[#allocation4 + $0x68] sm:$0xff]
  %v1678 = vld [vmem:[#allocation4 + $0x70] sm:$0xff]
  %v1679 = vld [vmem:[#allocation4 + $0x78] sm:$0xff]
  %v1680 = vmax.f32 %v1664, %v1665
  %v1681 = vrot.slane %v1680, 4
  %v1682 = vmax.f32 %v1680, %v1681
  %v1683 = vrot.slane %v1682, 2
  %v1684 = vmax.f32 %v1682, %v1683
  %v1685 = vrot.slane %v1684, 1
  %v1686 = vmax.f32 %v1684, %v1685
  %v1687 = vmax.f32 %v1666, %v1667
  %v1688 = vrot.slane %v1687, 4
  %v1689 = vmax.f32 %v1687, %v1688
  %v1690 = vrot.slane %v1689, 2
  %v1691 = vmax.f32 %v1689, %v1690
  %v1692 = vrot.slane %v1691, 1
  %v1693 = vmax.f32 %v1691, %v1692
  %v1694 = vmax.f32 %v1668, %v1669
  %v1695 = vrot.slane %v1694, 4
  %v1696 = vmax.f32 %v1694, %v1695
  %v1697 = vrot.slane %v1696, 2
  %v1698 = vmax.f32 %v1696, %v1697
  %v1699 = vrot.slane %v1698, 1
  %v1700 = vmax.f32 %v1698, %v1699
  %v1701 = vmax.f32 %v1670, %v1671
  %v1702 = vrot.slane %v1701, 4
  %v1703 = vmax.f32 %v1701, %v1702
  %v1704 = vrot.slane %v1703, 2
  %v1705 = vmax.f32 %v1703, %v1704
  %v1706 = vrot.slane %v1705, 1
  %v1707 = vmax.f32 %v1705, %v1706
  %v1708 = vmax.f32 %v1672, %v1673
  %v1709 = vrot.slane %v1708, 4
  %v1710 = vmax.f32 %v1708, %v1709
  %v1711 = vrot.slane %v1710, 2
  %v1712 = vmax.f32 %v1710, %v1711
  %v1713 = vrot.slane %v1712, 1
  %v1714 = vmax.f32 %v1712, %v1713
  %v1715 = vmax.f32 %v1674, %v1675
  %v1716 = vrot.slane %v1715, 4
  %v1717 = vmax.f32 %v1715, %v1716
  %v1718 = vrot.slane %v1717, 2
  %v1719 = vmax.f32 %v1717, %v1718
  %v1720 = vrot.slane %v1719, 1
  %v1721 = vmax.f32 %v1719, %v1720
  %v1722 = vmax.f32 %v1676, %v1677
  %v1723 = vrot.slane %v1722, 4
  %v1724 = vmax.f32 %v1722, %v1723
  %v1725 = vrot.slane %v1724, 2
  %v1726 = vmax.f32 %v1724, %v1725
  %v1727 = vrot.slane %v1726, 1
  %v1728 = vmax.f32 %v1726, %v1727
  %v1729 = vmax.f32 %v1678, %v1679
  %v1730 = vrot.slane %v1729, 4
  %v1731 = vmax.f32 %v1729, %v1730
  %v1732 = vrot.slane %v1731, 2
  %v1733 = vmax.f32 %v1731, %v1732
  %v1734 = vrot.slane %v1733, 1
  %v1735 = vmax.f32 %v1733, %v1734
  %v1736 = vsel %vm265, %v1686, %v1735
  %v1737 = vsel %vm265, %v1693, %v1728
  %v1738 = vsel %vm265, %v1700, %v1721
  %v1739 = vsel %vm265, %v1707, %v1714
  %v1740 = vsel %vm265, %v1714, %v1707
  %v1741 = vsel %vm265, %v1721, %v1700
  %v1742 = vsel %vm265, %v1728, %v1693
  %v1743 = vsel %vm265, %v1735, %v1686
  %v1745 = vrot.slane %v1737, 7
  %v1748 = vrot.slane %v1738, 6
  %v1751 = vrot.slane %v1739, 5
  %v1754 = vrot.slane %v1740, 4
  %v1757 = vrot.slane %v1741, 3
  %v1760 = vrot.slane %v1742, 2
  %v1763 = vrot.slane %v1743, 1
  %vm1765 = vcmask 1040384
  %v1766 = vsel %vm1765, %v1736, %v1745
  %vm1767 = vcmask 1041408
  %v1768 = vsel %vm1767, %v1766, %v1748
  %vm1769 = vcmask 1042432
  %v1770 = vsel %vm1769, %v1768, %v1751
  %vm1771 = vcmask 1043456
  %v1772 = vsel %vm1771, %v1770, %v1754
  %vm1773 = vcmask 1044480
  %v1774 = vsel %vm1773, %v1772, %v1757
  %vm1775 = vcmask 1045504
  %v1776 = vsel %vm1775, %v1774, %v1760
  %vm1777 = vcmask 1046528
  %v1778 = vsel %vm1777, %v1776, %v1763
  %v1779 = vld [vmem:[%s7] sm:$0xff]
  %v1780 = vld [vmem:[%s7 + $0x8] sm:$0xff]
  %v1781 = vld [vmem:[%s7 + $0x10] sm:$0xff]
  %v1782 = vld [vmem:[%s7 + $0x18] sm:$0xff]
  %v1783 = vld [vmem:[%s7 + $0x20] sm:$0xff]
  %v1784 = vld [vmem:[%s7 + $0x28] sm:$0xff]
  %v1785 = vld [vmem:[%s7 + $0x30] sm:$0xff]
  %v1786 = vld [vmem:[%s7 + $0x38] sm:$0xff]
  %v1787 = vld [vmem:[%s7 + $0x40] sm:$0xff]
  %v1788 = vld [vmem:[%s7 + $0x48] sm:$0xff]
  %v1789 = vld [vmem:[%s7 + $0x50] sm:$0xff]
  %v1790 = vld [vmem:[%s7 + $0x58] sm:$0xff]
  %v1791 = vld [vmem:[%s7 + $0x60] sm:$0xff]
  %v1792 = vld [vmem:[%s7 + $0x68] sm:$0xff]
  %v1793 = vld [vmem:[%s7 + $0x70] sm:$0xff]
  %v1794 = vld [vmem:[%s7 + $0x78] sm:$0xff]
  %v1795 = vld [vmem:[%s8] sm:$0x1]
  %v1797 = vlaneseq
  %v1798 = vshrl.u32 %v1797, 7
  %v1799 = vsub.s32 0, %v1798
  %v1800 = vrot.slane %v1795, %v1799
  %1802 = vmatprep.subr.mxu0 0.0
  %1803 = vmatpush1.msra.mxu0 %v1779
  %1804 = vmatprep.subr.mxu0 0.0
  %1805 = vmatpush1.msra.mxu0 %v1780
  %1806 = vmatprep.subr.mxu0 0.0
  %1807 = vmatpush1.msra.mxu0 %v1781
  %1808 = vmatprep.subr.mxu0 0.0
  %1809 = vmatpush1.msra.mxu0 %v1782
  %1810 = vmatprep.subr.mxu0 0.0
  %1811 = vmatpush1.msra.mxu0 %v1783
  %1812 = vmatprep.subr.mxu0 0.0
  %1813 = vmatpush1.msra.mxu0 %v1784
  %1814 = vmatprep.subr.mxu0 0.0
  %1815 = vmatpush1.msra.mxu0 %v1785
  %1816 = vmatprep.subr.mxu0 0.0
  %1817 = vmatpush1.msra.mxu0 %v1786
  %1818 = vmatprep.subr.mxu0 0.0
  %1819 = vmatpush1.msra.mxu0 %v1787
  %1820 = vmatprep.subr.mxu0 0.0
  %1821 = vmatpush1.msra.mxu0 %v1788
  %1822 = vmatprep.subr.mxu0 0.0
  %1823 = vmatpush1.msra.mxu0 %v1789
  %1824 = vmatprep.subr.mxu0 0.0
  %1825 = vmatpush1.msra.mxu0 %v1790
  %1826 = vmatprep.subr.mxu0 0.0
  %1827 = vmatpush1.msra.mxu0 %v1791
  %1828 = vmatprep.subr.mxu0 0.0
  %1829 = vmatpush1.msra.mxu0 %v1792
  %1830 = vmatprep.subr.mxu0 0.0
  %1831 = vmatpush1.msra.mxu0 %v1793
  %1832 = vmatprep.subr.mxu0 0.0
  %1833 = vmatpush1.msra.mxu0 %v1794
  %1834 = vmatprep.subr.mxu0 0.0
  %1835 = vmatpush1.msra.mxu0 0.0
  %1836 = vmatprep.subr.mxu0 0.0
  %1837 = vmatpush1.msra.mxu0 0.0
  %1838 = vmatprep.subr.mxu0 0.0
  %1839 = vmatpush1.msra.mxu0 0.0
  %1840 = vmatprep.subr.mxu0 0.0
  %1841 = vmatpush1.msra.mxu0 0.0
  %1842 = vmatprep.subr.mxu0 0.0
  %1843 = vmatpush1.msra.mxu0 0.0
  %1844 = vmatprep.subr.mxu0 0.0
  %1845 = vmatpush1.msra.mxu0 0.0
  %1846 = vmatprep.subr.mxu0 0.0
  %1847 = vmatpush1.msra.mxu0 0.0
  %1848 = vmatprep.subr.mxu0 0.0
  %1849 = vmatpush1.msra.mxu0 0.0
  %1850 = vmatprep.subr.mxu0 0.0
  %1851 = vmatpush1.msra.mxu0 0.0
  %1852 = vmatprep.subr.mxu0 0.0
  %1853 = vmatpush1.msra.mxu0 0.0
  %1854 = vmatprep.subr.mxu0 0.0
  %1855 = vmatpush1.msra.mxu0 0.0
  %1856 = vmatprep.subr.mxu0 0.0
  %1857 = vmatpush1.msra.mxu0 0.0
  %1858 = vmatprep.subr.mxu0 0.0
  %1859 = vmatpush1.msra.mxu0 0.0
  %1860 = vmatprep.subr.mxu0 0.0
  %1861 = vmatpush1.msra.mxu0 0.0
  %1862 = vmatprep.subr.mxu0 0.0
  %1863 = vmatpush1.msra.mxu0 0.0
  %1864 = vmatprep.subr.mxu0 0.0
  %1865 = vmatpush1.msra.mxu0 0.0
  %1866 = vmatprep.mubr.f32.mxu0 0.0
  %1867 = vmatmul.mubr.f32.gmra.mrb[0].mxu0 %v1778
  %v1868 = vpop.f32.mrb[0].mxu0
  %v1869 = vadd.f32 %v1800, %v1868
  %v1870 = vpop.f32.mrb[0].mxu0
  %1871 = vdwg.mxu0
  %vm1872 = vcmask 31744
  %v1873 = vsel %vm1872, %v1869, -inf
  %1874 = vmax.xlane.f32.xlu0 %v1873
  %v1875 = vpop.xlane.xlu0 %1874
  %v1876 = vsub.f32 %v1869, %v1875
  %v1877 = vmul.f32 %v1876, 1.442695
  %v1878 = vpow.pop %v1877
  %v1879 = vsel %vm1872, %v1878, 0.0
  %1880 = vadd.xlane.f32.xlu0 %v1879
  %v1881 = vpop.xlane.xlu0 %1880
  %v1882 = vrcp.pop %v1881
  %v1883 = vmul.f32 %v1878, %v1882
  %1884 = vst.msk [vmem:[%s9] sm:$0xff] %vm1872, %v1883
  // Predicated region
  $region38: #{recurrent_network_forward.1} parent=0 // pred_check
    _
  $region39: #{recurrent_network_forward.1} parent=0 // pred_check_branch
    %1886 = sbr.rel (0) target = $region41
  $region40: #{recurrent_network_forward.1} parent=0 // pred_region
    _
  $region41: #{recurrent_network_forward.1} parent=0 // pred_fallthru
    _
  // Predicated region
  $region42: #{recurrent_network_forward.1} parent=0 // pred_check
    _
  $region43: #{recurrent_network_forward.1} parent=0 // pred_check_branch
    %1888 = sbr.rel (0) target = $region45
  $region44: #{recurrent_network_forward.1} parent=0 // pred_region
    _
  $region45: #{recurrent_network_forward.1} parent=0 // pred_fallthru
    _

</llo_original>
